<compile_context>
chip_gen: v5e
topology: v5e:2x2
jax: 0.10.0
libtpu: 0.0.40
codegen_flags: <defaults>
</compile_context>

<pallas_src>
import numpy as np
import jax
import jax.numpy as jnp
from jax.experimental import pallas as pl
from jax.experimental.pallas import tpu as pltpu

H_UNITS = 256                 # default h_units of the module
OUT_SHAPE = (4, 32)           # generated weight shape -> prod = 128 (lane friendly)
NEG_SLOPE = 0.01              # nn.LeakyReLU() default negative_slope


def _round_up(n, m):
    return ((n + m - 1) // m) * m


def _cdiv(a, b):
    return -(-a // b)


def _default_act_dtype():
    """bf16 activations on bf16-native-VPU chips (v6e/v7x); f32 elsewhere (v5e...)."""
    try:
        kind = jax.devices()[0].device_kind.lower()
    except Exception:
        return jnp.float32
    if ("v6" in kind) or ("v7" in kind) or ("7x" in kind):
        return jnp.bfloat16
    return jnp.float32


def make_hypernet_kernel(act_dtype):
    def kernel(x_ref, w_in_ref, b_ref, w_mid_ref, wo_ref, bo_ref, out_ref):
        x = x_ref[...]                      # (TB, noise_dim) f32
        x1 = x[:, 0:1]
        x2 = x[:, 1:2]
        x3 = x[:, 2:3]

        w_in = w_in_ref[...]                # (3, H) f32
        b = b_ref[...]                      # (9, H) f32

        def mm(h, k):
            # bf16 operands (no-op cast if already bf16), f32 accumulation on MXU.
            return jnp.dot(h.astype(jnp.bfloat16), w_mid_ref[k],
                           preferred_element_type=jnp.float32)

        def act(h):
            # Cast once after matmul+f32-bias, leaky-ReLU in act_dtype
            # (bf16 on v6e/v7x, f32 on v5e).
            h = h.astype(act_dtype)
            return jnp.where(h >= 0, h, NEG_SLOPE * h)

        # f1 / f3 / f5 have in_features == 1 -> K=1 matmul == broadcast multiply.
        h = act(x1 * w_in[0:1, :] + b[0:1, :])                   # f1 + act
        h = mm(h, 0) + b[1:2, :]                                  # f2
        h2 = act(x2 * w_in[1:2, :] + b[2:3, :])                   # f3 (act after cat)
        h = act(h)
        h = mm(h, 1) + mm(h2, 2) + b[3:4, :]                      # f4 (split-K cat)
        h3 = act(x3 * w_in[2:3, :] + b[4:5, :])                   # f5 (act after cat)
        h = act(h)
        h = mm(h, 3) + mm(h3, 4) + b[5:6, :]                      # f6 (split-K cat)
        h = act(h)
        h = mm(h, 5) + b[6:7, :]                                  # f7
        h = act(h)
        h = mm(h, 6) + b[7:8, :]                                  # f8
        h = act(h)
        h = mm(h, 7) + b[8:9, :]                                  # f9
        h = act(h)
        out_ref[...] = (jnp.dot(h.astype(jnp.bfloat16), wo_ref[...],
                                preferred_element_type=jnp.float32)
                        + bo_ref[...])                            # out (f32)
    return kernel


def _choose_batch_tile(B, block_b):
    # At least ceil(B/block_b) tiles (VMEM bound per tile); at least 2 tiles,
    # rounded to an even count, so the "parallel" batch grid can shard evenly
    # across both TensorCores on v7x. TB is 16-aligned (bf16 sublane packing).
    n_tiles = max(2, _cdiv(B, block_b))
    if n_tiles % 2:
        n_tiles += 1
    TB = _round_up(_cdiv(B, n_tiles), 16)
    B_pad = _round_up(B, TB)
    return TB, B_pad


def hypernet_forward(x, params, *, block_b=1024, act_dtype=None):
    """x: (B, noise_dim>=3) f32.  Returns (B, *OUT_SHAPE) f32."""
    w_in, b_stack, w_mid, wo, bo = params
    B, noise_dim = x.shape
    H = w_in.shape[1]
    P = wo.shape[1]
    if act_dtype is None:
        act_dtype = _default_act_dtype()

    TB, B_pad = _choose_batch_tile(B, block_b)
    if B_pad != B:
        x = jnp.pad(x, ((0, B_pad - B), (0, 0)))
    grid = (B_pad // TB,)

    flops = 2 * B_pad * (8 * H * H + H * P)
    bytes_accessed = (w_in.size * 4 + b_stack.size * 4 + w_mid.size * 2
                      + wo.size * 2 + bo.size * 4
                      + B_pad * (noise_dim + P) * 4)

    kernel = make_hypernet_kernel(act_dtype)

    def run(single_buffer_weights):
        # Constant index map => never re-DMA'd; a second buffer is dead weight.
        w_kw = ({"pipeline_mode": pl.Buffered(1)}
                if single_buffer_weights else {})
        return pl.pallas_call(
            kernel,
            out_shape=jax.ShapeDtypeStruct((B_pad, P), jnp.float32),
            grid=grid,
            in_specs=[
                pl.BlockSpec((TB, noise_dim), lambda i: (i, 0)),      # x (tiled)
                pl.BlockSpec(w_in.shape, lambda i: (0, 0), **w_kw),   # resident weights
                pl.BlockSpec(b_stack.shape, lambda i: (0, 0), **w_kw),
                pl.BlockSpec(w_mid.shape, lambda i: (0, 0, 0), **w_kw),
                pl.BlockSpec(wo.shape, lambda i: (0, 0), **w_kw),
                pl.BlockSpec(bo.shape, lambda i: (0, 0), **w_kw),
            ],
            out_specs=pl.BlockSpec((TB, P), lambda i: (i, 0)),
            compiler_params=pltpu.CompilerParams(
                dimension_semantics=("parallel",),       # megacore on v7x
                vmem_limit_bytes=32 * 1024 * 1024,       # safe under v7x 64 MiB/TC
            ),
            cost_estimate=pl.CostEstimate(
                flops=flops, transcendentals=0, bytes_accessed=bytes_accessed),
        )(x, w_in, b_stack, w_mid, wo, bo)

    try:
        flat = run(single_buffer_weights=True)
    except Exception:
        # Fallback for JAX builds where Buffered(1) on pallas_call inputs is
        # unsupported: default double-buffered weights (previously validated).
        flat = run(single_buffer_weights=False)
    return flat[:B].reshape((B,) + OUT_SHAPE)


def init_params(key, is_hyper_w=True):
    """Deterministic init matching the module's __init__ shapes, packed/transposed."""
    H = H_UNITS
    P = int(np.prod(OUT_SHAPE))
    ks = jax.random.split(key, 10)

    def xav(k, in_f, out_f):
        bound = float(np.sqrt(6.0 / (in_f + out_f)))
        return jax.random.uniform(k, (in_f, out_f), jnp.float32, -bound, bound)

    w1 = xav(ks[0], 1, H)
    w2 = xav(ks[1], H, H)
    w3 = xav(ks[2], 1, H)
    w4 = xav(ks[3], 2 * H, H); w4a, w4b = w4[:H], w4[H:]
    w5 = xav(ks[4], 1, H)
    w6 = xav(ks[5], 2 * H, H); w6a, w6b = w6[:H], w6[H:]
    w7 = xav(ks[6], H, H)
    w8 = xav(ks[7], H, H)
    w9 = xav(ks[8], H, H)

    # TODO(synk): hyperfan_in_W_init / hyperfan_in_b_init helpers are not in the
    # provided source; using the standard hyperfan-in uniform formula as a
    # deterministic stand-in (same weight shapes, zero bias).
    noise_var = (2 + 2) ** 2 / 12.0
    n_noise = 1
    relu_gain = 2.0
    fan_in_main = OUT_SHAPE[-1]
    if is_hyper_w:
        var = relu_gain / (2.0 * noise_var * n_noise * H * fan_in_main)
    else:
        var = relu_gain / (2.0 * noise_var * H)
    bound = float(np.sqrt(3.0 * var))
    wo = jax.random.uniform(ks[9], (H, P), jnp.float32, -bound, bound)

    w_in = jnp.concatenate([w1, w3, w5], axis=0)                    # (3, H)
    b_stack = jnp.zeros((9, H), jnp.float32)                        # b1..b9
    w_mid = jnp.stack([w2, w4a, w4b, w6a, w6b, w7, w8, w9], axis=0) # (8, H, H)
    bo = jnp.zeros((1, P), jnp.float32)

    return (w_in, b_stack,
            w_mid.astype(jnp.bfloat16), wo.astype(jnp.bfloat16), bo)


def reference_forward(x, params, *, act_dtype=jnp.float32, bf16_dots=True):
    """Plain-JAX replica of the PyTorch forward (cat + Linear structure)."""
    w_in, b, w_mid, wo, bo = params
    dot_dt = jnp.bfloat16 if bf16_dots else jnp.float32

    def act(v):
        v = v.astype(act_dtype)
        return jnp.where(v >= 0, v, NEG_SLOPE * v)

    def lin(h, w, bias):
        return jnp.dot(h.astype(dot_dt), w.astype(dot_dt),
                       preferred_element_type=jnp.float32) + bias

    x1, x2, x3 = x[:, 0:1], x[:, 1:2], x[:, 2:3]
    w = act(x1 * w_in[0:1] + b[0:1])
    w = lin(w, w_mid[0], b[1:2])
    w2_ = x2 * w_in[1:2] + b[2:3]
    w = jnp.concatenate([w, w2_], axis=-1)
    w = act(w)
    w = lin(w, jnp.concatenate([w_mid[1], w_mid[2]], axis=0), b[3:4])
    w3_ = x3 * w_in[2:3] + b[4:5]
    w = jnp.concatenate([w, w3_], axis=-1)
    w = act(w)
    w = lin(w, jnp.concatenate([w_mid[3], w_mid[4]], axis=0), b[5:6])
    w = act(w)
    w = lin(w, w_mid[5], b[6:7])
    w = act(w)
    w = lin(w, w_mid[6], b[7:8])
    w = act(w)
    w = lin(w, w_mid[7], b[8:9])
    w = act(w)
    w = lin(w, wo, bo)
    return w.reshape((x.shape[0],) + OUT_SHAPE)


if __name__ == "__main__":
    key = jax.random.PRNGKey(0)
    k_x, k_p = jax.random.split(key)

    # module uses x[:, 0:1], [:,1:2], [:,2:3]; B=20 exercises the 2-tile grid
    # (TB=16, B_pad=32) including padded-row slice-off.
    B, NOISE_DIM = 20, 3
    x = jax.random.uniform(k_x, (B, NOISE_DIM), jnp.float32, -2.0, 2.0)
    params = init_params(k_p, is_hyper_w=True)

    act_dtype = _default_act_dtype()
    out = hypernet_forward(x, params, act_dtype=act_dtype)
    out = jax.block_until_ready(out)
    assert out.shape == (B,) + OUT_SHAPE, out.shape

    # Exact-precision reference (same bf16 dot operands / activation dtype,
    # f32 accumulation).
    ref_same = reference_forward(x, params, act_dtype=act_dtype, bf16_dots=True)
    np.testing.assert_allclose(np.asarray(out), np.asarray(ref_same),
                               rtol=1e-3, atol=1e-4)
    # Loose check against the full-f32 module semantics (bf16 rounding only).
    ref_f32 = reference_forward(x, params, act_dtype=jnp.float32, bf16_dots=False)
    np.testing.assert_allclose(np.asarray(out), np.asarray(ref_f32),
                               rtol=1e-1, atol=1e-2)
    print("KERNEL_OK")
</pallas_src>

<mosaic_0001>
module attributes {stable_mosaic.version = 11 : i64} {
  func.func @kernel(%arg0: i32, %arg1: memref<16x3xf32, #tpu.memory_space<vmem>>, %arg2: memref<3x256xf32, #tpu.memory_space<vmem>>, %arg3: memref<9x256xf32, #tpu.memory_space<vmem>>, %arg4: memref<8x256x256xbf16, #tpu.memory_space<vmem>>, %arg5: memref<256x128xbf16, #tpu.memory_space<vmem>>, %arg6: memref<1x128xf32, #tpu.memory_space<vmem>>, %arg7: memref<16x128xf32, #tpu.memory_space<vmem>>) attributes {dimension_semantics = [#tpu.dimension_semantics<parallel>], iteration_bounds = array<i64: 2>, scalar_prefetch = 0 : i64, scratch_operands = 0 : i64, tpu.core_type = #tpu.core_type<tc>, window_params = [{transform_indices = @transform_0, window_bounds = array<i64: 16, 3>}, {pipeline_mode = #tpu.pipeline_mode<synchronous>, transform_indices = @transform_1, window_bounds = array<i64: 3, 256>}, {pipeline_mode = #tpu.pipeline_mode<synchronous>, transform_indices = @transform_2, window_bounds = array<i64: 9, 256>}, {pipeline_mode = #tpu.pipeline_mode<synchronous>, transform_indices = @transform_3, window_bounds = array<i64: 8, 256, 256>}, {pipeline_mode = #tpu.pipeline_mode<synchronous>, transform_indices = @transform_4, window_bounds = array<i64: 256, 128>}, {pipeline_mode = #tpu.pipeline_mode<synchronous>, transform_indices = @transform_5, window_bounds = array<i64: 1, 128>}, {transform_indices = @transform_6, window_bounds = array<i64: 16, 128>}]} {
    %c0 = arith.constant 0 : index
    %c0_0 = arith.constant 0 : index
    %0 = vector.load %arg1[%c0, %c0_0] : memref<16x3xf32, #tpu.memory_space<vmem>>, vector<16x3xf32>
    %1 = vector.extract_strided_slice %0 {offsets = [0, 0], sizes = [16, 1], strides = [1, 1]} : vector<16x3xf32> to vector<16x1xf32>
    %2 = vector.extract_strided_slice %0 {offsets = [0, 1], sizes = [16, 1], strides = [1, 1]} : vector<16x3xf32> to vector<16x1xf32>
    %3 = vector.extract_strided_slice %0 {offsets = [0, 2], sizes = [16, 1], strides = [1, 1]} : vector<16x3xf32> to vector<16x1xf32>
    %c0_1 = arith.constant 0 : index
    %c0_2 = arith.constant 0 : index
    %4 = vector.load %arg2[%c0_1, %c0_2] : memref<3x256xf32, #tpu.memory_space<vmem>>, vector<3x256xf32>
    %c0_3 = arith.constant 0 : index
    %c0_4 = arith.constant 0 : index
    %5 = vector.load %arg3[%c0_3, %c0_4] : memref<9x256xf32, #tpu.memory_space<vmem>>, vector<9x256xf32>
    %6 = vector.extract_strided_slice %4 {offsets = [0, 0], sizes = [1, 256], strides = [1, 1]} : vector<3x256xf32> to vector<1x256xf32>
    %7 = vector.broadcast %1 : vector<16x1xf32> to vector<16x256xf32>
    %8 = vector.broadcast %6 : vector<1x256xf32> to vector<16x256xf32>
    %9 = arith.mulf %7, %8 : vector<16x256xf32>
    %10 = vector.extract_strided_slice %5 {offsets = [0, 0], sizes = [1, 256], strides = [1, 1]} : vector<9x256xf32> to vector<1x256xf32>
    %11 = vector.broadcast %10 : vector<1x256xf32> to vector<16x256xf32>
    %12 = arith.addf %9, %11 : vector<16x256xf32>
    %cst = arith.constant 0.000000e+00 : f32
    %13 = vector.broadcast %cst : f32 to vector<16x256xf32>
    %14 = arith.cmpf oge, %12, %13 : vector<16x256xf32>
    %cst_5 = arith.constant 0.00999999977 : f32
    %15 = vector.broadcast %cst_5 : f32 to vector<16x256xf32>
    %16 = arith.mulf %15, %12 : vector<16x256xf32>
    %17 = arith.select %14, %12, %16 : vector<16x256xi1>, vector<16x256xf32>
    %18 = arith.truncf %17 : vector<16x256xf32> to vector<16x256xbf16>
    %c0_6 = arith.constant 0 : index
    %c0_7 = arith.constant 0 : index
    %c0_8 = arith.constant 0 : index
    %19 = vector.load %arg4[%c0_6, %c0_7, %c0_8] : memref<8x256x256xbf16, #tpu.memory_space<vmem>>, vector<1x256x256xbf16>
    %20 = vector.shape_cast %19 : vector<1x256x256xbf16> to vector<256x256xbf16>
    %cst_9 = arith.constant dense<0.000000e+00> : vector<16x256xf32>
    %21 = tpu.matmul %18, %20, %cst_9 {dimension_numbers = #tpu.dot_dimension_numbers<[1], [0], [0], [1], [0, 0, 1, 1], [], []>} : vector<16x256xbf16>, vector<256x256xbf16>, vector<16x256xf32> -> vector<16x256xf32>
    %22 = vector.extract_strided_slice %5 {offsets = [1, 0], sizes = [1, 256], strides = [1, 1]} : vector<9x256xf32> to vector<1x256xf32>
    %23 = vector.broadcast %22 : vector<1x256xf32> to vector<16x256xf32>
    %24 = arith.addf %21, %23 : vector<16x256xf32>
    %25 = vector.extract_strided_slice %4 {offsets = [1, 0], sizes = [1, 256], strides = [1, 1]} : vector<3x256xf32> to vector<1x256xf32>
    %26 = vector.broadcast %2 : vector<16x1xf32> to vector<16x256xf32>
    %27 = vector.broadcast %25 : vector<1x256xf32> to vector<16x256xf32>
    %28 = arith.mulf %26, %27 : vector<16x256xf32>
    %29 = vector.extract_strided_slice %5 {offsets = [2, 0], sizes = [1, 256], strides = [1, 1]} : vector<9x256xf32> to vector<1x256xf32>
    %30 = vector.broadcast %29 : vector<1x256xf32> to vector<16x256xf32>
    %31 = arith.addf %28, %30 : vector<16x256xf32>
    %cst_10 = arith.constant 0.000000e+00 : f32
    %32 = vector.broadcast %cst_10 : f32 to vector<16x256xf32>
    %33 = arith.cmpf oge, %31, %32 : vector<16x256xf32>
    %cst_11 = arith.constant 0.00999999977 : f32
    %34 = vector.broadcast %cst_11 : f32 to vector<16x256xf32>
    %35 = arith.mulf %34, %31 : vector<16x256xf32>
    %36 = arith.select %33, %31, %35 : vector<16x256xi1>, vector<16x256xf32>
    %cst_12 = arith.constant 0.000000e+00 : f32
    %37 = vector.broadcast %cst_12 : f32 to vector<16x256xf32>
    %38 = arith.cmpf oge, %24, %37 : vector<16x256xf32>
    %cst_13 = arith.constant 0.00999999977 : f32
    %39 = vector.broadcast %cst_13 : f32 to vector<16x256xf32>
    %40 = arith.mulf %39, %24 : vector<16x256xf32>
    %41 = arith.select %38, %24, %40 : vector<16x256xi1>, vector<16x256xf32>
    %42 = arith.truncf %41 : vector<16x256xf32> to vector<16x256xbf16>
    %c1 = arith.constant 1 : index
    %c0_14 = arith.constant 0 : index
    %c0_15 = arith.constant 0 : index
    %43 = vector.load %arg4[%c1, %c0_14, %c0_15] : memref<8x256x256xbf16, #tpu.memory_space<vmem>>, vector<1x256x256xbf16>
    %44 = vector.shape_cast %43 : vector<1x256x256xbf16> to vector<256x256xbf16>
    %cst_16 = arith.constant dense<0.000000e+00> : vector<16x256xf32>
    %45 = tpu.matmul %42, %44, %cst_16 {dimension_numbers = #tpu.dot_dimension_numbers<[1], [0], [0], [1], [0, 0, 1, 1], [], []>} : vector<16x256xbf16>, vector<256x256xbf16>, vector<16x256xf32> -> vector<16x256xf32>
    %46 = arith.truncf %36 : vector<16x256xf32> to vector<16x256xbf16>
    %c2 = arith.constant 2 : index
    %c0_17 = arith.constant 0 : index
    %c0_18 = arith.constant 0 : index
    %47 = vector.load %arg4[%c2, %c0_17, %c0_18] : memref<8x256x256xbf16, #tpu.memory_space<vmem>>, vector<1x256x256xbf16>
    %48 = vector.shape_cast %47 : vector<1x256x256xbf16> to vector<256x256xbf16>
    %cst_19 = arith.constant dense<0.000000e+00> : vector<16x256xf32>
    %49 = tpu.matmul %46, %48, %cst_19 {dimension_numbers = #tpu.dot_dimension_numbers<[1], [0], [0], [1], [0, 0, 1, 1], [], []>} : vector<16x256xbf16>, vector<256x256xbf16>, vector<16x256xf32> -> vector<16x256xf32>
    %50 = arith.addf %45, %49 : vector<16x256xf32>
    %51 = vector.extract_strided_slice %5 {offsets = [3, 0], sizes = [1, 256], strides = [1, 1]} : vector<9x256xf32> to vector<1x256xf32>
    %52 = vector.broadcast %51 : vector<1x256xf32> to vector<16x256xf32>
    %53 = arith.addf %50, %52 : vector<16x256xf32>
    %54 = vector.extract_strided_slice %4 {offsets = [2, 0], sizes = [1, 256], strides = [1, 1]} : vector<3x256xf32> to vector<1x256xf32>
    %55 = vector.broadcast %3 : vector<16x1xf32> to vector<16x256xf32>
    %56 = vector.broadcast %54 : vector<1x256xf32> to vector<16x256xf32>
    %57 = arith.mulf %55, %56 : vector<16x256xf32>
    %58 = vector.extract_strided_slice %5 {offsets = [4, 0], sizes = [1, 256], strides = [1, 1]} : vector<9x256xf32> to vector<1x256xf32>
    %59 = vector.broadcast %58 : vector<1x256xf32> to vector<16x256xf32>
    %60 = arith.addf %57, %59 : vector<16x256xf32>
    %cst_20 = arith.constant 0.000000e+00 : f32
    %61 = vector.broadcast %cst_20 : f32 to vector<16x256xf32>
    %62 = arith.cmpf oge, %60, %61 : vector<16x256xf32>
    %cst_21 = arith.constant 0.00999999977 : f32
    %63 = vector.broadcast %cst_21 : f32 to vector<16x256xf32>
    %64 = arith.mulf %63, %60 : vector<16x256xf32>
    %65 = arith.select %62, %60, %64 : vector<16x256xi1>, vector<16x256xf32>
    %cst_22 = arith.constant 0.000000e+00 : f32
    %66 = vector.broadcast %cst_22 : f32 to vector<16x256xf32>
    %67 = arith.cmpf oge, %53, %66 : vector<16x256xf32>
    %cst_23 = arith.constant 0.00999999977 : f32
    %68 = vector.broadcast %cst_23 : f32 to vector<16x256xf32>
    %69 = arith.mulf %68, %53 : vector<16x256xf32>
    %70 = arith.select %67, %53, %69 : vector<16x256xi1>, vector<16x256xf32>
    %71 = arith.truncf %70 : vector<16x256xf32> to vector<16x256xbf16>
    %c3 = arith.constant 3 : index
    %c0_24 = arith.constant 0 : index
    %c0_25 = arith.constant 0 : index
    %72 = vector.load %arg4[%c3, %c0_24, %c0_25] : memref<8x256x256xbf16, #tpu.memory_space<vmem>>, vector<1x256x256xbf16>
    %73 = vector.shape_cast %72 : vector<1x256x256xbf16> to vector<256x256xbf16>
    %cst_26 = arith.constant dense<0.000000e+00> : vector<16x256xf32>
    %74 = tpu.matmul %71, %73, %cst_26 {dimension_numbers = #tpu.dot_dimension_numbers<[1], [0], [0], [1], [0, 0, 1, 1], [], []>} : vector<16x256xbf16>, vector<256x256xbf16>, vector<16x256xf32> -> vector<16x256xf32>
    %75 = arith.truncf %65 : vector<16x256xf32> to vector<16x256xbf16>
    %c4 = arith.constant 4 : index
    %c0_27 = arith.constant 0 : index
    %c0_28 = arith.constant 0 : index
    %76 = vector.load %arg4[%c4, %c0_27, %c0_28] : memref<8x256x256xbf16, #tpu.memory_space<vmem>>, vector<1x256x256xbf16>
    %77 = vector.shape_cast %76 : vector<1x256x256xbf16> to vector<256x256xbf16>
    %cst_29 = arith.constant dense<0.000000e+00> : vector<16x256xf32>
    %78 = tpu.matmul %75, %77, %cst_29 {dimension_numbers = #tpu.dot_dimension_numbers<[1], [0], [0], [1], [0, 0, 1, 1], [], []>} : vector<16x256xbf16>, vector<256x256xbf16>, vector<16x256xf32> -> vector<16x256xf32>
    %79 = arith.addf %74, %78 : vector<16x256xf32>
    %80 = vector.extract_strided_slice %5 {offsets = [5, 0], sizes = [1, 256], strides = [1, 1]} : vector<9x256xf32> to vector<1x256xf32>
    %81 = vector.broadcast %80 : vector<1x256xf32> to vector<16x256xf32>
    %82 = arith.addf %79, %81 : vector<16x256xf32>
    %cst_30 = arith.constant 0.000000e+00 : f32
    %83 = vector.broadcast %cst_30 : f32 to vector<16x256xf32>
    %84 = arith.cmpf oge, %82, %83 : vector<16x256xf32>
    %cst_31 = arith.constant 0.00999999977 : f32
    %85 = vector.broadcast %cst_31 : f32 to vector<16x256xf32>
    %86 = arith.mulf %85, %82 : vector<16x256xf32>
    %87 = arith.select %84, %82, %86 : vector<16x256xi1>, vector<16x256xf32>
    %88 = arith.truncf %87 : vector<16x256xf32> to vector<16x256xbf16>
    %c5 = arith.constant 5 : index
    %c0_32 = arith.constant 0 : index
    %c0_33 = arith.constant 0 : index
    %89 = vector.load %arg4[%c5, %c0_32, %c0_33] : memref<8x256x256xbf16, #tpu.memory_space<vmem>>, vector<1x256x256xbf16>
    %90 = vector.shape_cast %89 : vector<1x256x256xbf16> to vector<256x256xbf16>
    %cst_34 = arith.constant dense<0.000000e+00> : vector<16x256xf32>
    %91 = tpu.matmul %88, %90, %cst_34 {dimension_numbers = #tpu.dot_dimension_numbers<[1], [0], [0], [1], [0, 0, 1, 1], [], []>} : vector<16x256xbf16>, vector<256x256xbf16>, vector<16x256xf32> -> vector<16x256xf32>
    %92 = vector.extract_strided_slice %5 {offsets = [6, 0], sizes = [1, 256], strides = [1, 1]} : vector<9x256xf32> to vector<1x256xf32>
    %93 = vector.broadcast %92 : vector<1x256xf32> to vector<16x256xf32>
    %94 = arith.addf %91, %93 : vector<16x256xf32>
    %cst_35 = arith.constant 0.000000e+00 : f32
    %95 = vector.broadcast %cst_35 : f32 to vector<16x256xf32>
    %96 = arith.cmpf oge, %94, %95 : vector<16x256xf32>
    %cst_36 = arith.constant 0.00999999977 : f32
    %97 = vector.broadcast %cst_36 : f32 to vector<16x256xf32>
    %98 = arith.mulf %97, %94 : vector<16x256xf32>
    %99 = arith.select %96, %94, %98 : vector<16x256xi1>, vector<16x256xf32>
    %100 = arith.truncf %99 : vector<16x256xf32> to vector<16x256xbf16>
    %c6 = arith.constant 6 : index
    %c0_37 = arith.constant 0 : index
    %c0_38 = arith.constant 0 : index
    %101 = vector.load %arg4[%c6, %c0_37, %c0_38] : memref<8x256x256xbf16, #tpu.memory_space<vmem>>, vector<1x256x256xbf16>
    %102 = vector.shape_cast %101 : vector<1x256x256xbf16> to vector<256x256xbf16>
    %cst_39 = arith.constant dense<0.000000e+00> : vector<16x256xf32>
    %103 = tpu.matmul %100, %102, %cst_39 {dimension_numbers = #tpu.dot_dimension_numbers<[1], [0], [0], [1], [0, 0, 1, 1], [], []>} : vector<16x256xbf16>, vector<256x256xbf16>, vector<16x256xf32> -> vector<16x256xf32>
    %104 = vector.extract_strided_slice %5 {offsets = [7, 0], sizes = [1, 256], strides = [1, 1]} : vector<9x256xf32> to vector<1x256xf32>
    %105 = vector.broadcast %104 : vector<1x256xf32> to vector<16x256xf32>
    %106 = arith.addf %103, %105 : vector<16x256xf32>
    %cst_40 = arith.constant 0.000000e+00 : f32
    %107 = vector.broadcast %cst_40 : f32 to vector<16x256xf32>
    %108 = arith.cmpf oge, %106, %107 : vector<16x256xf32>
    %cst_41 = arith.constant 0.00999999977 : f32
    %109 = vector.broadcast %cst_41 : f32 to vector<16x256xf32>
    %110 = arith.mulf %109, %106 : vector<16x256xf32>
    %111 = arith.select %108, %106, %110 : vector<16x256xi1>, vector<16x256xf32>
    %112 = arith.truncf %111 : vector<16x256xf32> to vector<16x256xbf16>
    %c7 = arith.constant 7 : index
    %c0_42 = arith.constant 0 : index
    %c0_43 = arith.constant 0 : index
    %113 = vector.load %arg4[%c7, %c0_42, %c0_43] : memref<8x256x256xbf16, #tpu.memory_space<vmem>>, vector<1x256x256xbf16>
    %114 = vector.shape_cast %113 : vector<1x256x256xbf16> to vector<256x256xbf16>
    %cst_44 = arith.constant dense<0.000000e+00> : vector<16x256xf32>
    %115 = tpu.matmul %112, %114, %cst_44 {dimension_numbers = #tpu.dot_dimension_numbers<[1], [0], [0], [1], [0, 0, 1, 1], [], []>} : vector<16x256xbf16>, vector<256x256xbf16>, vector<16x256xf32> -> vector<16x256xf32>
    %116 = vector.extract_strided_slice %5 {offsets = [8, 0], sizes = [1, 256], strides = [1, 1]} : vector<9x256xf32> to vector<1x256xf32>
    %117 = vector.broadcast %116 : vector<1x256xf32> to vector<16x256xf32>
    %118 = arith.addf %115, %117 : vector<16x256xf32>
    %cst_45 = arith.constant 0.000000e+00 : f32
    %119 = vector.broadcast %cst_45 : f32 to vector<16x256xf32>
    %120 = arith.cmpf oge, %118, %119 : vector<16x256xf32>
    %cst_46 = arith.constant 0.00999999977 : f32
    %121 = vector.broadcast %cst_46 : f32 to vector<16x256xf32>
    %122 = arith.mulf %121, %118 : vector<16x256xf32>
    %123 = arith.select %120, %118, %122 : vector<16x256xi1>, vector<16x256xf32>
    %124 = arith.truncf %123 : vector<16x256xf32> to vector<16x256xbf16>
    %c0_47 = arith.constant 0 : index
    %c0_48 = arith.constant 0 : index
    %125 = vector.load %arg5[%c0_47, %c0_48] : memref<256x128xbf16, #tpu.memory_space<vmem>>, vector<256x128xbf16>
    %cst_49 = arith.constant dense<0.000000e+00> : vector<16x128xf32>
    %126 = tpu.matmul %124, %125, %cst_49 {dimension_numbers = #tpu.dot_dimension_numbers<[1], [0], [0], [1], [0, 0, 1, 1], [], []>} : vector<16x256xbf16>, vector<256x128xbf16>, vector<16x128xf32> -> vector<16x128xf32>
    %c0_50 = arith.constant 0 : index
    %c0_51 = arith.constant 0 : index
    %127 = vector.load %arg6[%c0_50, %c0_51] : memref<1x128xf32, #tpu.memory_space<vmem>>, vector<1x128xf32>
    %128 = vector.broadcast %127 : vector<1x128xf32> to vector<16x128xf32>
    %129 = arith.addf %126, %128 : vector<16x128xf32>
    %c0_52 = arith.constant 0 : index
    %c0_53 = arith.constant 0 : index
    %130 = vector.load %arg7[%c0_52, %c0_53] : memref<16x128xf32, #tpu.memory_space<vmem>>, vector<16x128xf32>
    tpu.vector_store %arg7[%c0_52, %c0_53], %129 {strides = array<i32>} : memref<16x128xf32, #tpu.memory_space<vmem>>, vector<16x128xf32>,
    return
  }
  func.func @transform_0(%arg0: i32) -> (i32, i32) {
    %c0_i32 = arith.constant 0 : i32
    %c0_i32_0 = arith.constant 0 : i32
    return %arg0, %c0_i32 : i32, i32
  }
  func.func @transform_1(%arg0: i32) -> (i32, i32) {
    %c0_i32 = arith.constant 0 : i32
    %c0_i32_0 = arith.constant 0 : i32
    %c0_i32_1 = arith.constant 0 : i32
    return %c0_i32, %c0_i32_0 : i32, i32
  }
  func.func @transform_2(%arg0: i32) -> (i32, i32) {
    %c0_i32 = arith.constant 0 : i32
    %c0_i32_0 = arith.constant 0 : i32
    %c0_i32_1 = arith.constant 0 : i32
    return %c0_i32, %c0_i32_0 : i32, i32
  }
  func.func @transform_3(%arg0: i32) -> (i32, i32, i32) {
    %c0_i32 = arith.constant 0 : i32
    %c0_i32_0 = arith.constant 0 : i32
    %c0_i32_1 = arith.constant 0 : i32
    %c0_i32_2 = arith.constant 0 : i32
    return %c0_i32, %c0_i32_0, %c0_i32_1 : i32, i32, i32
  }
  func.func @transform_4(%arg0: i32) -> (i32, i32) {
    %c0_i32 = arith.constant 0 : i32
    %c0_i32_0 = arith.constant 0 : i32
    %c0_i32_1 = arith.constant 0 : i32
    return %c0_i32, %c0_i32_0 : i32, i32
  }
  func.func @transform_5(%arg0: i32) -> (i32, i32) {
    %c0_i32 = arith.constant 0 : i32
    %c0_i32_0 = arith.constant 0 : i32
    %c0_i32_1 = arith.constant 0 : i32
    return %c0_i32, %c0_i32_0 : i32, i32
  }
  func.func @transform_6(%arg0: i32) -> (i32, i32) {
    %c0_i32 = arith.constant 0 : i32
    %c0_i32_0 = arith.constant 0 : i32
    return %arg0, %c0_i32 : i32, i32
  }
}

module attributes {stable_mosaic.version = 11 : i64} {
  func.func @kernel(%arg0: i32, %arg1: memref<16x3xf32, #tpu.memory_space<vmem>>, %arg2: memref<3x256xf32, #tpu.memory_space<vmem>>, %arg3: memref<9x256xf32, #tpu.memory_space<vmem>>, %arg4: memref<8x256x256xbf16, #tpu.memory_space<vmem>>, %arg5: memref<256x128xbf16, #tpu.memory_space<vmem>>, %arg6: memref<1x128xf32, #tpu.memory_space<vmem>>, %arg7: memref<16x128xf32, #tpu.memory_space<vmem>>) attributes {dimension_semantics = [#tpu.dimension_semantics<parallel>], iteration_bounds = array<i64: 2>, scalar_prefetch = 0 : i64, scratch_operands = 0 : i64, tpu.core_type = #tpu.core_type<tc>, window_params = [{transform_indices = @transform_0, window_bounds = array<i64: 16, 3>}, {pipeline_mode = #tpu.pipeline_mode<synchronous>, transform_indices = @transform_1, window_bounds = array<i64: 3, 256>}, {pipeline_mode = #tpu.pipeline_mode<synchronous>, transform_indices = @transform_2, window_bounds = array<i64: 9, 256>}, {pipeline_mode = #tpu.pipeline_mode<synchronous>, transform_indices = @transform_3, window_bounds = array<i64: 8, 256, 256>}, {pipeline_mode = #tpu.pipeline_mode<synchronous>, transform_indices = @transform_4, window_bounds = array<i64: 256, 128>}, {pipeline_mode = #tpu.pipeline_mode<synchronous>, transform_indices = @transform_5, window_bounds = array<i64: 1, 128>}, {transform_indices = @transform_6, window_bounds = array<i64: 16, 128>}]} {
    %c0 = arith.constant 0 : index
    %c0_0 = arith.constant 0 : index
    %0 = vector.load %arg1[%c0, %c0_0] : memref<16x3xf32, #tpu.memory_space<vmem>>, vector<16x3xf32>
    %1 = vector.extract_strided_slice %0 {offsets = [0, 0], sizes = [16, 1], strides = [1, 1]} : vector<16x3xf32> to vector<16x1xf32>
    %2 = vector.extract_strided_slice %0 {offsets = [0, 1], sizes = [16, 1], strides = [1, 1]} : vector<16x3xf32> to vector<16x1xf32>
    %3 = vector.extract_strided_slice %0 {offsets = [0, 2], sizes = [16, 1], strides = [1, 1]} : vector<16x3xf32> to vector<16x1xf32>
    %c0_1 = arith.constant 0 : index
    %c0_2 = arith.constant 0 : index
    %4 = vector.load %arg2[%c0_1, %c0_2] : memref<3x256xf32, #tpu.memory_space<vmem>>, vector<3x256xf32>
    %c0_3 = arith.constant 0 : index
    %c0_4 = arith.constant 0 : index
    %5 = vector.load %arg3[%c0_3, %c0_4] : memref<9x256xf32, #tpu.memory_space<vmem>>, vector<9x256xf32>
    %6 = vector.extract_strided_slice %4 {offsets = [0, 0], sizes = [1, 256], strides = [1, 1]} : vector<3x256xf32> to vector<1x256xf32>
    %7 = vector.broadcast %1 : vector<16x1xf32> to vector<16x256xf32>
    %8 = vector.broadcast %6 : vector<1x256xf32> to vector<16x256xf32>
    %9 = arith.mulf %7, %8 : vector<16x256xf32>
    %10 = vector.extract_strided_slice %5 {offsets = [0, 0], sizes = [1, 256], strides = [1, 1]} : vector<9x256xf32> to vector<1x256xf32>
    %11 = vector.broadcast %10 : vector<1x256xf32> to vector<16x256xf32>
    %12 = arith.addf %9, %11 : vector<16x256xf32>
    %cst = arith.constant 0.000000e+00 : f32
    %13 = vector.broadcast %cst : f32 to vector<16x256xf32>
    %14 = arith.cmpf oge, %12, %13 : vector<16x256xf32>
    %cst_5 = arith.constant 0.00999999977 : f32
    %15 = vector.broadcast %cst_5 : f32 to vector<16x256xf32>
    %16 = arith.mulf %15, %12 : vector<16x256xf32>
    %17 = arith.select %14, %12, %16 : vector<16x256xi1>, vector<16x256xf32>
    %18 = arith.truncf %17 : vector<16x256xf32> to vector<16x256xbf16>
    %c0_6 = arith.constant 0 : index
    %c0_7 = arith.constant 0 : index
    %c0_8 = arith.constant 0 : index
    %19 = vector.load %arg4[%c0_6, %c0_7, %c0_8] : memref<8x256x256xbf16, #tpu.memory_space<vmem>>, vector<1x256x256xbf16>
    %20 = vector.shape_cast %19 : vector<1x256x256xbf16> to vector<256x256xbf16>
    %cst_9 = arith.constant dense<0.000000e+00> : vector<16x256xf32>
    %21 = tpu.matmul %18, %20, %cst_9 {dimension_numbers = #tpu.dot_dimension_numbers<[1], [0], [0], [1], [0, 0, 1, 1], [], []>} : vector<16x256xbf16>, vector<256x256xbf16>, vector<16x256xf32> -> vector<16x256xf32>
    %22 = vector.extract_strided_slice %5 {offsets = [1, 0], sizes = [1, 256], strides = [1, 1]} : vector<9x256xf32> to vector<1x256xf32>
    %23 = vector.broadcast %22 : vector<1x256xf32> to vector<16x256xf32>
    %24 = arith.addf %21, %23 : vector<16x256xf32>
    %25 = vector.extract_strided_slice %4 {offsets = [1, 0], sizes = [1, 256], strides = [1, 1]} : vector<3x256xf32> to vector<1x256xf32>
    %26 = vector.broadcast %2 : vector<16x1xf32> to vector<16x256xf32>
    %27 = vector.broadcast %25 : vector<1x256xf32> to vector<16x256xf32>
    %28 = arith.mulf %26, %27 : vector<16x256xf32>
    %29 = vector.extract_strided_slice %5 {offsets = [2, 0], sizes = [1, 256], strides = [1, 1]} : vector<9x256xf32> to vector<1x256xf32>
    %30 = vector.broadcast %29 : vector<1x256xf32> to vector<16x256xf32>
    %31 = arith.addf %28, %30 : vector<16x256xf32>
    %cst_10 = arith.constant 0.000000e+00 : f32
    %32 = vector.broadcast %cst_10 : f32 to vector<16x256xf32>
    %33 = arith.cmpf oge, %31, %32 : vector<16x256xf32>
    %cst_11 = arith.constant 0.00999999977 : f32
    %34 = vector.broadcast %cst_11 : f32 to vector<16x256xf32>
    %35 = arith.mulf %34, %31 : vector<16x256xf32>
    %36 = arith.select %33, %31, %35 : vector<16x256xi1>, vector<16x256xf32>
    %cst_12 = arith.constant 0.000000e+00 : f32
    %37 = vector.broadcast %cst_12 : f32 to vector<16x256xf32>
    %38 = arith.cmpf oge, %24, %37 : vector<16x256xf32>
    %cst_13 = arith.constant 0.00999999977 : f32
    %39 = vector.broadcast %cst_13 : f32 to vector<16x256xf32>
    %40 = arith.mulf %39, %24 : vector<16x256xf32>
    %41 = arith.select %38, %24, %40 : vector<16x256xi1>, vector<16x256xf32>
    %42 = arith.truncf %41 : vector<16x256xf32> to vector<16x256xbf16>
    %c1 = arith.constant 1 : index
    %c0_14 = arith.constant 0 : index
    %c0_15 = arith.constant 0 : index
    %43 = vector.load %arg4[%c1, %c0_14, %c0_15] : memref<8x256x256xbf16, #tpu.memory_space<vmem>>, vector<1x256x256xbf16>
    %44 = vector.shape_cast %43 : vector<1x256x256xbf16> to vector<256x256xbf16>
    %cst_16 = arith.constant dense<0.000000e+00> : vector<16x256xf32>
    %45 = tpu.matmul %42, %44, %cst_16 {dimension_numbers = #tpu.dot_dimension_numbers<[1], [0], [0], [1], [0, 0, 1, 1], [], []>} : vector<16x256xbf16>, vector<256x256xbf16>, vector<16x256xf32> -> vector<16x256xf32>
    %46 = arith.truncf %36 : vector<16x256xf32> to vector<16x256xbf16>
    %c2 = arith.constant 2 : index
    %c0_17 = arith.constant 0 : index
    %c0_18 = arith.constant 0 : index
    %47 = vector.load %arg4[%c2, %c0_17, %c0_18] : memref<8x256x256xbf16, #tpu.memory_space<vmem>>, vector<1x256x256xbf16>
    %48 = vector.shape_cast %47 : vector<1x256x256xbf16> to vector<256x256xbf16>
    %cst_19 = arith.constant dense<0.000000e+00> : vector<16x256xf32>
    %49 = tpu.matmul %46, %48, %cst_19 {dimension_numbers = #tpu.dot_dimension_numbers<[1], [0], [0], [1], [0, 0, 1, 1], [], []>} : vector<16x256xbf16>, vector<256x256xbf16>, vector<16x256xf32> -> vector<16x256xf32>
    %50 = arith.addf %45, %49 : vector<16x256xf32>
    %51 = vector.extract_strided_slice %5 {offsets = [3, 0], sizes = [1, 256], strides = [1, 1]} : vector<9x256xf32> to vector<1x256xf32>
    %52 = vector.broadcast %51 : vector<1x256xf32> to vector<16x256xf32>
    %53 = arith.addf %50, %52 : vector<16x256xf32>
    %54 = vector.extract_strided_slice %4 {offsets = [2, 0], sizes = [1, 256], strides = [1, 1]} : vector<3x256xf32> to vector<1x256xf32>
    %55 = vector.broadcast %3 : vector<16x1xf32> to vector<16x256xf32>
    %56 = vector.broadcast %54 : vector<1x256xf32> to vector<16x256xf32>
    %57 = arith.mulf %55, %56 : vector<16x256xf32>
    %58 = vector.extract_strided_slice %5 {offsets = [4, 0], sizes = [1, 256], strides = [1, 1]} : vector<9x256xf32> to vector<1x256xf32>
    %59 = vector.broadcast %58 : vector<1x256xf32> to vector<16x256xf32>
    %60 = arith.addf %57, %59 : vector<16x256xf32>
    %cst_20 = arith.constant 0.000000e+00 : f32
    %61 = vector.broadcast %cst_20 : f32 to vector<16x256xf32>
    %62 = arith.cmpf oge, %60, %61 : vector<16x256xf32>
    %cst_21 = arith.constant 0.00999999977 : f32
    %63 = vector.broadcast %cst_21 : f32 to vector<16x256xf32>
    %64 = arith.mulf %63, %60 : vector<16x256xf32>
    %65 = arith.select %62, %60, %64 : vector<16x256xi1>, vector<16x256xf32>
    %cst_22 = arith.constant 0.000000e+00 : f32
    %66 = vector.broadcast %cst_22 : f32 to vector<16x256xf32>
    %67 = arith.cmpf oge, %53, %66 : vector<16x256xf32>
    %cst_23 = arith.constant 0.00999999977 : f32
    %68 = vector.broadcast %cst_23 : f32 to vector<16x256xf32>
    %69 = arith.mulf %68, %53 : vector<16x256xf32>
    %70 = arith.select %67, %53, %69 : vector<16x256xi1>, vector<16x256xf32>
    %71 = arith.truncf %70 : vector<16x256xf32> to vector<16x256xbf16>
    %c3 = arith.constant 3 : index
    %c0_24 = arith.constant 0 : index
    %c0_25 = arith.constant 0 : index
    %72 = vector.load %arg4[%c3, %c0_24, %c0_25] : memref<8x256x256xbf16, #tpu.memory_space<vmem>>, vector<1x256x256xbf16>
    %73 = vector.shape_cast %72 : vector<1x256x256xbf16> to vector<256x256xbf16>
    %cst_26 = arith.constant dense<0.000000e+00> : vector<16x256xf32>
    %74 = tpu.matmul %71, %73, %cst_26 {dimension_numbers = #tpu.dot_dimension_numbers<[1], [0], [0], [1], [0, 0, 1, 1], [], []>} : vector<16x256xbf16>, vector<256x256xbf16>, vector<16x256xf32> -> vector<16x256xf32>
    %75 = arith.truncf %65 : vector<16x256xf32> to vector<16x256xbf16>
    %c4 = arith.constant 4 : index
    %c0_27 = arith.constant 0 : index
    %c0_28 = arith.constant 0 : index
    %76 = vector.load %arg4[%c4, %c0_27, %c0_28] : memref<8x256x256xbf16, #tpu.memory_space<vmem>>, vector<1x256x256xbf16>
    %77 = vector.shape_cast %76 : vector<1x256x256xbf16> to vector<256x256xbf16>
    %cst_29 = arith.constant dense<0.000000e+00> : vector<16x256xf32>
    %78 = tpu.matmul %75, %77, %cst_29 {dimension_numbers = #tpu.dot_dimension_numbers<[1], [0], [0], [1], [0, 0, 1, 1], [], []>} : vector<16x256xbf16>, vector<256x256xbf16>, vector<16x256xf32> -> vector<16x256xf32>
    %79 = arith.addf %74, %78 : vector<16x256xf32>
    %80 = vector.extract_strided_slice %5 {offsets = [5, 0], sizes = [1, 256], strides = [1, 1]} : vector<9x256xf32> to vector<1x256xf32>
    %81 = vector.broadcast %80 : vector<1x256xf32> to vector<16x256xf32>
    %82 = arith.addf %79, %81 : vector<16x256xf32>
    %cst_30 = arith.constant 0.000000e+00 : f32
    %83 = vector.broadcast %cst_30 : f32 to vector<16x256xf32>
    %84 = arith.cmpf oge, %82, %83 : vector<16x256xf32>
    %cst_31 = arith.constant 0.00999999977 : f32
    %85 = vector.broadcast %cst_31 : f32 to vector<16x256xf32>
    %86 = arith.mulf %85, %82 : vector<16x256xf32>
    %87 = arith.select %84, %82, %86 : vector<16x256xi1>, vector<16x256xf32>
    %88 = arith.truncf %87 : vector<16x256xf32> to vector<16x256xbf16>
    %c5 = arith.constant 5 : index
    %c0_32 = arith.constant 0 : index
    %c0_33 = arith.constant 0 : index
    %89 = vector.load %arg4[%c5, %c0_32, %c0_33] : memref<8x256x256xbf16, #tpu.memory_space<vmem>>, vector<1x256x256xbf16>
    %90 = vector.shape_cast %89 : vector<1x256x256xbf16> to vector<256x256xbf16>
    %cst_34 = arith.constant dense<0.000000e+00> : vector<16x256xf32>
    %91 = tpu.matmul %88, %90, %cst_34 {dimension_numbers = #tpu.dot_dimension_numbers<[1], [0], [0], [1], [0, 0, 1, 1], [], []>} : vector<16x256xbf16>, vector<256x256xbf16>, vector<16x256xf32> -> vector<16x256xf32>
    %92 = vector.extract_strided_slice %5 {offsets = [6, 0], sizes = [1, 256], strides = [1, 1]} : vector<9x256xf32> to vector<1x256xf32>
    %93 = vector.broadcast %92 : vector<1x256xf32> to vector<16x256xf32>
    %94 = arith.addf %91, %93 : vector<16x256xf32>
    %cst_35 = arith.constant 0.000000e+00 : f32
    %95 = vector.broadcast %cst_35 : f32 to vector<16x256xf32>
    %96 = arith.cmpf oge, %94, %95 : vector<16x256xf32>
    %cst_36 = arith.constant 0.00999999977 : f32
    %97 = vector.broadcast %cst_36 : f32 to vector<16x256xf32>
    %98 = arith.mulf %97, %94 : vector<16x256xf32>
    %99 = arith.select %96, %94, %98 : vector<16x256xi1>, vector<16x256xf32>
    %100 = arith.truncf %99 : vector<16x256xf32> to vector<16x256xbf16>
    %c6 = arith.constant 6 : index
    %c0_37 = arith.constant 0 : index
    %c0_38 = arith.constant 0 : index
    %101 = vector.load %arg4[%c6, %c0_37, %c0_38] : memref<8x256x256xbf16, #tpu.memory_space<vmem>>, vector<1x256x256xbf16>
    %102 = vector.shape_cast %101 : vector<1x256x256xbf16> to vector<256x256xbf16>
    %cst_39 = arith.constant dense<0.000000e+00> : vector<16x256xf32>
    %103 = tpu.matmul %100, %102, %cst_39 {dimension_numbers = #tpu.dot_dimension_numbers<[1], [0], [0], [1], [0, 0, 1, 1], [], []>} : vector<16x256xbf16>, vector<256x256xbf16>, vector<16x256xf32> -> vector<16x256xf32>
    %104 = vector.extract_strided_slice %5 {offsets = [7, 0], sizes = [1, 256], strides = [1, 1]} : vector<9x256xf32> to vector<1x256xf32>
    %105 = vector.broadcast %104 : vector<1x256xf32> to vector<16x256xf32>
    %106 = arith.addf %103, %105 : vector<16x256xf32>
    %cst_40 = arith.constant 0.000000e+00 : f32
    %107 = vector.broadcast %cst_40 : f32 to vector<16x256xf32>
    %108 = arith.cmpf oge, %106, %107 : vector<16x256xf32>
    %cst_41 = arith.constant 0.00999999977 : f32
    %109 = vector.broadcast %cst_41 : f32 to vector<16x256xf32>
    %110 = arith.mulf %109, %106 : vector<16x256xf32>
    %111 = arith.select %108, %106, %110 : vector<16x256xi1>, vector<16x256xf32>
    %112 = arith.truncf %111 : vector<16x256xf32> to vector<16x256xbf16>
    %c7 = arith.constant 7 : index
    %c0_42 = arith.constant 0 : index
    %c0_43 = arith.constant 0 : index
    %113 = vector.load %arg4[%c7, %c0_42, %c0_43] : memref<8x256x256xbf16, #tpu.memory_space<vmem>>, vector<1x256x256xbf16>
    %114 = vector.shape_cast %113 : vector<1x256x256xbf16> to vector<256x256xbf16>
    %cst_44 = arith.constant dense<0.000000e+00> : vector<16x256xf32>
    %115 = tpu.matmul %112, %114, %cst_44 {dimension_numbers = #tpu.dot_dimension_numbers<[1], [0], [0], [1], [0, 0, 1, 1], [], []>} : vector<16x256xbf16>, vector<256x256xbf16>, vector<16x256xf32> -> vector<16x256xf32>
    %116 = vector.extract_strided_slice %5 {offsets = [8, 0], sizes = [1, 256], strides = [1, 1]} : vector<9x256xf32> to vector<1x256xf32>
    %117 = vector.broadcast %116 : vector<1x256xf32> to vector<16x256xf32>
    %118 = arith.addf %115, %117 : vector<16x256xf32>
    %cst_45 = arith.constant 0.000000e+00 : f32
    %119 = vector.broadcast %cst_45 : f32 to vector<16x256xf32>
    %120 = arith.cmpf oge, %118, %119 : vector<16x256xf32>
    %cst_46 = arith.constant 0.00999999977 : f32
    %121 = vector.broadcast %cst_46 : f32 to vector<16x256xf32>
    %122 = arith.mulf %121, %118 : vector<16x256xf32>
    %123 = arith.select %120, %118, %122 : vector<16x256xi1>, vector<16x256xf32>
    %124 = arith.truncf %123 : vector<16x256xf32> to vector<16x256xbf16>
    %c0_47 = arith.constant 0 : index
    %c0_48 = arith.constant 0 : index
    %125 = vector.load %arg5[%c0_47, %c0_48] : memref<256x128xbf16, #tpu.memory_space<vmem>>, vector<256x128xbf16>
    %cst_49 = arith.constant dense<0.000000e+00> : vector<16x128xf32>
    %126 = tpu.matmul %124, %125, %cst_49 {dimension_numbers = #tpu.dot_dimension_numbers<[1], [0], [0], [1], [0, 0, 1, 1], [], []>} : vector<16x256xbf16>, vector<256x128xbf16>, vector<16x128xf32> -> vector<16x128xf32>
    %c0_50 = arith.constant 0 : index
    %c0_51 = arith.constant 0 : index
    %127 = vector.load %arg6[%c0_50, %c0_51] : memref<1x128xf32, #tpu.memory_space<vmem>>, vector<1x128xf32>
    %128 = vector.broadcast %127 : vector<1x128xf32> to vector<16x128xf32>
    %129 = arith.addf %126, %128 : vector<16x128xf32>
    %c0_52 = arith.constant 0 : index
    %c0_53 = arith.constant 0 : index
    %130 = vector.load %arg7[%c0_52, %c0_53] : memref<16x128xf32, #tpu.memory_space<vmem>>, vector<16x128xf32>
    tpu.vector_store %arg7[%c0_52, %c0_53], %129 {strides = array<i32>} : memref<16x128xf32, #tpu.memory_space<vmem>>, vector<16x128xf32>,
    return
  }
  func.func @transform_0(%arg0: i32) -> (i32, i32) {
    %c0_i32 = arith.constant 0 : i32
    %c0_i32_0 = arith.constant 0 : i32
    return %arg0, %c0_i32 : i32, i32
  }
  func.func @transform_1(%arg0: i32) -> (i32, i32) {
    %c0_i32 = arith.constant 0 : i32
    %c0_i32_0 = arith.constant 0 : i32
    %c0_i32_1 = arith.constant 0 : i32
    return %c0_i32, %c0_i32_0 : i32, i32
  }
  func.func @transform_2(%arg0: i32) -> (i32, i32) {
    %c0_i32 = arith.constant 0 : i32
    %c0_i32_0 = arith.constant 0 : i32
    %c0_i32_1 = arith.constant 0 : i32
    return %c0_i32, %c0_i32_0 : i32, i32
  }
  func.func @transform_3(%arg0: i32) -> (i32, i32, i32) {
    %c0_i32 = arith.constant 0 : i32
    %c0_i32_0 = arith.constant 0 : i32
    %c0_i32_1 = arith.constant 0 : i32
    %c0_i32_2 = arith.constant 0 : i32
    return %c0_i32, %c0_i32_0, %c0_i32_1 : i32, i32, i32
  }
  func.func @transform_4(%arg0: i32) -> (i32, i32) {
    %c0_i32 = arith.constant 0 : i32
    %c0_i32_0 = arith.constant 0 : i32
    %c0_i32_1 = arith.constant 0 : i32
    return %c0_i32, %c0_i32_0 : i32, i32
  }
  func.func @transform_5(%arg0: i32) -> (i32, i32) {
    %c0_i32 = arith.constant 0 : i32
    %c0_i32_0 = arith.constant 0 : i32
    %c0_i32_1 = arith.constant 0 : i32
    return %c0_i32, %c0_i32_0 : i32, i32
  }
  func.func @transform_6(%arg0: i32) -> (i32, i32) {
    %c0_i32 = arith.constant 0 : i32
    %c0_i32_0 = arith.constant 0 : i32
    return %arg0, %c0_i32 : i32, i32
  }
}

</mosaic_0001>

<llo_original>
// kernel: tpu_custom_call.1
$region0: #{tpu_custom_call.1}
  #allocation0 [shape = 'u32[]', space=smem, size = 0x4, offset = 0x4, fixed_abs, tag = 'smem constant byte address 0x4 - core index']
  #allocation1 [shape = 'u32[72,128]{1,0:T(1,128)}', space=vmem, size = 0x9000, scoped, tag = 'internal scratch']
  %s0 = inlined_call_operand.vmem [shape: f32[32,3], index: 0, kind: input, shape index: {}]
  %s1 = inlined_call_operand.hbm [shape: f32[3,256], index: 1, kind: input, shape index: {}]
  %s2 = inlined_call_operand.vmem [shape: f32[9,256], index: 2, kind: input, shape index: {}]
  %s3 = inlined_call_operand.hbm [shape: bf16[8,256,256], index: 3, kind: input, shape index: {}]
  %s4 = inlined_call_operand.hbm [shape: bf16[256,128], index: 4, kind: input, shape index: {}]
  %s5 = inlined_call_operand.vmem [shape: f32[1,128], index: 5, kind: input, shape index: {}]
  %s6 = inlined_call_operand.hbm [shape: f32[32,128], index: 6, kind: output, shape index: {}]
  %s7 = sld [smem:[#allocation0]]
  $region69: #{tpu_custom_call.1} parent=0
    _
  %s9 = ssub.s32 1, %s7
  %s10 = scalar_select 0, %s9, %s7
  $region1: #{tpu_custom_call.1} parent=0
    #allocation2 [shape = 'u8[4096]{0}', space=vmem, size = 0x1000, scoped, tag = 'input window, operand 1, single buffered']
    #allocation3 [shape = 's32[2]{0}', space=sflag, size = 0x8, scoped, tag = 'scoped memory for tpu_custom_call.1']
    #allocation4 [shape = 's32[2]{0}', space=sflag, size = 0x8, scoped, tag = 'scoped memory for tpu_custom_call.1']
    #allocation5 [shape = 'u8[1048576]{0}', space=vmem, size = 0x100000, scoped, tag = 'input window, operand 3, single buffered']
    #allocation6 [shape = 's32[1]{0}', space=sflag, size = 0x4, scoped, tag = 'scoped memory for tpu_custom_call.1']
    #allocation7 [shape = 'u8[65536]{0}', space=vmem, size = 0x10000, scoped, tag = 'input window, operand 4, single buffered']
    #allocation8 [shape = 'u8[16384]{0}', space=vmem, size = 0x4000, scoped, tag = 'output window, operand 0']
    %11 = vsyncpa [#allocation3], 0
    %12 = vsyncpa [#allocation6], 0
    %13 = vsyncpa [#allocation4], 0
    %s14 = scalar_lea.sflag [#allocation4], 1
    %15 = vsyncpa %s14, 0
    loop: start=0, step=1, limit=4
    $region2: #{tpu_custom_call.1} parent=1 // loop_pre_header
      _
    $region3: #{tpu_custom_call.1} parent=1 // loop_header
      %s17 = sphi 0, %s21
      %p18 = scmp.ge.s32.totalorder %s17, 4
      %s27 = sphi 0, %s29
      %s30 = sphi 0, %s27
      %s31 = sphi 0, %s30
      %s47 = sphi 0, %s31
      %s51 = sphi 0, %s51
      %s53 = sphi 0, %s51
      %s54 = sphi 0, %s53
      %s68 = sphi 0, %s54
      %s72 = sphi 0, %s72
      %s74 = sphi 0, %s72
      %s75 = sphi 0, %s74
      %s89 = sphi 0, %s75
      %s93 = sphi 0, %s93
      %s95 = sphi 0, %s93
      %s96 = sphi 0, %s95
      %s110 = sphi 0, %s96
      %s114 = sphi 0, %s114
      %s116 = sphi 0, %s114
      %s117 = sphi 0, %s116
      %s131 = sphi 0, %s117
      %s135 = sphi 0, %s135
      %s137 = sphi 0, %s135
      %s138 = sphi 0, %s137
      %s152 = sphi 0, %s138
      %s158 = sphi 0, %s160
      %s161 = sphi 0, %s158
      %s162 = sphi 0, %s161
      %s178 = sphi 0, %s162
    $region4: #{tpu_custom_call.1} parent=1 // loop_header_branch
      %20 = sbr.rel (%p18) target = $region8
    $region5: #{tpu_custom_call.1} parent=1 // loop_body
      %s22 = ssub.s32 %s17, 1
      %s23 = ssub.s32 %s17, 2
      %s24 = sadd.s32 %s17, 1
      %s25 = ssub.s32 %s17, %s24
      %p26 = scmp.eq.s32.totalorder %s25, 0
      %s28 = sadd.s32 %s27, 1
      %s29 = scalar_select %p26, %s27, %s28
      %p32 = pneg %p26
      %p33 = scmp.eq.s32.totalorder %s17, 1
      %p34 = por %p32, %p33
      %p35 = scmp.ne.s32.totalorder %s27, %s30
      %p36 = scmp.eq.s32.totalorder %s17, 0
      %p37 = por %p35, %p36
      %p38 = scmp.ne.s32.totalorder %s27, %s30
      %p39 = scmp.eq.s32.totalorder %s22, 1
      %p40 = por %p38, %p39
      %p41 = scmp.ne.s32.totalorder %s30, %s31
      %p42 = scmp.eq.s32.totalorder %s22, 0
      %p43 = por %p41, %p42
      %p44 = scmp.ne.s32.totalorder %s30, %s31
      %p45 = scmp.eq.s32.totalorder %s23, 1
      %p46 = por %p44, %p45
      %p48 = scmp.ne.s32.totalorder %s31, %s47
      %p49 = scmp.eq.s32.totalorder %s23, 0
      %p50 = por %p48, %p49
      %s52 = sadd.s32 %s51, 1
      %p55 = scmp.eq.s32.totalorder %s17, 1
      %p56 = scmp.ne.s32.totalorder %s51, %s53
      %p57 = scmp.eq.s32.totalorder %s17, 0
      %p58 = por %p56, %p57
      %p59 = scmp.ne.s32.totalorder %s51, %s53
      %p60 = scmp.eq.s32.totalorder %s22, 1
      %p61 = por %p59, %p60
      %p62 = scmp.ne.s32.totalorder %s53, %s54
      %p63 = scmp.eq.s32.totalorder %s22, 0
      %p64 = por %p62, %p63
      %p65 = scmp.ne.s32.totalorder %s53, %s54
      %p66 = scmp.eq.s32.totalorder %s23, 1
      %p67 = por %p65, %p66
      %p69 = scmp.ne.s32.totalorder %s54, %s68
      %p70 = scmp.eq.s32.totalorder %s23, 0
      %p71 = por %p69, %p70
      %s73 = sadd.s32 %s72, 1
      %p76 = scmp.eq.s32.totalorder %s17, 1
      %p77 = scmp.ne.s32.totalorder %s72, %s74
      %p78 = scmp.eq.s32.totalorder %s17, 0
      %p79 = por %p77, %p78
      %p80 = scmp.ne.s32.totalorder %s72, %s74
      %p81 = scmp.eq.s32.totalorder %s22, 1
      %p82 = por %p80, %p81
      %p83 = scmp.ne.s32.totalorder %s74, %s75
      %p84 = scmp.eq.s32.totalorder %s22, 0
      %p85 = por %p83, %p84
      %p86 = scmp.ne.s32.totalorder %s74, %s75
      %p87 = scmp.eq.s32.totalorder %s23, 1
      %p88 = por %p86, %p87
      %p90 = scmp.ne.s32.totalorder %s75, %s89
      %p91 = scmp.eq.s32.totalorder %s23, 0
      %p92 = por %p90, %p91
      %s94 = sadd.s32 %s93, 1
      %p97 = scmp.eq.s32.totalorder %s17, 1
      %p98 = scmp.ne.s32.totalorder %s93, %s95
      %p99 = scmp.eq.s32.totalorder %s17, 0
      %p100 = por %p98, %p99
      %p101 = scmp.ne.s32.totalorder %s93, %s95
      %p102 = scmp.eq.s32.totalorder %s22, 1
      %p103 = por %p101, %p102
      %p104 = scmp.ne.s32.totalorder %s95, %s96
      %p105 = scmp.eq.s32.totalorder %s22, 0
      %p106 = por %p104, %p105
      %p107 = scmp.ne.s32.totalorder %s95, %s96
      %p108 = scmp.eq.s32.totalorder %s23, 1
      %p109 = por %p107, %p108
      %p111 = scmp.ne.s32.totalorder %s96, %s110
      %p112 = scmp.eq.s32.totalorder %s23, 0
      %p113 = por %p111, %p112
      %s115 = sadd.s32 %s114, 1
      %p118 = scmp.eq.s32.totalorder %s17, 1
      %p119 = scmp.ne.s32.totalorder %s114, %s116
      %p120 = scmp.eq.s32.totalorder %s17, 0
      %p121 = por %p119, %p120
      %p122 = scmp.ne.s32.totalorder %s114, %s116
      %p123 = scmp.eq.s32.totalorder %s22, 1
      %p124 = por %p122, %p123
      %p125 = scmp.ne.s32.totalorder %s116, %s117
      %p126 = scmp.eq.s32.totalorder %s22, 0
      %p127 = por %p125, %p126
      %p128 = scmp.ne.s32.totalorder %s116, %s117
      %p129 = scmp.eq.s32.totalorder %s23, 1
      %p130 = por %p128, %p129
      %p132 = scmp.ne.s32.totalorder %s117, %s131
      %p133 = scmp.eq.s32.totalorder %s23, 0
      %p134 = por %p132, %p133
      %s136 = sadd.s32 %s135, 1
      %p139 = scmp.eq.s32.totalorder %s17, 1
      %p140 = scmp.ne.s32.totalorder %s135, %s137
      %p141 = scmp.eq.s32.totalorder %s17, 0
      %p142 = por %p140, %p141
      %p143 = scmp.ne.s32.totalorder %s135, %s137
      %p144 = scmp.eq.s32.totalorder %s22, 1
      %p145 = por %p143, %p144
      %p146 = scmp.ne.s32.totalorder %s137, %s138
      %p147 = scmp.eq.s32.totalorder %s22, 0
      %p148 = por %p146, %p147
      %p149 = scmp.ne.s32.totalorder %s137, %s138
      %p150 = scmp.eq.s32.totalorder %s23, 1
      %p151 = por %p149, %p150
      %p153 = scmp.ne.s32.totalorder %s138, %s152
      %p154 = scmp.eq.s32.totalorder %s23, 0
      %p155 = por %p153, %p154
      %s156 = ssub.s32 %s17, %s24
      %p157 = scmp.eq.s32.totalorder %s156, 0
      %s159 = sadd.s32 %s158, 1
      %s160 = scalar_select %p157, %s158, %s159
      %p163 = pneg %p157
      %p164 = scmp.eq.s32.totalorder %s17, 1
      %p165 = por %p163, %p164
      %p166 = scmp.ne.s32.totalorder %s158, %s161
      %p167 = scmp.eq.s32.totalorder %s17, 0
      %p168 = por %p166, %p167
      %p169 = scmp.ne.s32.totalorder %s158, %s161
      %p170 = scmp.eq.s32.totalorder %s22, 1
      %p171 = por %p169, %p170
      %p172 = scmp.ne.s32.totalorder %s161, %s162
      %p173 = scmp.eq.s32.totalorder %s22, 0
      %p174 = por %p172, %p173
      %p175 = scmp.ne.s32.totalorder %s161, %s162
      %p176 = scmp.eq.s32.totalorder %s23, 1
      %p177 = por %p175, %p176
      %p179 = scmp.ne.s32.totalorder %s162, %s178
      %p180 = scmp.eq.s32.totalorder %s23, 0
      %p181 = por %p179, %p180
      %p182 = scmp.le.s32.totalorder 1, %s17
      %p183 = scmp.lt.s32.totalorder %s17, 3
      %p184 = pnand %p182, %p183
      %p185 = pneg %p184
      // Predicated region
      $region9: #{tpu_custom_call.1} parent=5 // pred_check
        _
      $region10: #{tpu_custom_call.1} parent=5 // pred_check_branch
        %187 = sbr.rel (%p184) target = $region12
      $region11: #{tpu_custom_call.1} parent=5 // pred_region
        %s188 = ssub.s32 %s17, 1
        // Predicated region
        $region13: #{tpu_custom_call.1} parent=11 // pred_check
          %p189 = pneg %p64
        $region14: #{tpu_custom_call.1} parent=11 // pred_check_branch
          %191 = sbr.rel (%p189) target = $region16
        $region15: #{tpu_custom_call.1} parent=11 // pred_region
          %193 = vsyncadd [#allocation3], 0
          %s195 = sshll.u32 %s1, 4
          %s196 = int_to_ptr.hbm [resolvable:$true] %s195
          %s197 = sshll.u32 [#allocation2], 4
          %s198 = int_to_ptr.vmem [resolvable:$true] %s197
          %200 = dma.hbm_to_vmem [thread:$0]  %s196, 128, %s198, [#allocation3]
        $region16: #{tpu_custom_call.1} parent=11 // pred_fallthru
          _
        // Predicated region
        $region17: #{tpu_custom_call.1} parent=11 // pred_check
          %p201 = pneg %p85
        $region18: #{tpu_custom_call.1} parent=11 // pred_check_branch
          %203 = sbr.rel (%p201) target = $region20
        $region19: #{tpu_custom_call.1} parent=11 // pred_region
          _
        $region20: #{tpu_custom_call.1} parent=11 // pred_fallthru
          _
        // Predicated region
        $region21: #{tpu_custom_call.1} parent=11 // pred_check
          %p204 = pneg %p106
        $region22: #{tpu_custom_call.1} parent=11 // pred_check_branch
          %206 = sbr.rel (%p204) target = $region24
        $region23: #{tpu_custom_call.1} parent=11 // pred_region
          %208 = vsyncadd [#allocation6], 0
          %s209 = sshll.u32 %s3, 4
          %s210 = int_to_ptr.hbm [resolvable:$true] %s209
          %s211 = sshll.u32 [#allocation5], 4
          %s212 = int_to_ptr.vmem [resolvable:$true] %s211
          %217 = dma.hbm_to_vmem [thread:$0]  %s210, 32768, %s212, [#allocation6], 128, 128, 8
        $region24: #{tpu_custom_call.1} parent=11 // pred_fallthru
          _
        // Predicated region
        $region25: #{tpu_custom_call.1} parent=11 // pred_check
          %p218 = pneg %p127
        $region26: #{tpu_custom_call.1} parent=11 // pred_check_branch
          %220 = sbr.rel (%p218) target = $region28
        $region27: #{tpu_custom_call.1} parent=11 // pred_region
          %222 = vsyncadd [#allocation6], 0
          %s223 = sshll.u32 %s4, 4
          %s224 = int_to_ptr.hbm [resolvable:$true] %s223
          %s225 = sshll.u32 [#allocation7], 4
          %s226 = int_to_ptr.vmem [resolvable:$true] %s225
          %231 = dma.hbm_to_vmem [thread:$0]  %s224, 2048, %s226, [#allocation6], 64, 64, 4
        $region28: #{tpu_custom_call.1} parent=11 // pred_fallthru
          _
        // Predicated region
        $region29: #{tpu_custom_call.1} parent=11 // pred_check
          %p232 = pneg %p148
        $region30: #{tpu_custom_call.1} parent=11 // pred_check_branch
          %234 = sbr.rel (%p232) target = $region32
        $region31: #{tpu_custom_call.1} parent=11 // pred_region
          _
        $region32: #{tpu_custom_call.1} parent=11 // pred_fallthru
          _
      $region12: #{tpu_custom_call.1} parent=5 // pred_fallthru
        _
      %p235 = scmp.lt.s32.totalorder %s17, 2
      // Predicated region
      $region33: #{tpu_custom_call.1} parent=5 // pred_check
        %p236 = pneg %p235
      $region34: #{tpu_custom_call.1} parent=5 // pred_check_branch
        %238 = sbr.rel (%p236) target = $region36
      $region35: #{tpu_custom_call.1} parent=5 // pred_region
        // Predicated region
        $region37: #{tpu_custom_call.1} parent=35 // pred_check
          %p239 = pneg %p37
        $region38: #{tpu_custom_call.1} parent=35 // pred_check_branch
          %241 = sbr.rel (%p239) target = $region40
        $region39: #{tpu_custom_call.1} parent=35 // pred_region
          %s242 = smul.u32 2, %s17
          %p243 = scmp.lt.s32.totalorder %s242, 3
          %s244 = scalar_select %p243, %s242, 3
          %s245 = smul.addr %s244, 8
          %s246 = scalar_lea.vmem %s0, %s245
          %s247 = smul.u32 2, %s17
        $region40: #{tpu_custom_call.1} parent=35 // pred_fallthru
          _
      $region36: #{tpu_custom_call.1} parent=5 // pred_fallthru
        _
      %p248 = scmp.le.s32.totalorder 1, %s17
      %p249 = scmp.lt.s32.totalorder %s17, 3
      %p250 = pnand %p248, %p249
      %p251 = pneg %p250
      // Predicated region
      $region41: #{tpu_custom_call.1} parent=5 // pred_check
        _
      $region42: #{tpu_custom_call.1} parent=5 // pred_check_branch
        %253 = sbr.rel (%p250) target = $region44
      $region43: #{tpu_custom_call.1} parent=5 // pred_region
        %s254 = ssub.s32 %s17, 1
        // Predicated region
        $region45: #{tpu_custom_call.1} parent=43 // pred_check
          %p255 = pneg %p64
        $region46: #{tpu_custom_call.1} parent=43 // pred_check_branch
          %257 = sbr.rel (%p255) target = $region48
        $region47: #{tpu_custom_call.1} parent=43 // pred_region
          %259 = dma.done [#allocation3], 128
        $region48: #{tpu_custom_call.1} parent=43 // pred_fallthru
          _
        // Predicated region
        $region49: #{tpu_custom_call.1} parent=43 // pred_check
          %p260 = pneg %p106
        $region50: #{tpu_custom_call.1} parent=43 // pred_check_branch
          %262 = sbr.rel (%p260) target = $region52
        $region51: #{tpu_custom_call.1} parent=43 // pred_region
          %264 = dma.done [#allocation6], 32768
        $region52: #{tpu_custom_call.1} parent=43 // pred_fallthru
          _
        // Predicated region
        $region53: #{tpu_custom_call.1} parent=43 // pred_check
          %p265 = pneg %p127
        $region54: #{tpu_custom_call.1} parent=43 // pred_check_branch
          %267 = sbr.rel (%p265) target = $region56
        $region55: #{tpu_custom_call.1} parent=43 // pred_region
          %269 = dma.done [#allocation6], 2048
        $region56: #{tpu_custom_call.1} parent=43 // pred_fallthru
          _
        %s270 = smul.u32 2, %s22
        %p271 = scmp.lt.s32.totalorder %s270, 3
        %s272 = scalar_select %p271, %s270, 3
        %s273 = smul.addr %s272, 8
        %s274 = scalar_lea.vmem %s0, %s273
        %p275 = pneg %p43
        %p276 = pneg %p40
        %p277 = pneg %p64
        %p278 = pneg %p61
        %p279 = pneg %p85
        %p280 = pneg %p82
        %p281 = pneg %p106
        %p282 = pneg %p103
        %p283 = pneg %p127
        %p284 = pneg %p124
        %p285 = pneg %p148
        %p286 = pneg %p145
        %p287 = pneg %p174
        %p288 = pneg %p171
        %s289 = sand.u32 %s161, 1
        %s290 = scalar_lea.sflag [#allocation4], %s289
        %s291 = sand.u32 %s161, 1
        %s292 = smul.addr %s291, 16
        %s293 = scalar_lea.vmem [#allocation8], %s292
        %s294 = smul.u32 2, %s22
        %p295 = scmp.lt.s32.totalorder %s294, 3
        %s296 = scalar_select %p295, %s294, 3
        %s297 = smul.addr %s296, 8
        %s298 = scalar_lea.vmem %s0, %s297
        %s299 = smul.u32 2, %s22
        %s300 = smul.u32 2, %s22
        %v301 = vld [vmem:[%s298] sm:$0xff]
        %v302 = vld [vmem:[%s298 + $0x8] sm:$0xff]
        %v303 = vld [vmem:[#allocation2] sm:$0x77]
        %v304 = vld [vmem:[%s2] sm:$0xff]
        %v305 = vld [vmem:[%s2 + $0x8] sm:$0xff]
        %v306 = vld [vmem:[%s2 + $0x10] sm:$0x1]
        %v307 = vld [vmem:[%s2 + $0x18] sm:$0x1]
        %309 = vset.pattern.permute.xlu0 0
        %310 = vperm.xlu0 %309, %v301
        %v311 = vpop.permute.xlu0 %310
        %314 = vset.pattern.permute.xlu0 0
        %315 = vperm.xlu0 %314, %v302
        %v316 = vpop.permute.xlu0 %315
        %v319 = vperm.slane %v303, 0
        %v320 = vperm.slane %v303, 4
        %v323 = vperm.slane %v319, 0
        %v324 = vperm.slane %v320, 0
        %v325 = vmul.f32 %v311, %v323
        %v326 = vmul.f32 %v311, %v324
        %v327 = vmul.f32 %v316, %v323
        %v328 = vmul.f32 %v316, %v324
        %v329 = vperm.slane %v304, 0
        %v330 = vperm.slane %v305, 0
        %v331 = vadd.f32 %v325, %v329
        %v332 = vadd.f32 %v326, %v330
        %v333 = vadd.f32 %v327, %v329
        %v334 = vadd.f32 %v328, %v330
        %vm335 = vcmp.ge.f32.partialorder %v331, 0.0
        %vm336 = vcmp.ge.f32.partialorder %v332, 0.0
        %vm337 = vcmp.ge.f32.partialorder %v333, 0.0
        %vm338 = vcmp.ge.f32.partialorder %v334, 0.0
        %v339 = vmul.f32 %v331, 0.01
        %v340 = vmul.f32 %v332, 0.01
        %v341 = vmul.f32 %v333, 0.01
        %v342 = vmul.f32 %v334, 0.01
        %v343 = vsel %vm335, %v331, %v339
        %v344 = vsel %vm336, %v332, %v340
        %v345 = vsel %vm337, %v333, %v341
        %v346 = vsel %vm338, %v334, %v342
        %v347 = vpack.c.bf16 %v345, %v343
        %v348 = vpack.c.bf16 %v346, %v344
        %v349 = vld [vmem:[#allocation5] sm:$0xff]
        %v350 = vld [vmem:[#allocation5 + $0x8] sm:$0xff]
        %v351 = vld [vmem:[#allocation5 + $0x10] sm:$0xff]
        %v352 = vld [vmem:[#allocation5 + $0x18] sm:$0xff]
        %v353 = vld [vmem:[#allocation5 + $0x20] sm:$0xff]
        %v354 = vld [vmem:[#allocation5 + $0x28] sm:$0xff]
        %v355 = vld [vmem:[#allocation5 + $0x30] sm:$0xff]
        %v356 = vld [vmem:[#allocation5 + $0x38] sm:$0xff]
        %v357 = vld [vmem:[#allocation5 + $0x40] sm:$0xff]
        %v358 = vld [vmem:[#allocation5 + $0x48] sm:$0xff]
        %v359 = vld [vmem:[#allocation5 + $0x50] sm:$0xff]
        %v360 = vld [vmem:[#allocation5 + $0x58] sm:$0xff]
        %v361 = vld [vmem:[#allocation5 + $0x60] sm:$0xff]
        %v362 = vld [vmem:[#allocation5 + $0x68] sm:$0xff]
        %v363 = vld [vmem:[#allocation5 + $0x70] sm:$0xff]
        %v364 = vld [vmem:[#allocation5 + $0x78] sm:$0xff]
        %v365 = vld [vmem:[#allocation5 + $0x80] sm:$0xff]
        %v366 = vld [vmem:[#allocation5 + $0x88] sm:$0xff]
        %v367 = vld [vmem:[#allocation5 + $0x90] sm:$0xff]
        %v368 = vld [vmem:[#allocation5 + $0x98] sm:$0xff]
        %v369 = vld [vmem:[#allocation5 + $0xa0] sm:$0xff]
        %v370 = vld [vmem:[#allocation5 + $0xa8] sm:$0xff]
        %v371 = vld [vmem:[#allocation5 + $0xb0] sm:$0xff]
        %v372 = vld [vmem:[#allocation5 + $0xb8] sm:$0xff]
        %v373 = vld [vmem:[#allocation5 + $0xc0] sm:$0xff]
        %v374 = vld [vmem:[#allocation5 + $0xc8] sm:$0xff]
        %v375 = vld [vmem:[#allocation5 + $0xd0] sm:$0xff]
        %v376 = vld [vmem:[#allocation5 + $0xd8] sm:$0xff]
        %v377 = vld [vmem:[#allocation5 + $0xe0] sm:$0xff]
        %v378 = vld [vmem:[#allocation5 + $0xe8] sm:$0xff]
        %v379 = vld [vmem:[#allocation5 + $0xf0] sm:$0xff]
        %v380 = vld [vmem:[#allocation5 + $0xf8] sm:$0xff]
        %v381 = vperm.slane %v304, 1
        %v382 = vperm.slane %v305, 1
        %v415 = vunpack.c.l.b16 %v349
        %v416 = vunpack.c.h.b16 %v349
        %v417 = vunpack.c.l.b16 %v350
        %v418 = vunpack.c.h.b16 %v350
        %v419 = vunpack.c.l.b16 %v351
        %v420 = vunpack.c.h.b16 %v351
        %v421 = vunpack.c.l.b16 %v352
        %v422 = vunpack.c.h.b16 %v352
        %v423 = vunpack.c.l.b16 %v353
        %v424 = vunpack.c.h.b16 %v353
        %v425 = vunpack.c.l.b16 %v354
        %v426 = vunpack.c.h.b16 %v354
        %v427 = vunpack.c.l.b16 %v355
        %v428 = vunpack.c.h.b16 %v355
        %v429 = vunpack.c.l.b16 %v356
        %v430 = vunpack.c.h.b16 %v356
        %v431 = vunpack.c.l.b16 %v357
        %v432 = vunpack.c.h.b16 %v357
        %v433 = vunpack.c.l.b16 %v358
        %v434 = vunpack.c.h.b16 %v358
        %v435 = vunpack.c.l.b16 %v359
        %v436 = vunpack.c.h.b16 %v359
        %v437 = vunpack.c.l.b16 %v360
        %v438 = vunpack.c.h.b16 %v360
        %v439 = vunpack.c.l.b16 %v361
        %v440 = vunpack.c.h.b16 %v361
        %v441 = vunpack.c.l.b16 %v362
        %v442 = vunpack.c.h.b16 %v362
        %v443 = vunpack.c.l.b16 %v363
        %v444 = vunpack.c.h.b16 %v363
        %v445 = vunpack.c.l.b16 %v364
        %v446 = vunpack.c.h.b16 %v364
        %v447 = vunpack.c.l.b16 %v365
        %v448 = vunpack.c.h.b16 %v365
        %v449 = vunpack.c.l.b16 %v366
        %v450 = vunpack.c.h.b16 %v366
        %v451 = vunpack.c.l.b16 %v367
        %v452 = vunpack.c.h.b16 %v367
        %v453 = vunpack.c.l.b16 %v368
        %v454 = vunpack.c.h.b16 %v368
        %v455 = vunpack.c.l.b16 %v369
        %v456 = vunpack.c.h.b16 %v369
        %v457 = vunpack.c.l.b16 %v370
        %v458 = vunpack.c.h.b16 %v370
        %v459 = vunpack.c.l.b16 %v371
        %v460 = vunpack.c.h.b16 %v371
        %v461 = vunpack.c.l.b16 %v372
        %v462 = vunpack.c.h.b16 %v372
        %v463 = vunpack.c.l.b16 %v373
        %v464 = vunpack.c.h.b16 %v373
        %v465 = vunpack.c.l.b16 %v374
        %v466 = vunpack.c.h.b16 %v374
        %v467 = vunpack.c.l.b16 %v375
        %v468 = vunpack.c.h.b16 %v375
        %v469 = vunpack.c.l.b16 %v376
        %v470 = vunpack.c.h.b16 %v376
        %v471 = vunpack.c.l.b16 %v377
        %v472 = vunpack.c.h.b16 %v377
        %v473 = vunpack.c.l.b16 %v378
        %v474 = vunpack.c.h.b16 %v378
        %v475 = vunpack.c.l.b16 %v379
        %v476 = vunpack.c.h.b16 %v379
        %v477 = vunpack.c.l.b16 %v380
        %v478 = vunpack.c.h.b16 %v380
        %v479 = vpack.c.b16 %v417, %v415
        %v480 = vpack.c.b16 %v418, %v416
        %v481 = vpack.c.b16 %v421, %v419
        %v482 = vpack.c.b16 %v422, %v420
        %v483 = vpack.c.b16 %v425, %v423
        %v484 = vpack.c.b16 %v426, %v424
        %v485 = vpack.c.b16 %v429, %v427
        %v486 = vpack.c.b16 %v430, %v428
        %v487 = vpack.c.b16 %v433, %v431
        %v488 = vpack.c.b16 %v434, %v432
        %v489 = vpack.c.b16 %v437, %v435
        %v490 = vpack.c.b16 %v438, %v436
        %v491 = vpack.c.b16 %v441, %v439
        %v492 = vpack.c.b16 %v442, %v440
        %v493 = vpack.c.b16 %v445, %v443
        %v494 = vpack.c.b16 %v446, %v444
        %v495 = vpack.c.b16 %v449, %v447
        %v496 = vpack.c.b16 %v450, %v448
        %v497 = vpack.c.b16 %v453, %v451
        %v498 = vpack.c.b16 %v454, %v452
        %v499 = vpack.c.b16 %v457, %v455
        %v500 = vpack.c.b16 %v458, %v456
        %v501 = vpack.c.b16 %v461, %v459
        %v502 = vpack.c.b16 %v462, %v460
        %v503 = vpack.c.b16 %v465, %v463
        %v504 = vpack.c.b16 %v466, %v464
        %v505 = vpack.c.b16 %v469, %v467
        %v506 = vpack.c.b16 %v470, %v468
        %v507 = vpack.c.b16 %v473, %v471
        %v508 = vpack.c.b16 %v474, %v472
        %v509 = vpack.c.b16 %v477, %v475
        %v510 = vpack.c.b16 %v478, %v476
        %543 = vmatpush.bf16.msra.mxu0 %v493
        %544 = vmatpush.bf16.msra.mxu0 %v491
        %545 = vmatpush.bf16.msra.mxu0 %v489
        %546 = vmatpush.bf16.msra.mxu0 %v487
        %547 = vmatpush.bf16.msra.mxu0 %v485
        %548 = vmatpush.bf16.msra.mxu0 %v483
        %549 = vmatpush.bf16.msra.mxu0 %v481
        %550 = vmatpush.bf16.msra.mxu0 %v479
        %551 = vmatmul.bf16.gmra.mxu0 %v347
        %v552 = vpop.f32.mrf.mxu0
        %v553 = vadd.f32 %v381, %v552
        %v554 = vpop.f32.mrf.mxu0
        %v555 = vadd.f32 %v381, %v554
        %556 = vdwg.mxu0
        %557 = vmatpush.bf16.msra.mxu0 %v509
        %558 = vmatpush.bf16.msra.mxu0 %v507
        %559 = vmatpush.bf16.msra.mxu0 %v505
        %560 = vmatpush.bf16.msra.mxu0 %v503
        %561 = vmatpush.bf16.msra.mxu0 %v501
        %562 = vmatpush.bf16.msra.mxu0 %v499
        %563 = vmatpush.bf16.msra.mxu0 %v497
        %564 = vmatpush.bf16.msra.mxu0 %v495
        %565 = vmatmul.bf16.gmra.mxu0 %v348
        %v566 = vpop.f32.mrf.mxu0
        %v567 = vadd.f32 %v553, %v566
        %v568 = vpop.f32.mrf.mxu0
        %v569 = vadd.f32 %v555, %v568
        %570 = vdwg.mxu0
        %571 = vmatpush.bf16.msra.mxu0 %v494
        %572 = vmatpush.bf16.msra.mxu0 %v492
        %573 = vmatpush.bf16.msra.mxu0 %v490
        %574 = vmatpush.bf16.msra.mxu0 %v488
        %575 = vmatpush.bf16.msra.mxu0 %v486
        %576 = vmatpush.bf16.msra.mxu0 %v484
        %577 = vmatpush.bf16.msra.mxu0 %v482
        %578 = vmatpush.bf16.msra.mxu0 %v480
        %579 = vmatmul.bf16.gmra.mxu0 %v347
        %v580 = vpop.f32.mrf.mxu0
        %v581 = vadd.f32 %v382, %v580
        %v582 = vpop.f32.mrf.mxu0
        %v583 = vadd.f32 %v382, %v582
        %584 = vdwg.mxu0
        %585 = vmatpush.bf16.msra.mxu0 %v510
        %586 = vmatpush.bf16.msra.mxu0 %v508
        %587 = vmatpush.bf16.msra.mxu0 %v506
        %588 = vmatpush.bf16.msra.mxu0 %v504
        %589 = vmatpush.bf16.msra.mxu0 %v502
        %590 = vmatpush.bf16.msra.mxu0 %v500
        %591 = vmatpush.bf16.msra.mxu0 %v498
        %592 = vmatpush.bf16.msra.mxu0 %v496
        %593 = vmatmul.bf16.gmra.mxu0 %v348
        %v594 = vpop.f32.mrf.mxu0
        %v595 = vadd.f32 %v581, %v594
        %v596 = vpop.f32.mrf.mxu0
        %v597 = vadd.f32 %v583, %v596
        %598 = vdwg.mxu0
        %599 = vset.pattern.permute.xlu0 1
        %600 = vperm.xlu0 %599, %v301
        %v601 = vpop.permute.xlu0 %600
        %603 = vset.pattern.permute.xlu0 1
        %604 = vperm.xlu0 %603, %v302
        %v605 = vpop.permute.xlu0 %604
        %v607 = vperm.slane %v303, 1
        %v608 = vperm.slane %v303, 5
        %v611 = vperm.slane %v607, 1
        %v612 = vperm.slane %v608, 1
        %v613 = vmul.f32 %v601, %v611
        %v614 = vmul.f32 %v601, %v612
        %v615 = vmul.f32 %v605, %v611
        %v616 = vmul.f32 %v605, %v612
        %v617 = vperm.slane %v304, 2
        %v618 = vperm.slane %v305, 2
        %v619 = vadd.f32 %v613, %v617
        %v620 = vadd.f32 %v614, %v618
        %v621 = vadd.f32 %v615, %v617
        %v622 = vadd.f32 %v616, %v618
        %vm623 = vcmp.ge.f32.partialorder %v619, 0.0
        %vm624 = vcmp.ge.f32.partialorder %v620, 0.0
        %vm625 = vcmp.ge.f32.partialorder %v621, 0.0
        %vm626 = vcmp.ge.f32.partialorder %v622, 0.0
        %v627 = vmul.f32 %v619, 0.01
        %v628 = vmul.f32 %v620, 0.01
        %v629 = vmul.f32 %v621, 0.01
        %v630 = vmul.f32 %v622, 0.01
        %v631 = vsel %vm623, %v619, %v627
        %v632 = vsel %vm624, %v620, %v628
        %v633 = vsel %vm625, %v621, %v629
        %v634 = vsel %vm626, %v622, %v630
        %vm635 = vcmp.ge.f32.partialorder %v567, 0.0
        %vm636 = vcmp.ge.f32.partialorder %v595, 0.0
        %vm637 = vcmp.ge.f32.partialorder %v569, 0.0
        %vm638 = vcmp.ge.f32.partialorder %v597, 0.0
        %v639 = vmul.f32 %v567, 0.01
        %v640 = vmul.f32 %v595, 0.01
        %v641 = vmul.f32 %v569, 0.01
        %v642 = vmul.f32 %v597, 0.01
        %v643 = vsel %vm635, %v567, %v639
        %v644 = vsel %vm636, %v595, %v640
        %v645 = vsel %vm637, %v569, %v641
        %v646 = vsel %vm638, %v597, %v642
        %v647 = vpack.c.bf16 %v645, %v643
        %v648 = vpack.c.bf16 %v646, %v644
        %s649 = scalar_lea.vmem [#allocation5], 256
        %v650 = vld [vmem:[%s649] sm:$0xff]
        %v651 = vld [vmem:[%s649 + $0x8] sm:$0xff]
        %v652 = vld [vmem:[%s649 + $0x10] sm:$0xff]
        %v653 = vld [vmem:[%s649 + $0x18] sm:$0xff]
        %v654 = vld [vmem:[%s649 + $0x20] sm:$0xff]
        %v655 = vld [vmem:[%s649 + $0x28] sm:$0xff]
        %v656 = vld [vmem:[%s649 + $0x30] sm:$0xff]
        %v657 = vld [vmem:[%s649 + $0x38] sm:$0xff]
        %v658 = vld [vmem:[%s649 + $0x40] sm:$0xff]
        %v659 = vld [vmem:[%s649 + $0x48] sm:$0xff]
        %v660 = vld [vmem:[%s649 + $0x50] sm:$0xff]
        %v661 = vld [vmem:[%s649 + $0x58] sm:$0xff]
        %v662 = vld [vmem:[%s649 + $0x60] sm:$0xff]
        %v663 = vld [vmem:[%s649 + $0x68] sm:$0xff]
        %v664 = vld [vmem:[%s649 + $0x70] sm:$0xff]
        %v665 = vld [vmem:[%s649 + $0x78] sm:$0xff]
        %v666 = vld [vmem:[%s649 + $0x80] sm:$0xff]
        %v667 = vld [vmem:[%s649 + $0x88] sm:$0xff]
        %v668 = vld [vmem:[%s649 + $0x90] sm:$0xff]
        %v669 = vld [vmem:[%s649 + $0x98] sm:$0xff]
        %v670 = vld [vmem:[%s649 + $0xa0] sm:$0xff]
        %v671 = vld [vmem:[%s649 + $0xa8] sm:$0xff]
        %v672 = vld [vmem:[%s649 + $0xb0] sm:$0xff]
        %v673 = vld [vmem:[%s649 + $0xb8] sm:$0xff]
        %v674 = vld [vmem:[%s649 + $0xc0] sm:$0xff]
        %v675 = vld [vmem:[%s649 + $0xc8] sm:$0xff]
        %v676 = vld [vmem:[%s649 + $0xd0] sm:$0xff]
        %v677 = vld [vmem:[%s649 + $0xd8] sm:$0xff]
        %v678 = vld [vmem:[%s649 + $0xe0] sm:$0xff]
        %v679 = vld [vmem:[%s649 + $0xe8] sm:$0xff]
        %v680 = vld [vmem:[%s649 + $0xf0] sm:$0xff]
        %v681 = vld [vmem:[%s649 + $0xf8] sm:$0xff]
        %v682 = vpack.c.bf16 %v633, %v631
        %v683 = vpack.c.bf16 %v634, %v632
        %s684 = scalar_lea.vmem [#allocation5], 512
        %v685 = vld [vmem:[%s684] sm:$0xff]
        %v686 = vld [vmem:[%s684 + $0x8] sm:$0xff]
        %v687 = vld [vmem:[%s684 + $0x10] sm:$0xff]
        %v688 = vld [vmem:[%s684 + $0x18] sm:$0xff]
        %v689 = vld [vmem:[%s684 + $0x20] sm:$0xff]
        %v690 = vld [vmem:[%s684 + $0x28] sm:$0xff]
        %v691 = vld [vmem:[%s684 + $0x30] sm:$0xff]
        %v692 = vld [vmem:[%s684 + $0x38] sm:$0xff]
        %v693 = vld [vmem:[%s684 + $0x40] sm:$0xff]
        %v694 = vld [vmem:[%s684 + $0x48] sm:$0xff]
        %v695 = vld [vmem:[%s684 + $0x50] sm:$0xff]
        %v696 = vld [vmem:[%s684 + $0x58] sm:$0xff]
        %v697 = vld [vmem:[%s684 + $0x60] sm:$0xff]
        %v698 = vld [vmem:[%s684 + $0x68] sm:$0xff]
        %v699 = vld [vmem:[%s684 + $0x70] sm:$0xff]
        %v700 = vld [vmem:[%s684 + $0x78] sm:$0xff]
        %v701 = vld [vmem:[%s684 + $0x80] sm:$0xff]
        %v702 = vld [vmem:[%s684 + $0x88] sm:$0xff]
        %v703 = vld [vmem:[%s684 + $0x90] sm:$0xff]
        %v704 = vld [vmem:[%s684 + $0x98] sm:$0xff]
        %v705 = vld [vmem:[%s684 + $0xa0] sm:$0xff]
        %v706 = vld [vmem:[%s684 + $0xa8] sm:$0xff]
        %v707 = vld [vmem:[%s684 + $0xb0] sm:$0xff]
        %v708 = vld [vmem:[%s684 + $0xb8] sm:$0xff]
        %v709 = vld [vmem:[%s684 + $0xc0] sm:$0xff]
        %v710 = vld [vmem:[%s684 + $0xc8] sm:$0xff]
        %v711 = vld [vmem:[%s684 + $0xd0] sm:$0xff]
        %v712 = vld [vmem:[%s684 + $0xd8] sm:$0xff]
        %v713 = vld [vmem:[%s684 + $0xe0] sm:$0xff]
        %v714 = vld [vmem:[%s684 + $0xe8] sm:$0xff]
        %v715 = vld [vmem:[%s684 + $0xf0] sm:$0xff]
        %v716 = vld [vmem:[%s684 + $0xf8] sm:$0xff]
        %v749 = vunpack.c.l.b16 %v685
        %v750 = vunpack.c.h.b16 %v685
        %v751 = vunpack.c.l.b16 %v686
        %v752 = vunpack.c.h.b16 %v686
        %v753 = vunpack.c.l.b16 %v687
        %v754 = vunpack.c.h.b16 %v687
        %v755 = vunpack.c.l.b16 %v688
        %v756 = vunpack.c.h.b16 %v688
        %v757 = vunpack.c.l.b16 %v689
        %v758 = vunpack.c.h.b16 %v689
        %v759 = vunpack.c.l.b16 %v690
        %v760 = vunpack.c.h.b16 %v690
        %v761 = vunpack.c.l.b16 %v691
        %v762 = vunpack.c.h.b16 %v691
        %v763 = vunpack.c.l.b16 %v692
        %v764 = vunpack.c.h.b16 %v692
        %v765 = vunpack.c.l.b16 %v693
        %v766 = vunpack.c.h.b16 %v693
        %v767 = vunpack.c.l.b16 %v694
        %v768 = vunpack.c.h.b16 %v694
        %v769 = vunpack.c.l.b16 %v695
        %v770 = vunpack.c.h.b16 %v695
        %v771 = vunpack.c.l.b16 %v696
        %v772 = vunpack.c.h.b16 %v696
        %v773 = vunpack.c.l.b16 %v697
        %v774 = vunpack.c.h.b16 %v697
        %v775 = vunpack.c.l.b16 %v698
        %v776 = vunpack.c.h.b16 %v698
        %v777 = vunpack.c.l.b16 %v699
        %v778 = vunpack.c.h.b16 %v699
        %v779 = vunpack.c.l.b16 %v700
        %v780 = vunpack.c.h.b16 %v700
        %v781 = vunpack.c.l.b16 %v701
        %v782 = vunpack.c.h.b16 %v701
        %v783 = vunpack.c.l.b16 %v702
        %v784 = vunpack.c.h.b16 %v702
        %v785 = vunpack.c.l.b16 %v703
        %v786 = vunpack.c.h.b16 %v703
        %v787 = vunpack.c.l.b16 %v704
        %v788 = vunpack.c.h.b16 %v704
        %v789 = vunpack.c.l.b16 %v705
        %v790 = vunpack.c.h.b16 %v705
        %v791 = vunpack.c.l.b16 %v706
        %v792 = vunpack.c.h.b16 %v706
        %v793 = vunpack.c.l.b16 %v707
        %v794 = vunpack.c.h.b16 %v707
        %v795 = vunpack.c.l.b16 %v708
        %v796 = vunpack.c.h.b16 %v708
        %v797 = vunpack.c.l.b16 %v709
        %v798 = vunpack.c.h.b16 %v709
        %v799 = vunpack.c.l.b16 %v710
        %v800 = vunpack.c.h.b16 %v710
        %v801 = vunpack.c.l.b16 %v711
        %v802 = vunpack.c.h.b16 %v711
        %v803 = vunpack.c.l.b16 %v712
        %v804 = vunpack.c.h.b16 %v712
        %v805 = vunpack.c.l.b16 %v713
        %v806 = vunpack.c.h.b16 %v713
        %v807 = vunpack.c.l.b16 %v714
        %v808 = vunpack.c.h.b16 %v714
        %v809 = vunpack.c.l.b16 %v715
        %v810 = vunpack.c.h.b16 %v715
        %v811 = vunpack.c.l.b16 %v716
        %v812 = vunpack.c.h.b16 %v716
        %v813 = vpack.c.b16 %v751, %v749
        %v814 = vpack.c.b16 %v752, %v750
        %v815 = vpack.c.b16 %v755, %v753
        %v816 = vpack.c.b16 %v756, %v754
        %v817 = vpack.c.b16 %v759, %v757
        %v818 = vpack.c.b16 %v760, %v758
        %v819 = vpack.c.b16 %v763, %v761
        %v820 = vpack.c.b16 %v764, %v762
        %v821 = vpack.c.b16 %v767, %v765
        %v822 = vpack.c.b16 %v768, %v766
        %v823 = vpack.c.b16 %v771, %v769
        %v824 = vpack.c.b16 %v772, %v770
        %v825 = vpack.c.b16 %v775, %v773
        %v826 = vpack.c.b16 %v776, %v774
        %v827 = vpack.c.b16 %v779, %v777
        %v828 = vpack.c.b16 %v780, %v778
        %v829 = vpack.c.b16 %v783, %v781
        %v830 = vpack.c.b16 %v784, %v782
        %v831 = vpack.c.b16 %v787, %v785
        %v832 = vpack.c.b16 %v788, %v786
        %v833 = vpack.c.b16 %v791, %v789
        %v834 = vpack.c.b16 %v792, %v790
        %v835 = vpack.c.b16 %v795, %v793
        %v836 = vpack.c.b16 %v796, %v794
        %v837 = vpack.c.b16 %v799, %v797
        %v838 = vpack.c.b16 %v800, %v798
        %v839 = vpack.c.b16 %v803, %v801
        %v840 = vpack.c.b16 %v804, %v802
        %v841 = vpack.c.b16 %v807, %v805
        %v842 = vpack.c.b16 %v808, %v806
        %v843 = vpack.c.b16 %v811, %v809
        %v844 = vpack.c.b16 %v812, %v810
        %877 = vmatpush.bf16.msra.mxu0 %v827
        %878 = vmatpush.bf16.msra.mxu0 %v825
        %879 = vmatpush.bf16.msra.mxu0 %v823
        %880 = vmatpush.bf16.msra.mxu0 %v821
        %881 = vmatpush.bf16.msra.mxu0 %v819
        %882 = vmatpush.bf16.msra.mxu0 %v817
        %883 = vmatpush.bf16.msra.mxu0 %v815
        %884 = vmatpush.bf16.msra.mxu0 %v813
        %885 = vmatmul.bf16.gmra.mxu0 %v682
        %v886 = vpop.f32.mrf.mxu0
        %v887 = vadd.f32 0.0, %v886
        %v888 = vpop.f32.mrf.mxu0
        %v889 = vadd.f32 0.0, %v888
        %890 = vdwg.mxu0
        %891 = vmatpush.bf16.msra.mxu0 %v843
        %892 = vmatpush.bf16.msra.mxu0 %v841
        %893 = vmatpush.bf16.msra.mxu0 %v839
        %894 = vmatpush.bf16.msra.mxu0 %v837
        %895 = vmatpush.bf16.msra.mxu0 %v835
        %896 = vmatpush.bf16.msra.mxu0 %v833
        %897 = vmatpush.bf16.msra.mxu0 %v831
        %898 = vmatpush.bf16.msra.mxu0 %v829
        %899 = vmatmul.bf16.gmra.mxu0 %v683
        %v900 = vpop.f32.mrf.mxu0
        %v901 = vadd.f32 %v887, %v900
        %v902 = vpop.f32.mrf.mxu0
        %v903 = vadd.f32 %v889, %v902
        %904 = vdwg.mxu0
        %905 = vmatpush.bf16.msra.mxu0 %v828
        %906 = vmatpush.bf16.msra.mxu0 %v826
        %907 = vmatpush.bf16.msra.mxu0 %v824
        %908 = vmatpush.bf16.msra.mxu0 %v822
        %909 = vmatpush.bf16.msra.mxu0 %v820
        %910 = vmatpush.bf16.msra.mxu0 %v818
        %911 = vmatpush.bf16.msra.mxu0 %v816
        %912 = vmatpush.bf16.msra.mxu0 %v814
        %913 = vmatmul.bf16.gmra.mxu0 %v682
        %v914 = vpop.f32.mrf.mxu0
        %v915 = vadd.f32 0.0, %v914
        %v916 = vpop.f32.mrf.mxu0
        %v917 = vadd.f32 0.0, %v916
        %918 = vdwg.mxu0
        %919 = vmatpush.bf16.msra.mxu0 %v844
        %920 = vmatpush.bf16.msra.mxu0 %v842
        %921 = vmatpush.bf16.msra.mxu0 %v840
        %922 = vmatpush.bf16.msra.mxu0 %v838
        %923 = vmatpush.bf16.msra.mxu0 %v836
        %924 = vmatpush.bf16.msra.mxu0 %v834
        %925 = vmatpush.bf16.msra.mxu0 %v832
        %926 = vmatpush.bf16.msra.mxu0 %v830
        %927 = vmatmul.bf16.gmra.mxu0 %v683
        %v928 = vpop.f32.mrf.mxu0
        %v929 = vadd.f32 %v915, %v928
        %v930 = vpop.f32.mrf.mxu0
        %v931 = vadd.f32 %v917, %v930
        %932 = vdwg.mxu0
        %v965 = vunpack.c.l.b16 %v650
        %v966 = vunpack.c.h.b16 %v650
        %v967 = vunpack.c.l.b16 %v651
        %v968 = vunpack.c.h.b16 %v651
        %v969 = vunpack.c.l.b16 %v652
        %v970 = vunpack.c.h.b16 %v652
        %v971 = vunpack.c.l.b16 %v653
        %v972 = vunpack.c.h.b16 %v653
        %v973 = vunpack.c.l.b16 %v654
        %v974 = vunpack.c.h.b16 %v654
        %v975 = vunpack.c.l.b16 %v655
        %v976 = vunpack.c.h.b16 %v655
        %v977 = vunpack.c.l.b16 %v656
        %v978 = vunpack.c.h.b16 %v656
        %v979 = vunpack.c.l.b16 %v657
        %v980 = vunpack.c.h.b16 %v657
        %v981 = vunpack.c.l.b16 %v658
        %v982 = vunpack.c.h.b16 %v658
        %v983 = vunpack.c.l.b16 %v659
        %v984 = vunpack.c.h.b16 %v659
        %v985 = vunpack.c.l.b16 %v660
        %v986 = vunpack.c.h.b16 %v660
        %v987 = vunpack.c.l.b16 %v661
        %v988 = vunpack.c.h.b16 %v661
        %v989 = vunpack.c.l.b16 %v662
        %v990 = vunpack.c.h.b16 %v662
        %v991 = vunpack.c.l.b16 %v663
        %v992 = vunpack.c.h.b16 %v663
        %v993 = vunpack.c.l.b16 %v664
        %v994 = vunpack.c.h.b16 %v664
        %v995 = vunpack.c.l.b16 %v665
        %v996 = vunpack.c.h.b16 %v665
        %v997 = vunpack.c.l.b16 %v666
        %v998 = vunpack.c.h.b16 %v666
        %v999 = vunpack.c.l.b16 %v667
        %v1000 = vunpack.c.h.b16 %v667
        %v1001 = vunpack.c.l.b16 %v668
        %v1002 = vunpack.c.h.b16 %v668
        %v1003 = vunpack.c.l.b16 %v669
        %v1004 = vunpack.c.h.b16 %v669
        %v1005 = vunpack.c.l.b16 %v670
        %v1006 = vunpack.c.h.b16 %v670
        %v1007 = vunpack.c.l.b16 %v671
        %v1008 = vunpack.c.h.b16 %v671
        %v1009 = vunpack.c.l.b16 %v672
        %v1010 = vunpack.c.h.b16 %v672
        %v1011 = vunpack.c.l.b16 %v673
        %v1012 = vunpack.c.h.b16 %v673
        %v1013 = vunpack.c.l.b16 %v674
        %v1014 = vunpack.c.h.b16 %v674
        %v1015 = vunpack.c.l.b16 %v675
        %v1016 = vunpack.c.h.b16 %v675
        %v1017 = vunpack.c.l.b16 %v676
        %v1018 = vunpack.c.h.b16 %v676
        %v1019 = vunpack.c.l.b16 %v677
        %v1020 = vunpack.c.h.b16 %v677
        %v1021 = vunpack.c.l.b16 %v678
        %v1022 = vunpack.c.h.b16 %v678
        %v1023 = vunpack.c.l.b16 %v679
        %v1024 = vunpack.c.h.b16 %v679
        %v1025 = vunpack.c.l.b16 %v680
        %v1026 = vunpack.c.h.b16 %v680
        %v1027 = vunpack.c.l.b16 %v681
        %v1028 = vunpack.c.h.b16 %v681
        %v1029 = vpack.c.b16 %v967, %v965
        %v1030 = vpack.c.b16 %v968, %v966
        %v1031 = vpack.c.b16 %v971, %v969
        %v1032 = vpack.c.b16 %v972, %v970
        %v1033 = vpack.c.b16 %v975, %v973
        %v1034 = vpack.c.b16 %v976, %v974
        %v1035 = vpack.c.b16 %v979, %v977
        %v1036 = vpack.c.b16 %v980, %v978
        %v1037 = vpack.c.b16 %v983, %v981
        %v1038 = vpack.c.b16 %v984, %v982
        %v1039 = vpack.c.b16 %v987, %v985
        %v1040 = vpack.c.b16 %v988, %v986
        %v1041 = vpack.c.b16 %v991, %v989
        %v1042 = vpack.c.b16 %v992, %v990
        %v1043 = vpack.c.b16 %v995, %v993
        %v1044 = vpack.c.b16 %v996, %v994
        %v1045 = vpack.c.b16 %v999, %v997
        %v1046 = vpack.c.b16 %v1000, %v998
        %v1047 = vpack.c.b16 %v1003, %v1001
        %v1048 = vpack.c.b16 %v1004, %v1002
        %v1049 = vpack.c.b16 %v1007, %v1005
        %v1050 = vpack.c.b16 %v1008, %v1006
        %v1051 = vpack.c.b16 %v1011, %v1009
        %v1052 = vpack.c.b16 %v1012, %v1010
        %v1053 = vpack.c.b16 %v1015, %v1013
        %v1054 = vpack.c.b16 %v1016, %v1014
        %v1055 = vpack.c.b16 %v1019, %v1017
        %v1056 = vpack.c.b16 %v1020, %v1018
        %v1057 = vpack.c.b16 %v1023, %v1021
        %v1058 = vpack.c.b16 %v1024, %v1022
        %v1059 = vpack.c.b16 %v1027, %v1025
        %v1060 = vpack.c.b16 %v1028, %v1026
        %1093 = vmatpush.bf16.msra.mxu0 %v1043
        %1094 = vmatpush.bf16.msra.mxu0 %v1041
        %1095 = vmatpush.bf16.msra.mxu0 %v1039
        %1096 = vmatpush.bf16.msra.mxu0 %v1037
        %1097 = vmatpush.bf16.msra.mxu0 %v1035
        %1098 = vmatpush.bf16.msra.mxu0 %v1033
        %1099 = vmatpush.bf16.msra.mxu0 %v1031
        %1100 = vmatpush.bf16.msra.mxu0 %v1029
        %1101 = vmatmul.bf16.gmra.mxu0 %v647
        %v1102 = vpop.f32.mrf.mxu0
        %v1103 = vadd.f32 %v901, %v1102
        %v1104 = vpop.f32.mrf.mxu0
        %v1105 = vadd.f32 %v903, %v1104
        %1106 = vdwg.mxu0
        %1107 = vmatpush.bf16.msra.mxu0 %v1059
        %1108 = vmatpush.bf16.msra.mxu0 %v1057
        %1109 = vmatpush.bf16.msra.mxu0 %v1055
        %1110 = vmatpush.bf16.msra.mxu0 %v1053
        %1111 = vmatpush.bf16.msra.mxu0 %v1051
        %1112 = vmatpush.bf16.msra.mxu0 %v1049
        %1113 = vmatpush.bf16.msra.mxu0 %v1047
        %1114 = vmatpush.bf16.msra.mxu0 %v1045
        %1115 = vmatmul.bf16.gmra.mxu0 %v648
        %v1116 = vpop.f32.mrf.mxu0
        %v1117 = vadd.f32 %v1103, %v1116
        %v1118 = vpop.f32.mrf.mxu0
        %v1119 = vadd.f32 %v1105, %v1118
        %1120 = vdwg.mxu0
        %1121 = vmatpush.bf16.msra.mxu0 %v1044
        %1122 = vmatpush.bf16.msra.mxu0 %v1042
        %1123 = vmatpush.bf16.msra.mxu0 %v1040
        %1124 = vmatpush.bf16.msra.mxu0 %v1038
        %1125 = vmatpush.bf16.msra.mxu0 %v1036
        %1126 = vmatpush.bf16.msra.mxu0 %v1034
        %1127 = vmatpush.bf16.msra.mxu0 %v1032
        %1128 = vmatpush.bf16.msra.mxu0 %v1030
        %1129 = vmatmul.bf16.gmra.mxu0 %v647
        %v1130 = vpop.f32.mrf.mxu0
        %v1131 = vadd.f32 %v929, %v1130
        %v1132 = vpop.f32.mrf.mxu0
        %v1133 = vadd.f32 %v931, %v1132
        %1134 = vdwg.mxu0
        %1135 = vmatpush.bf16.msra.mxu0 %v1060
        %1136 = vmatpush.bf16.msra.mxu0 %v1058
        %1137 = vmatpush.bf16.msra.mxu0 %v1056
        %1138 = vmatpush.bf16.msra.mxu0 %v1054
        %1139 = vmatpush.bf16.msra.mxu0 %v1052
        %1140 = vmatpush.bf16.msra.mxu0 %v1050
        %1141 = vmatpush.bf16.msra.mxu0 %v1048
        %1142 = vmatpush.bf16.msra.mxu0 %v1046
        %1143 = vmatmul.bf16.gmra.mxu0 %v648
        %v1144 = vpop.f32.mrf.mxu0
        %v1145 = vadd.f32 %v1131, %v1144
        %v1146 = vpop.f32.mrf.mxu0
        %v1147 = vadd.f32 %v1133, %v1146
        %1148 = vdwg.mxu0
        %v1149 = vperm.slane %v304, 3
        %v1150 = vperm.slane %v305, 3
        %v1151 = vadd.f32 %v1117, %v1149
        %v1152 = vadd.f32 %v1145, %v1150
        %v1153 = vadd.f32 %v1119, %v1149
        %v1154 = vadd.f32 %v1147, %v1150
        %1155 = vset.pattern.permute.xlu0 2
        %1156 = vperm.xlu0 %1155, %v301
        %v1157 = vpop.permute.xlu0 %1156
        %1159 = vset.pattern.permute.xlu0 2
        %1160 = vperm.xlu0 %1159, %v302
        %v1161 = vpop.permute.xlu0 %1160
        %v1163 = vperm.slane %v303, 2
        %v1164 = vperm.slane %v303, 6
        %v1167 = vperm.slane %v1163, 2
        %v1168 = vperm.slane %v1164, 2
        %v1169 = vmul.f32 %v1157, %v1167
        %v1170 = vmul.f32 %v1157, %v1168
        %v1171 = vmul.f32 %v1161, %v1167
        %v1172 = vmul.f32 %v1161, %v1168
        %v1173 = vperm.slane %v304, 4
        %v1174 = vperm.slane %v305, 4
        %v1175 = vadd.f32 %v1169, %v1173
        %v1176 = vadd.f32 %v1170, %v1174
        %v1177 = vadd.f32 %v1171, %v1173
        %v1178 = vadd.f32 %v1172, %v1174
        %vm1179 = vcmp.ge.f32.partialorder %v1175, 0.0
        %vm1180 = vcmp.ge.f32.partialorder %v1176, 0.0
        %vm1181 = vcmp.ge.f32.partialorder %v1177, 0.0
        %vm1182 = vcmp.ge.f32.partialorder %v1178, 0.0
        %v1183 = vmul.f32 %v1175, 0.01
        %v1184 = vmul.f32 %v1176, 0.01
        %v1185 = vmul.f32 %v1177, 0.01
        %v1186 = vmul.f32 %v1178, 0.01
        %v1187 = vsel %vm1179, %v1175, %v1183
        %v1188 = vsel %vm1180, %v1176, %v1184
        %v1189 = vsel %vm1181, %v1177, %v1185
        %v1190 = vsel %vm1182, %v1178, %v1186
        %vm1191 = vcmp.ge.f32.partialorder %v1151, 0.0
        %vm1192 = vcmp.ge.f32.partialorder %v1152, 0.0
        %vm1193 = vcmp.ge.f32.partialorder %v1153, 0.0
        %vm1194 = vcmp.ge.f32.partialorder %v1154, 0.0
        %v1195 = vmul.f32 %v1151, 0.01
        %v1196 = vmul.f32 %v1152, 0.01
        %v1197 = vmul.f32 %v1153, 0.01
        %v1198 = vmul.f32 %v1154, 0.01
        %v1199 = vsel %vm1191, %v1151, %v1195
        %v1200 = vsel %vm1192, %v1152, %v1196
        %v1201 = vsel %vm1193, %v1153, %v1197
        %v1202 = vsel %vm1194, %v1154, %v1198
        %v1203 = vpack.c.bf16 %v1201, %v1199
        %v1204 = vpack.c.bf16 %v1202, %v1200
        %s1205 = scalar_lea.vmem [#allocation5], 768
        %v1206 = vld [vmem:[%s1205] sm:$0xff]
        %v1207 = vld [vmem:[%s1205 + $0x8] sm:$0xff]
        %v1208 = vld [vmem:[%s1205 + $0x10] sm:$0xff]
        %v1209 = vld [vmem:[%s1205 + $0x18] sm:$0xff]
        %v1210 = vld [vmem:[%s1205 + $0x20] sm:$0xff]
        %v1211 = vld [vmem:[%s1205 + $0x28] sm:$0xff]
        %v1212 = vld [vmem:[%s1205 + $0x30] sm:$0xff]
        %v1213 = vld [vmem:[%s1205 + $0x38] sm:$0xff]
        %v1214 = vld [vmem:[%s1205 + $0x40] sm:$0xff]
        %v1215 = vld [vmem:[%s1205 + $0x48] sm:$0xff]
        %v1216 = vld [vmem:[%s1205 + $0x50] sm:$0xff]
        %v1217 = vld [vmem:[%s1205 + $0x58] sm:$0xff]
        %v1218 = vld [vmem:[%s1205 + $0x60] sm:$0xff]
        %v1219 = vld [vmem:[%s1205 + $0x68] sm:$0xff]
        %v1220 = vld [vmem:[%s1205 + $0x70] sm:$0xff]
        %v1221 = vld [vmem:[%s1205 + $0x78] sm:$0xff]
        %v1222 = vld [vmem:[%s1205 + $0x80] sm:$0xff]
        %v1223 = vld [vmem:[%s1205 + $0x88] sm:$0xff]
        %v1224 = vld [vmem:[%s1205 + $0x90] sm:$0xff]
        %v1225 = vld [vmem:[%s1205 + $0x98] sm:$0xff]
        %v1226 = vld [vmem:[%s1205 + $0xa0] sm:$0xff]
        %v1227 = vld [vmem:[%s1205 + $0xa8] sm:$0xff]
        %v1228 = vld [vmem:[%s1205 + $0xb0] sm:$0xff]
        %v1229 = vld [vmem:[%s1205 + $0xb8] sm:$0xff]
        %v1230 = vld [vmem:[%s1205 + $0xc0] sm:$0xff]
        %v1231 = vld [vmem:[%s1205 + $0xc8] sm:$0xff]
        %v1232 = vld [vmem:[%s1205 + $0xd0] sm:$0xff]
        %v1233 = vld [vmem:[%s1205 + $0xd8] sm:$0xff]
        %v1234 = vld [vmem:[%s1205 + $0xe0] sm:$0xff]
        %v1235 = vld [vmem:[%s1205 + $0xe8] sm:$0xff]
        %v1236 = vld [vmem:[%s1205 + $0xf0] sm:$0xff]
        %v1237 = vld [vmem:[%s1205 + $0xf8] sm:$0xff]
        %v1238 = vpack.c.bf16 %v1189, %v1187
        %v1239 = vpack.c.bf16 %v1190, %v1188
        %s1240 = scalar_lea.vmem [#allocation5], 1024
        %v1241 = vld [vmem:[%s1240] sm:$0xff]
        %v1242 = vld [vmem:[%s1240 + $0x8] sm:$0xff]
        %v1243 = vld [vmem:[%s1240 + $0x10] sm:$0xff]
        %v1244 = vld [vmem:[%s1240 + $0x18] sm:$0xff]
        %v1245 = vld [vmem:[%s1240 + $0x20] sm:$0xff]
        %v1246 = vld [vmem:[%s1240 + $0x28] sm:$0xff]
        %v1247 = vld [vmem:[%s1240 + $0x30] sm:$0xff]
        %v1248 = vld [vmem:[%s1240 + $0x38] sm:$0xff]
        %v1249 = vld [vmem:[%s1240 + $0x40] sm:$0xff]
        %v1250 = vld [vmem:[%s1240 + $0x48] sm:$0xff]
        %v1251 = vld [vmem:[%s1240 + $0x50] sm:$0xff]
        %v1252 = vld [vmem:[%s1240 + $0x58] sm:$0xff]
        %v1253 = vld [vmem:[%s1240 + $0x60] sm:$0xff]
        %v1254 = vld [vmem:[%s1240 + $0x68] sm:$0xff]
        %v1255 = vld [vmem:[%s1240 + $0x70] sm:$0xff]
        %v1256 = vld [vmem:[%s1240 + $0x78] sm:$0xff]
        %v1257 = vld [vmem:[%s1240 + $0x80] sm:$0xff]
        %v1258 = vld [vmem:[%s1240 + $0x88] sm:$0xff]
        %v1259 = vld [vmem:[%s1240 + $0x90] sm:$0xff]
        %v1260 = vld [vmem:[%s1240 + $0x98] sm:$0xff]
        %v1261 = vld [vmem:[%s1240 + $0xa0] sm:$0xff]
        %v1262 = vld [vmem:[%s1240 + $0xa8] sm:$0xff]
        %v1263 = vld [vmem:[%s1240 + $0xb0] sm:$0xff]
        %v1264 = vld [vmem:[%s1240 + $0xb8] sm:$0xff]
        %v1265 = vld [vmem:[%s1240 + $0xc0] sm:$0xff]
        %v1266 = vld [vmem:[%s1240 + $0xc8] sm:$0xff]
        %v1267 = vld [vmem:[%s1240 + $0xd0] sm:$0xff]
        %v1268 = vld [vmem:[%s1240 + $0xd8] sm:$0xff]
        %v1269 = vld [vmem:[%s1240 + $0xe0] sm:$0xff]
        %v1270 = vld [vmem:[%s1240 + $0xe8] sm:$0xff]
        %v1271 = vld [vmem:[%s1240 + $0xf0] sm:$0xff]
        %v1272 = vld [vmem:[%s1240 + $0xf8] sm:$0xff]
        %v1305 = vunpack.c.l.b16 %v1241
        %v1306 = vunpack.c.h.b16 %v1241
        %v1307 = vunpack.c.l.b16 %v1242
        %v1308 = vunpack.c.h.b16 %v1242
        %v1309 = vunpack.c.l.b16 %v1243
        %v1310 = vunpack.c.h.b16 %v1243
        %v1311 = vunpack.c.l.b16 %v1244
        %v1312 = vunpack.c.h.b16 %v1244
        %v1313 = vunpack.c.l.b16 %v1245
        %v1314 = vunpack.c.h.b16 %v1245
        %v1315 = vunpack.c.l.b16 %v1246
        %v1316 = vunpack.c.h.b16 %v1246
        %v1317 = vunpack.c.l.b16 %v1247
        %v1318 = vunpack.c.h.b16 %v1247
        %v1319 = vunpack.c.l.b16 %v1248
        %v1320 = vunpack.c.h.b16 %v1248
        %v1321 = vunpack.c.l.b16 %v1249
        %v1322 = vunpack.c.h.b16 %v1249
        %v1323 = vunpack.c.l.b16 %v1250
        %v1324 = vunpack.c.h.b16 %v1250
        %v1325 = vunpack.c.l.b16 %v1251
        %v1326 = vunpack.c.h.b16 %v1251
        %v1327 = vunpack.c.l.b16 %v1252
        %v1328 = vunpack.c.h.b16 %v1252
        %v1329 = vunpack.c.l.b16 %v1253
        %v1330 = vunpack.c.h.b16 %v1253
        %v1331 = vunpack.c.l.b16 %v1254
        %v1332 = vunpack.c.h.b16 %v1254
        %v1333 = vunpack.c.l.b16 %v1255
        %v1334 = vunpack.c.h.b16 %v1255
        %v1335 = vunpack.c.l.b16 %v1256
        %v1336 = vunpack.c.h.b16 %v1256
        %v1337 = vunpack.c.l.b16 %v1257
        %v1338 = vunpack.c.h.b16 %v1257
        %v1339 = vunpack.c.l.b16 %v1258
        %v1340 = vunpack.c.h.b16 %v1258
        %v1341 = vunpack.c.l.b16 %v1259
        %v1342 = vunpack.c.h.b16 %v1259
        %v1343 = vunpack.c.l.b16 %v1260
        %v1344 = vunpack.c.h.b16 %v1260
        %v1345 = vunpack.c.l.b16 %v1261
        %v1346 = vunpack.c.h.b16 %v1261
        %v1347 = vunpack.c.l.b16 %v1262
        %v1348 = vunpack.c.h.b16 %v1262
        %v1349 = vunpack.c.l.b16 %v1263
        %v1350 = vunpack.c.h.b16 %v1263
        %v1351 = vunpack.c.l.b16 %v1264
        %v1352 = vunpack.c.h.b16 %v1264
        %v1353 = vunpack.c.l.b16 %v1265
        %v1354 = vunpack.c.h.b16 %v1265
        %v1355 = vunpack.c.l.b16 %v1266
        %v1356 = vunpack.c.h.b16 %v1266
        %v1357 = vunpack.c.l.b16 %v1267
        %v1358 = vunpack.c.h.b16 %v1267
        %v1359 = vunpack.c.l.b16 %v1268
        %v1360 = vunpack.c.h.b16 %v1268
        %v1361 = vunpack.c.l.b16 %v1269
        %v1362 = vunpack.c.h.b16 %v1269
        %v1363 = vunpack.c.l.b16 %v1270
        %v1364 = vunpack.c.h.b16 %v1270
        %v1365 = vunpack.c.l.b16 %v1271
        %v1366 = vunpack.c.h.b16 %v1271
        %v1367 = vunpack.c.l.b16 %v1272
        %v1368 = vunpack.c.h.b16 %v1272
        %v1369 = vpack.c.b16 %v1307, %v1305
        %v1370 = vpack.c.b16 %v1308, %v1306
        %v1371 = vpack.c.b16 %v1311, %v1309
        %v1372 = vpack.c.b16 %v1312, %v1310
        %v1373 = vpack.c.b16 %v1315, %v1313
        %v1374 = vpack.c.b16 %v1316, %v1314
        %v1375 = vpack.c.b16 %v1319, %v1317
        %v1376 = vpack.c.b16 %v1320, %v1318
        %v1377 = vpack.c.b16 %v1323, %v1321
        %v1378 = vpack.c.b16 %v1324, %v1322
        %v1379 = vpack.c.b16 %v1327, %v1325
        %v1380 = vpack.c.b16 %v1328, %v1326
        %v1381 = vpack.c.b16 %v1331, %v1329
        %v1382 = vpack.c.b16 %v1332, %v1330
        %v1383 = vpack.c.b16 %v1335, %v1333
        %v1384 = vpack.c.b16 %v1336, %v1334
        %v1385 = vpack.c.b16 %v1339, %v1337
        %v1386 = vpack.c.b16 %v1340, %v1338
        %v1387 = vpack.c.b16 %v1343, %v1341
        %v1388 = vpack.c.b16 %v1344, %v1342
        %v1389 = vpack.c.b16 %v1347, %v1345
        %v1390 = vpack.c.b16 %v1348, %v1346
        %v1391 = vpack.c.b16 %v1351, %v1349
        %v1392 = vpack.c.b16 %v1352, %v1350
        %v1393 = vpack.c.b16 %v1355, %v1353
        %v1394 = vpack.c.b16 %v1356, %v1354
        %v1395 = vpack.c.b16 %v1359, %v1357
        %v1396 = vpack.c.b16 %v1360, %v1358
        %v1397 = vpack.c.b16 %v1363, %v1361
        %v1398 = vpack.c.b16 %v1364, %v1362
        %v1399 = vpack.c.b16 %v1367, %v1365
        %v1400 = vpack.c.b16 %v1368, %v1366
        %1433 = vmatpush.bf16.msra.mxu0 %v1383
        %1434 = vmatpush.bf16.msra.mxu0 %v1381
        %1435 = vmatpush.bf16.msra.mxu0 %v1379
        %1436 = vmatpush.bf16.msra.mxu0 %v1377
        %1437 = vmatpush.bf16.msra.mxu0 %v1375
        %1438 = vmatpush.bf16.msra.mxu0 %v1373
        %1439 = vmatpush.bf16.msra.mxu0 %v1371
        %1440 = vmatpush.bf16.msra.mxu0 %v1369
        %1441 = vmatmul.bf16.gmra.mxu0 %v1238
        %v1442 = vpop.f32.mrf.mxu0
        %v1443 = vadd.f32 0.0, %v1442
        %v1444 = vpop.f32.mrf.mxu0
        %v1445 = vadd.f32 0.0, %v1444
        %1446 = vdwg.mxu0
        %1447 = vmatpush.bf16.msra.mxu0 %v1399
        %1448 = vmatpush.bf16.msra.mxu0 %v1397
        %1449 = vmatpush.bf16.msra.mxu0 %v1395
        %1450 = vmatpush.bf16.msra.mxu0 %v1393
        %1451 = vmatpush.bf16.msra.mxu0 %v1391
        %1452 = vmatpush.bf16.msra.mxu0 %v1389
        %1453 = vmatpush.bf16.msra.mxu0 %v1387
        %1454 = vmatpush.bf16.msra.mxu0 %v1385
        %1455 = vmatmul.bf16.gmra.mxu0 %v1239
        %v1456 = vpop.f32.mrf.mxu0
        %v1457 = vadd.f32 %v1443, %v1456
        %v1458 = vpop.f32.mrf.mxu0
        %v1459 = vadd.f32 %v1445, %v1458
        %1460 = vdwg.mxu0
        %1461 = vmatpush.bf16.msra.mxu0 %v1384
        %1462 = vmatpush.bf16.msra.mxu0 %v1382
        %1463 = vmatpush.bf16.msra.mxu0 %v1380
        %1464 = vmatpush.bf16.msra.mxu0 %v1378
        %1465 = vmatpush.bf16.msra.mxu0 %v1376
        %1466 = vmatpush.bf16.msra.mxu0 %v1374
        %1467 = vmatpush.bf16.msra.mxu0 %v1372
        %1468 = vmatpush.bf16.msra.mxu0 %v1370
        %1469 = vmatmul.bf16.gmra.mxu0 %v1238
        %v1470 = vpop.f32.mrf.mxu0
        %v1471 = vadd.f32 0.0, %v1470
        %v1472 = vpop.f32.mrf.mxu0
        %v1473 = vadd.f32 0.0, %v1472
        %1474 = vdwg.mxu0
        %1475 = vmatpush.bf16.msra.mxu0 %v1400
        %1476 = vmatpush.bf16.msra.mxu0 %v1398
        %1477 = vmatpush.bf16.msra.mxu0 %v1396
        %1478 = vmatpush.bf16.msra.mxu0 %v1394
        %1479 = vmatpush.bf16.msra.mxu0 %v1392
        %1480 = vmatpush.bf16.msra.mxu0 %v1390
        %1481 = vmatpush.bf16.msra.mxu0 %v1388
        %1482 = vmatpush.bf16.msra.mxu0 %v1386
        %1483 = vmatmul.bf16.gmra.mxu0 %v1239
        %v1484 = vpop.f32.mrf.mxu0
        %v1485 = vadd.f32 %v1471, %v1484
        %v1486 = vpop.f32.mrf.mxu0
        %v1487 = vadd.f32 %v1473, %v1486
        %1488 = vdwg.mxu0
        %v1521 = vunpack.c.l.b16 %v1206
        %v1522 = vunpack.c.h.b16 %v1206
        %v1523 = vunpack.c.l.b16 %v1207
        %v1524 = vunpack.c.h.b16 %v1207
        %v1525 = vunpack.c.l.b16 %v1208
        %v1526 = vunpack.c.h.b16 %v1208
        %v1527 = vunpack.c.l.b16 %v1209
        %v1528 = vunpack.c.h.b16 %v1209
        %v1529 = vunpack.c.l.b16 %v1210
        %v1530 = vunpack.c.h.b16 %v1210
        %v1531 = vunpack.c.l.b16 %v1211
        %v1532 = vunpack.c.h.b16 %v1211
        %v1533 = vunpack.c.l.b16 %v1212
        %v1534 = vunpack.c.h.b16 %v1212
        %v1535 = vunpack.c.l.b16 %v1213
        %v1536 = vunpack.c.h.b16 %v1213
        %v1537 = vunpack.c.l.b16 %v1214
        %v1538 = vunpack.c.h.b16 %v1214
        %v1539 = vunpack.c.l.b16 %v1215
        %v1540 = vunpack.c.h.b16 %v1215
        %v1541 = vunpack.c.l.b16 %v1216
        %v1542 = vunpack.c.h.b16 %v1216
        %v1543 = vunpack.c.l.b16 %v1217
        %v1544 = vunpack.c.h.b16 %v1217
        %v1545 = vunpack.c.l.b16 %v1218
        %v1546 = vunpack.c.h.b16 %v1218
        %v1547 = vunpack.c.l.b16 %v1219
        %v1548 = vunpack.c.h.b16 %v1219
        %v1549 = vunpack.c.l.b16 %v1220
        %v1550 = vunpack.c.h.b16 %v1220
        %v1551 = vunpack.c.l.b16 %v1221
        %v1552 = vunpack.c.h.b16 %v1221
        %v1553 = vunpack.c.l.b16 %v1222
        %v1554 = vunpack.c.h.b16 %v1222
        %v1555 = vunpack.c.l.b16 %v1223
        %v1556 = vunpack.c.h.b16 %v1223
        %v1557 = vunpack.c.l.b16 %v1224
        %v1558 = vunpack.c.h.b16 %v1224
        %v1559 = vunpack.c.l.b16 %v1225
        %v1560 = vunpack.c.h.b16 %v1225
        %v1561 = vunpack.c.l.b16 %v1226
        %v1562 = vunpack.c.h.b16 %v1226
        %v1563 = vunpack.c.l.b16 %v1227
        %v1564 = vunpack.c.h.b16 %v1227
        %v1565 = vunpack.c.l.b16 %v1228
        %v1566 = vunpack.c.h.b16 %v1228
        %v1567 = vunpack.c.l.b16 %v1229
        %v1568 = vunpack.c.h.b16 %v1229
        %v1569 = vunpack.c.l.b16 %v1230
        %v1570 = vunpack.c.h.b16 %v1230
        %v1571 = vunpack.c.l.b16 %v1231
        %v1572 = vunpack.c.h.b16 %v1231
        %v1573 = vunpack.c.l.b16 %v1232
        %v1574 = vunpack.c.h.b16 %v1232
        %v1575 = vunpack.c.l.b16 %v1233
        %v1576 = vunpack.c.h.b16 %v1233
        %v1577 = vunpack.c.l.b16 %v1234
        %v1578 = vunpack.c.h.b16 %v1234
        %v1579 = vunpack.c.l.b16 %v1235
        %v1580 = vunpack.c.h.b16 %v1235
        %v1581 = vunpack.c.l.b16 %v1236
        %v1582 = vunpack.c.h.b16 %v1236
        %v1583 = vunpack.c.l.b16 %v1237
        %v1584 = vunpack.c.h.b16 %v1237
        %v1585 = vpack.c.b16 %v1523, %v1521
        %v1586 = vpack.c.b16 %v1524, %v1522
        %v1587 = vpack.c.b16 %v1527, %v1525
        %v1588 = vpack.c.b16 %v1528, %v1526
        %v1589 = vpack.c.b16 %v1531, %v1529
        %v1590 = vpack.c.b16 %v1532, %v1530
        %v1591 = vpack.c.b16 %v1535, %v1533
        %v1592 = vpack.c.b16 %v1536, %v1534
        %v1593 = vpack.c.b16 %v1539, %v1537
        %v1594 = vpack.c.b16 %v1540, %v1538
        %v1595 = vpack.c.b16 %v1543, %v1541
        %v1596 = vpack.c.b16 %v1544, %v1542
        %v1597 = vpack.c.b16 %v1547, %v1545
        %v1598 = vpack.c.b16 %v1548, %v1546
        %v1599 = vpack.c.b16 %v1551, %v1549
        %v1600 = vpack.c.b16 %v1552, %v1550
        %v1601 = vpack.c.b16 %v1555, %v1553
        %v1602 = vpack.c.b16 %v1556, %v1554
        %v1603 = vpack.c.b16 %v1559, %v1557
        %v1604 = vpack.c.b16 %v1560, %v1558
        %v1605 = vpack.c.b16 %v1563, %v1561
        %v1606 = vpack.c.b16 %v1564, %v1562
        %v1607 = vpack.c.b16 %v1567, %v1565
        %v1608 = vpack.c.b16 %v1568, %v1566
        %v1609 = vpack.c.b16 %v1571, %v1569
        %v1610 = vpack.c.b16 %v1572, %v1570
        %v1611 = vpack.c.b16 %v1575, %v1573
        %v1612 = vpack.c.b16 %v1576, %v1574
        %v1613 = vpack.c.b16 %v1579, %v1577
        %v1614 = vpack.c.b16 %v1580, %v1578
        %v1615 = vpack.c.b16 %v1583, %v1581
        %v1616 = vpack.c.b16 %v1584, %v1582
        %1649 = vmatpush.bf16.msra.mxu0 %v1599
        %1650 = vmatpush.bf16.msra.mxu0 %v1597
        %1651 = vmatpush.bf16.msra.mxu0 %v1595
        %1652 = vmatpush.bf16.msra.mxu0 %v1593
        %1653 = vmatpush.bf16.msra.mxu0 %v1591
        %1654 = vmatpush.bf16.msra.mxu0 %v1589
        %1655 = vmatpush.bf16.msra.mxu0 %v1587
        %1656 = vmatpush.bf16.msra.mxu0 %v1585
        %1657 = vmatmul.bf16.gmra.mxu0 %v1203
        %v1658 = vpop.f32.mrf.mxu0
        %v1659 = vadd.f32 %v1457, %v1658
        %v1660 = vpop.f32.mrf.mxu0
        %v1661 = vadd.f32 %v1459, %v1660
        %1662 = vdwg.mxu0
        %1663 = vmatpush.bf16.msra.mxu0 %v1615
        %1664 = vmatpush.bf16.msra.mxu0 %v1613
        %1665 = vmatpush.bf16.msra.mxu0 %v1611
        %1666 = vmatpush.bf16.msra.mxu0 %v1609
        %1667 = vmatpush.bf16.msra.mxu0 %v1607
        %1668 = vmatpush.bf16.msra.mxu0 %v1605
        %1669 = vmatpush.bf16.msra.mxu0 %v1603
        %1670 = vmatpush.bf16.msra.mxu0 %v1601
        %1671 = vmatmul.bf16.gmra.mxu0 %v1204
        %v1672 = vpop.f32.mrf.mxu0
        %v1673 = vadd.f32 %v1659, %v1672
        %v1674 = vpop.f32.mrf.mxu0
        %v1675 = vadd.f32 %v1661, %v1674
        %1676 = vdwg.mxu0
        %1677 = vmatpush.bf16.msra.mxu0 %v1600
        %1678 = vmatpush.bf16.msra.mxu0 %v1598
        %1679 = vmatpush.bf16.msra.mxu0 %v1596
        %1680 = vmatpush.bf16.msra.mxu0 %v1594
        %1681 = vmatpush.bf16.msra.mxu0 %v1592
        %1682 = vmatpush.bf16.msra.mxu0 %v1590
        %1683 = vmatpush.bf16.msra.mxu0 %v1588
        %1684 = vmatpush.bf16.msra.mxu0 %v1586
        %1685 = vmatmul.bf16.gmra.mxu0 %v1203
        %v1686 = vpop.f32.mrf.mxu0
        %v1687 = vadd.f32 %v1485, %v1686
        %v1688 = vpop.f32.mrf.mxu0
        %v1689 = vadd.f32 %v1487, %v1688
        %1690 = vdwg.mxu0
        %1691 = vmatpush.bf16.msra.mxu0 %v1616
        %1692 = vmatpush.bf16.msra.mxu0 %v1614
        %1693 = vmatpush.bf16.msra.mxu0 %v1612
        %1694 = vmatpush.bf16.msra.mxu0 %v1610
        %1695 = vmatpush.bf16.msra.mxu0 %v1608
        %1696 = vmatpush.bf16.msra.mxu0 %v1606
        %1697 = vmatpush.bf16.msra.mxu0 %v1604
        %1698 = vmatpush.bf16.msra.mxu0 %v1602
        %1699 = vmatmul.bf16.gmra.mxu0 %v1204
        %v1700 = vpop.f32.mrf.mxu0
        %v1701 = vadd.f32 %v1687, %v1700
        %v1702 = vpop.f32.mrf.mxu0
        %v1703 = vadd.f32 %v1689, %v1702
        %1704 = vdwg.mxu0
        %v1705 = vperm.slane %v304, 5
        %v1706 = vperm.slane %v305, 5
        %v1707 = vadd.f32 %v1673, %v1705
        %v1708 = vadd.f32 %v1701, %v1706
        %v1709 = vadd.f32 %v1675, %v1705
        %v1710 = vadd.f32 %v1703, %v1706
        %vm1711 = vcmp.ge.f32.partialorder %v1707, 0.0
        %vm1712 = vcmp.ge.f32.partialorder %v1708, 0.0
        %vm1713 = vcmp.ge.f32.partialorder %v1709, 0.0
        %vm1714 = vcmp.ge.f32.partialorder %v1710, 0.0
        %v1715 = vmul.f32 %v1707, 0.01
        %v1716 = vmul.f32 %v1708, 0.01
        %v1717 = vmul.f32 %v1709, 0.01
        %v1718 = vmul.f32 %v1710, 0.01
        %v1719 = vsel %vm1711, %v1707, %v1715
        %v1720 = vsel %vm1712, %v1708, %v1716
        %v1721 = vsel %vm1713, %v1709, %v1717
        %v1722 = vsel %vm1714, %v1710, %v1718
        %v1723 = vpack.c.bf16 %v1721, %v1719
        %v1724 = vpack.c.bf16 %v1722, %v1720
        %s1725 = scalar_lea.vmem [#allocation5], 1280
        %v1726 = vld [vmem:[%s1725] sm:$0xff]
        %v1727 = vld [vmem:[%s1725 + $0x8] sm:$0xff]
        %v1728 = vld [vmem:[%s1725 + $0x10] sm:$0xff]
        %v1729 = vld [vmem:[%s1725 + $0x18] sm:$0xff]
        %v1730 = vld [vmem:[%s1725 + $0x20] sm:$0xff]
        %v1731 = vld [vmem:[%s1725 + $0x28] sm:$0xff]
        %v1732 = vld [vmem:[%s1725 + $0x30] sm:$0xff]
        %v1733 = vld [vmem:[%s1725 + $0x38] sm:$0xff]
        %v1734 = vld [vmem:[%s1725 + $0x40] sm:$0xff]
        %v1735 = vld [vmem:[%s1725 + $0x48] sm:$0xff]
        %v1736 = vld [vmem:[%s1725 + $0x50] sm:$0xff]
        %v1737 = vld [vmem:[%s1725 + $0x58] sm:$0xff]
        %v1738 = vld [vmem:[%s1725 + $0x60] sm:$0xff]
        %v1739 = vld [vmem:[%s1725 + $0x68] sm:$0xff]
        %v1740 = vld [vmem:[%s1725 + $0x70] sm:$0xff]
        %v1741 = vld [vmem:[%s1725 + $0x78] sm:$0xff]
        %v1742 = vld [vmem:[%s1725 + $0x80] sm:$0xff]
        %v1743 = vld [vmem:[%s1725 + $0x88] sm:$0xff]
        %v1744 = vld [vmem:[%s1725 + $0x90] sm:$0xff]
        %v1745 = vld [vmem:[%s1725 + $0x98] sm:$0xff]
        %v1746 = vld [vmem:[%s1725 + $0xa0] sm:$0xff]
        %v1747 = vld [vmem:[%s1725 + $0xa8] sm:$0xff]
        %v1748 = vld [vmem:[%s1725 + $0xb0] sm:$0xff]
        %v1749 = vld [vmem:[%s1725 + $0xb8] sm:$0xff]
        %v1750 = vld [vmem:[%s1725 + $0xc0] sm:$0xff]
        %v1751 = vld [vmem:[%s1725 + $0xc8] sm:$0xff]
        %v1752 = vld [vmem:[%s1725 + $0xd0] sm:$0xff]
        %v1753 = vld [vmem:[%s1725 + $0xd8] sm:$0xff]
        %v1754 = vld [vmem:[%s1725 + $0xe0] sm:$0xff]
        %v1755 = vld [vmem:[%s1725 + $0xe8] sm:$0xff]
        %v1756 = vld [vmem:[%s1725 + $0xf0] sm:$0xff]
        %v1757 = vld [vmem:[%s1725 + $0xf8] sm:$0xff]
        %v1758 = vperm.slane %v304, 6
        %v1759 = vperm.slane %v305, 6
        %v1792 = vunpack.c.l.b16 %v1726
        %v1793 = vunpack.c.h.b16 %v1726
        %v1794 = vunpack.c.l.b16 %v1727
        %v1795 = vunpack.c.h.b16 %v1727
        %v1796 = vunpack.c.l.b16 %v1728
        %v1797 = vunpack.c.h.b16 %v1728
        %v1798 = vunpack.c.l.b16 %v1729
        %v1799 = vunpack.c.h.b16 %v1729
        %v1800 = vunpack.c.l.b16 %v1730
        %v1801 = vunpack.c.h.b16 %v1730
        %v1802 = vunpack.c.l.b16 %v1731
        %v1803 = vunpack.c.h.b16 %v1731
        %v1804 = vunpack.c.l.b16 %v1732
        %v1805 = vunpack.c.h.b16 %v1732
        %v1806 = vunpack.c.l.b16 %v1733
        %v1807 = vunpack.c.h.b16 %v1733
        %v1808 = vunpack.c.l.b16 %v1734
        %v1809 = vunpack.c.h.b16 %v1734
        %v1810 = vunpack.c.l.b16 %v1735
        %v1811 = vunpack.c.h.b16 %v1735
        %v1812 = vunpack.c.l.b16 %v1736
        %v1813 = vunpack.c.h.b16 %v1736
        %v1814 = vunpack.c.l.b16 %v1737
        %v1815 = vunpack.c.h.b16 %v1737
        %v1816 = vunpack.c.l.b16 %v1738
        %v1817 = vunpack.c.h.b16 %v1738
        %v1818 = vunpack.c.l.b16 %v1739
        %v1819 = vunpack.c.h.b16 %v1739
        %v1820 = vunpack.c.l.b16 %v1740
        %v1821 = vunpack.c.h.b16 %v1740
        %v1822 = vunpack.c.l.b16 %v1741
        %v1823 = vunpack.c.h.b16 %v1741
        %v1824 = vunpack.c.l.b16 %v1742
        %v1825 = vunpack.c.h.b16 %v1742
        %v1826 = vunpack.c.l.b16 %v1743
        %v1827 = vunpack.c.h.b16 %v1743
        %v1828 = vunpack.c.l.b16 %v1744
        %v1829 = vunpack.c.h.b16 %v1744
        %v1830 = vunpack.c.l.b16 %v1745
        %v1831 = vunpack.c.h.b16 %v1745
        %v1832 = vunpack.c.l.b16 %v1746
        %v1833 = vunpack.c.h.b16 %v1746
        %v1834 = vunpack.c.l.b16 %v1747
        %v1835 = vunpack.c.h.b16 %v1747
        %v1836 = vunpack.c.l.b16 %v1748
        %v1837 = vunpack.c.h.b16 %v1748
        %v1838 = vunpack.c.l.b16 %v1749
        %v1839 = vunpack.c.h.b16 %v1749
        %v1840 = vunpack.c.l.b16 %v1750
        %v1841 = vunpack.c.h.b16 %v1750
        %v1842 = vunpack.c.l.b16 %v1751
        %v1843 = vunpack.c.h.b16 %v1751
        %v1844 = vunpack.c.l.b16 %v1752
        %v1845 = vunpack.c.h.b16 %v1752
        %v1846 = vunpack.c.l.b16 %v1753
        %v1847 = vunpack.c.h.b16 %v1753
        %v1848 = vunpack.c.l.b16 %v1754
        %v1849 = vunpack.c.h.b16 %v1754
        %v1850 = vunpack.c.l.b16 %v1755
        %v1851 = vunpack.c.h.b16 %v1755
        %v1852 = vunpack.c.l.b16 %v1756
        %v1853 = vunpack.c.h.b16 %v1756
        %v1854 = vunpack.c.l.b16 %v1757
        %v1855 = vunpack.c.h.b16 %v1757
        %v1856 = vpack.c.b16 %v1794, %v1792
        %v1857 = vpack.c.b16 %v1795, %v1793
        %v1858 = vpack.c.b16 %v1798, %v1796
        %v1859 = vpack.c.b16 %v1799, %v1797
        %v1860 = vpack.c.b16 %v1802, %v1800
        %v1861 = vpack.c.b16 %v1803, %v1801
        %v1862 = vpack.c.b16 %v1806, %v1804
        %v1863 = vpack.c.b16 %v1807, %v1805
        %v1864 = vpack.c.b16 %v1810, %v1808
        %v1865 = vpack.c.b16 %v1811, %v1809
        %v1866 = vpack.c.b16 %v1814, %v1812
        %v1867 = vpack.c.b16 %v1815, %v1813
        %v1868 = vpack.c.b16 %v1818, %v1816
        %v1869 = vpack.c.b16 %v1819, %v1817
        %v1870 = vpack.c.b16 %v1822, %v1820
        %v1871 = vpack.c.b16 %v1823, %v1821
        %v1872 = vpack.c.b16 %v1826, %v1824
        %v1873 = vpack.c.b16 %v1827, %v1825
        %v1874 = vpack.c.b16 %v1830, %v1828
        %v1875 = vpack.c.b16 %v1831, %v1829
        %v1876 = vpack.c.b16 %v1834, %v1832
        %v1877 = vpack.c.b16 %v1835, %v1833
        %v1878 = vpack.c.b16 %v1838, %v1836
        %v1879 = vpack.c.b16 %v1839, %v1837
        %v1880 = vpack.c.b16 %v1842, %v1840
        %v1881 = vpack.c.b16 %v1843, %v1841
        %v1882 = vpack.c.b16 %v1846, %v1844
        %v1883 = vpack.c.b16 %v1847, %v1845
        %v1884 = vpack.c.b16 %v1850, %v1848
        %v1885 = vpack.c.b16 %v1851, %v1849
        %v1886 = vpack.c.b16 %v1854, %v1852
        %v1887 = vpack.c.b16 %v1855, %v1853
        %1920 = vmatpush.bf16.msra.mxu0 %v1870
        %1921 = vmatpush.bf16.msra.mxu0 %v1868
        %1922 = vmatpush.bf16.msra.mxu0 %v1866
        %1923 = vmatpush.bf16.msra.mxu0 %v1864
        %1924 = vmatpush.bf16.msra.mxu0 %v1862
        %1925 = vmatpush.bf16.msra.mxu0 %v1860
        %1926 = vmatpush.bf16.msra.mxu0 %v1858
        %1927 = vmatpush.bf16.msra.mxu0 %v1856
        %1928 = vmatmul.bf16.gmra.mxu0 %v1723
        %v1929 = vpop.f32.mrf.mxu0
        %v1930 = vadd.f32 %v1758, %v1929
        %v1931 = vpop.f32.mrf.mxu0
        %v1932 = vadd.f32 %v1758, %v1931
        %1933 = vdwg.mxu0
        %1934 = vmatpush.bf16.msra.mxu0 %v1886
        %1935 = vmatpush.bf16.msra.mxu0 %v1884
        %1936 = vmatpush.bf16.msra.mxu0 %v1882
        %1937 = vmatpush.bf16.msra.mxu0 %v1880
        %1938 = vmatpush.bf16.msra.mxu0 %v1878
        %1939 = vmatpush.bf16.msra.mxu0 %v1876
        %1940 = vmatpush.bf16.msra.mxu0 %v1874
        %1941 = vmatpush.bf16.msra.mxu0 %v1872
        %1942 = vmatmul.bf16.gmra.mxu0 %v1724
        %v1943 = vpop.f32.mrf.mxu0
        %v1944 = vadd.f32 %v1930, %v1943
        %v1945 = vpop.f32.mrf.mxu0
        %v1946 = vadd.f32 %v1932, %v1945
        %1947 = vdwg.mxu0
        %1948 = vmatpush.bf16.msra.mxu0 %v1871
        %1949 = vmatpush.bf16.msra.mxu0 %v1869
        %1950 = vmatpush.bf16.msra.mxu0 %v1867
        %1951 = vmatpush.bf16.msra.mxu0 %v1865
        %1952 = vmatpush.bf16.msra.mxu0 %v1863
        %1953 = vmatpush.bf16.msra.mxu0 %v1861
        %1954 = vmatpush.bf16.msra.mxu0 %v1859
        %1955 = vmatpush.bf16.msra.mxu0 %v1857
        %1956 = vmatmul.bf16.gmra.mxu0 %v1723
        %v1957 = vpop.f32.mrf.mxu0
        %v1958 = vadd.f32 %v1759, %v1957
        %v1959 = vpop.f32.mrf.mxu0
        %v1960 = vadd.f32 %v1759, %v1959
        %1961 = vdwg.mxu0
        %1962 = vmatpush.bf16.msra.mxu0 %v1887
        %1963 = vmatpush.bf16.msra.mxu0 %v1885
        %1964 = vmatpush.bf16.msra.mxu0 %v1883
        %1965 = vmatpush.bf16.msra.mxu0 %v1881
        %1966 = vmatpush.bf16.msra.mxu0 %v1879
        %1967 = vmatpush.bf16.msra.mxu0 %v1877
        %1968 = vmatpush.bf16.msra.mxu0 %v1875
        %1969 = vmatpush.bf16.msra.mxu0 %v1873
        %1970 = vmatmul.bf16.gmra.mxu0 %v1724
        %v1971 = vpop.f32.mrf.mxu0
        %v1972 = vadd.f32 %v1958, %v1971
        %v1973 = vpop.f32.mrf.mxu0
        %v1974 = vadd.f32 %v1960, %v1973
        %1975 = vdwg.mxu0
        %vm1976 = vcmp.ge.f32.partialorder %v1944, 0.0
        %vm1977 = vcmp.ge.f32.partialorder %v1972, 0.0
        %vm1978 = vcmp.ge.f32.partialorder %v1946, 0.0
        %vm1979 = vcmp.ge.f32.partialorder %v1974, 0.0
        %v1980 = vmul.f32 %v1944, 0.01
        %v1981 = vmul.f32 %v1972, 0.01
        %v1982 = vmul.f32 %v1946, 0.01
        %v1983 = vmul.f32 %v1974, 0.01
        %v1984 = vsel %vm1976, %v1944, %v1980
        %v1985 = vsel %vm1977, %v1972, %v1981
        %v1986 = vsel %vm1978, %v1946, %v1982
        %v1987 = vsel %vm1979, %v1974, %v1983
        %v1988 = vpack.c.bf16 %v1986, %v1984
        %v1989 = vpack.c.bf16 %v1987, %v1985
        %s1990 = scalar_lea.vmem [#allocation5], 1536
        %v1991 = vld [vmem:[%s1990] sm:$0xff]
        %v1992 = vld [vmem:[%s1990 + $0x8] sm:$0xff]
        %v1993 = vld [vmem:[%s1990 + $0x10] sm:$0xff]
        %v1994 = vld [vmem:[%s1990 + $0x18] sm:$0xff]
        %v1995 = vld [vmem:[%s1990 + $0x20] sm:$0xff]
        %v1996 = vld [vmem:[%s1990 + $0x28] sm:$0xff]
        %v1997 = vld [vmem:[%s1990 + $0x30] sm:$0xff]
        %v1998 = vld [vmem:[%s1990 + $0x38] sm:$0xff]
        %v1999 = vld [vmem:[%s1990 + $0x40] sm:$0xff]
        %v2000 = vld [vmem:[%s1990 + $0x48] sm:$0xff]
        %v2001 = vld [vmem:[%s1990 + $0x50] sm:$0xff]
        %v2002 = vld [vmem:[%s1990 + $0x58] sm:$0xff]
        %v2003 = vld [vmem:[%s1990 + $0x60] sm:$0xff]
        %v2004 = vld [vmem:[%s1990 + $0x68] sm:$0xff]
        %v2005 = vld [vmem:[%s1990 + $0x70] sm:$0xff]
        %v2006 = vld [vmem:[%s1990 + $0x78] sm:$0xff]
        %v2007 = vld [vmem:[%s1990 + $0x80] sm:$0xff]
        %v2008 = vld [vmem:[%s1990 + $0x88] sm:$0xff]
        %v2009 = vld [vmem:[%s1990 + $0x90] sm:$0xff]
        %v2010 = vld [vmem:[%s1990 + $0x98] sm:$0xff]
        %v2011 = vld [vmem:[%s1990 + $0xa0] sm:$0xff]
        %v2012 = vld [vmem:[%s1990 + $0xa8] sm:$0xff]
        %v2013 = vld [vmem:[%s1990 + $0xb0] sm:$0xff]
        %v2014 = vld [vmem:[%s1990 + $0xb8] sm:$0xff]
        %v2015 = vld [vmem:[%s1990 + $0xc0] sm:$0xff]
        %v2016 = vld [vmem:[%s1990 + $0xc8] sm:$0xff]
        %v2017 = vld [vmem:[%s1990 + $0xd0] sm:$0xff]
        %v2018 = vld [vmem:[%s1990 + $0xd8] sm:$0xff]
        %v2019 = vld [vmem:[%s1990 + $0xe0] sm:$0xff]
        %v2020 = vld [vmem:[%s1990 + $0xe8] sm:$0xff]
        %v2021 = vld [vmem:[%s1990 + $0xf0] sm:$0xff]
        %v2022 = vld [vmem:[%s1990 + $0xf8] sm:$0xff]
        %v2023 = vperm.slane %v304, 7
        %v2024 = vperm.slane %v305, 7
        %v2057 = vunpack.c.l.b16 %v1991
        %v2058 = vunpack.c.h.b16 %v1991
        %v2059 = vunpack.c.l.b16 %v1992
        %v2060 = vunpack.c.h.b16 %v1992
        %v2061 = vunpack.c.l.b16 %v1993
        %v2062 = vunpack.c.h.b16 %v1993
        %v2063 = vunpack.c.l.b16 %v1994
        %v2064 = vunpack.c.h.b16 %v1994
        %v2065 = vunpack.c.l.b16 %v1995
        %v2066 = vunpack.c.h.b16 %v1995
        %v2067 = vunpack.c.l.b16 %v1996
        %v2068 = vunpack.c.h.b16 %v1996
        %v2069 = vunpack.c.l.b16 %v1997
        %v2070 = vunpack.c.h.b16 %v1997
        %v2071 = vunpack.c.l.b16 %v1998
        %v2072 = vunpack.c.h.b16 %v1998
        %v2073 = vunpack.c.l.b16 %v1999
        %v2074 = vunpack.c.h.b16 %v1999
        %v2075 = vunpack.c.l.b16 %v2000
        %v2076 = vunpack.c.h.b16 %v2000
        %v2077 = vunpack.c.l.b16 %v2001
        %v2078 = vunpack.c.h.b16 %v2001
        %v2079 = vunpack.c.l.b16 %v2002
        %v2080 = vunpack.c.h.b16 %v2002
        %v2081 = vunpack.c.l.b16 %v2003
        %v2082 = vunpack.c.h.b16 %v2003
        %v2083 = vunpack.c.l.b16 %v2004
        %v2084 = vunpack.c.h.b16 %v2004
        %v2085 = vunpack.c.l.b16 %v2005
        %v2086 = vunpack.c.h.b16 %v2005
        %v2087 = vunpack.c.l.b16 %v2006
        %v2088 = vunpack.c.h.b16 %v2006
        %v2089 = vunpack.c.l.b16 %v2007
        %v2090 = vunpack.c.h.b16 %v2007
        %v2091 = vunpack.c.l.b16 %v2008
        %v2092 = vunpack.c.h.b16 %v2008
        %v2093 = vunpack.c.l.b16 %v2009
        %v2094 = vunpack.c.h.b16 %v2009
        %v2095 = vunpack.c.l.b16 %v2010
        %v2096 = vunpack.c.h.b16 %v2010
        %v2097 = vunpack.c.l.b16 %v2011
        %v2098 = vunpack.c.h.b16 %v2011
        %v2099 = vunpack.c.l.b16 %v2012
        %v2100 = vunpack.c.h.b16 %v2012
        %v2101 = vunpack.c.l.b16 %v2013
        %v2102 = vunpack.c.h.b16 %v2013
        %v2103 = vunpack.c.l.b16 %v2014
        %v2104 = vunpack.c.h.b16 %v2014
        %v2105 = vunpack.c.l.b16 %v2015
        %v2106 = vunpack.c.h.b16 %v2015
        %v2107 = vunpack.c.l.b16 %v2016
        %v2108 = vunpack.c.h.b16 %v2016
        %v2109 = vunpack.c.l.b16 %v2017
        %v2110 = vunpack.c.h.b16 %v2017
        %v2111 = vunpack.c.l.b16 %v2018
        %v2112 = vunpack.c.h.b16 %v2018
        %v2113 = vunpack.c.l.b16 %v2019
        %v2114 = vunpack.c.h.b16 %v2019
        %v2115 = vunpack.c.l.b16 %v2020
        %v2116 = vunpack.c.h.b16 %v2020
        %v2117 = vunpack.c.l.b16 %v2021
        %v2118 = vunpack.c.h.b16 %v2021
        %v2119 = vunpack.c.l.b16 %v2022
        %v2120 = vunpack.c.h.b16 %v2022
        %v2121 = vpack.c.b16 %v2059, %v2057
        %v2122 = vpack.c.b16 %v2060, %v2058
        %v2123 = vpack.c.b16 %v2063, %v2061
        %v2124 = vpack.c.b16 %v2064, %v2062
        %v2125 = vpack.c.b16 %v2067, %v2065
        %v2126 = vpack.c.b16 %v2068, %v2066
        %v2127 = vpack.c.b16 %v2071, %v2069
        %v2128 = vpack.c.b16 %v2072, %v2070
        %v2129 = vpack.c.b16 %v2075, %v2073
        %v2130 = vpack.c.b16 %v2076, %v2074
        %v2131 = vpack.c.b16 %v2079, %v2077
        %v2132 = vpack.c.b16 %v2080, %v2078
        %v2133 = vpack.c.b16 %v2083, %v2081
        %v2134 = vpack.c.b16 %v2084, %v2082
        %v2135 = vpack.c.b16 %v2087, %v2085
        %v2136 = vpack.c.b16 %v2088, %v2086
        %v2137 = vpack.c.b16 %v2091, %v2089
        %v2138 = vpack.c.b16 %v2092, %v2090
        %v2139 = vpack.c.b16 %v2095, %v2093
        %v2140 = vpack.c.b16 %v2096, %v2094
        %v2141 = vpack.c.b16 %v2099, %v2097
        %v2142 = vpack.c.b16 %v2100, %v2098
        %v2143 = vpack.c.b16 %v2103, %v2101
        %v2144 = vpack.c.b16 %v2104, %v2102
        %v2145 = vpack.c.b16 %v2107, %v2105
        %v2146 = vpack.c.b16 %v2108, %v2106
        %v2147 = vpack.c.b16 %v2111, %v2109
        %v2148 = vpack.c.b16 %v2112, %v2110
        %v2149 = vpack.c.b16 %v2115, %v2113
        %v2150 = vpack.c.b16 %v2116, %v2114
        %v2151 = vpack.c.b16 %v2119, %v2117
        %v2152 = vpack.c.b16 %v2120, %v2118
        %2185 = vmatpush.bf16.msra.mxu0 %v2135
        %2186 = vmatpush.bf16.msra.mxu0 %v2133
        %2187 = vmatpush.bf16.msra.mxu0 %v2131
        %2188 = vmatpush.bf16.msra.mxu0 %v2129
        %2189 = vmatpush.bf16.msra.mxu0 %v2127
        %2190 = vmatpush.bf16.msra.mxu0 %v2125
        %2191 = vmatpush.bf16.msra.mxu0 %v2123
        %2192 = vmatpush.bf16.msra.mxu0 %v2121
        %2193 = vmatmul.bf16.gmra.mxu0 %v1988
        %v2194 = vpop.f32.mrf.mxu0
        %v2195 = vadd.f32 %v2023, %v2194
        %v2196 = vpop.f32.mrf.mxu0
        %v2197 = vadd.f32 %v2023, %v2196
        %2198 = vdwg.mxu0
        %2199 = vmatpush.bf16.msra.mxu0 %v2151
        %2200 = vmatpush.bf16.msra.mxu0 %v2149
        %2201 = vmatpush.bf16.msra.mxu0 %v2147
        %2202 = vmatpush.bf16.msra.mxu0 %v2145
        %2203 = vmatpush.bf16.msra.mxu0 %v2143
        %2204 = vmatpush.bf16.msra.mxu0 %v2141
        %2205 = vmatpush.bf16.msra.mxu0 %v2139
        %2206 = vmatpush.bf16.msra.mxu0 %v2137
        %2207 = vmatmul.bf16.gmra.mxu0 %v1989
        %v2208 = vpop.f32.mrf.mxu0
        %v2209 = vadd.f32 %v2195, %v2208
        %v2210 = vpop.f32.mrf.mxu0
        %v2211 = vadd.f32 %v2197, %v2210
        %2212 = vdwg.mxu0
        %2213 = vmatpush.bf16.msra.mxu0 %v2136
        %2214 = vmatpush.bf16.msra.mxu0 %v2134
        %2215 = vmatpush.bf16.msra.mxu0 %v2132
        %2216 = vmatpush.bf16.msra.mxu0 %v2130
        %2217 = vmatpush.bf16.msra.mxu0 %v2128
        %2218 = vmatpush.bf16.msra.mxu0 %v2126
        %2219 = vmatpush.bf16.msra.mxu0 %v2124
        %2220 = vmatpush.bf16.msra.mxu0 %v2122
        %2221 = vmatmul.bf16.gmra.mxu0 %v1988
        %v2222 = vpop.f32.mrf.mxu0
        %v2223 = vadd.f32 %v2024, %v2222
        %v2224 = vpop.f32.mrf.mxu0
        %v2225 = vadd.f32 %v2024, %v2224
        %2226 = vdwg.mxu0
        %2227 = vmatpush.bf16.msra.mxu0 %v2152
        %2228 = vmatpush.bf16.msra.mxu0 %v2150
        %2229 = vmatpush.bf16.msra.mxu0 %v2148
        %2230 = vmatpush.bf16.msra.mxu0 %v2146
        %2231 = vmatpush.bf16.msra.mxu0 %v2144
        %2232 = vmatpush.bf16.msra.mxu0 %v2142
        %2233 = vmatpush.bf16.msra.mxu0 %v2140
        %2234 = vmatpush.bf16.msra.mxu0 %v2138
        %2235 = vmatmul.bf16.gmra.mxu0 %v1989
        %v2236 = vpop.f32.mrf.mxu0
        %v2237 = vadd.f32 %v2223, %v2236
        %v2238 = vpop.f32.mrf.mxu0
        %v2239 = vadd.f32 %v2225, %v2238
        %2240 = vdwg.mxu0
        %vm2241 = vcmp.ge.f32.partialorder %v2209, 0.0
        %vm2242 = vcmp.ge.f32.partialorder %v2237, 0.0
        %vm2243 = vcmp.ge.f32.partialorder %v2211, 0.0
        %vm2244 = vcmp.ge.f32.partialorder %v2239, 0.0
        %v2245 = vmul.f32 %v2209, 0.01
        %v2246 = vmul.f32 %v2237, 0.01
        %v2247 = vmul.f32 %v2211, 0.01
        %v2248 = vmul.f32 %v2239, 0.01
        %v2249 = vsel %vm2241, %v2209, %v2245
        %v2250 = vsel %vm2242, %v2237, %v2246
        %v2251 = vsel %vm2243, %v2211, %v2247
        %v2252 = vsel %vm2244, %v2239, %v2248
        %v2253 = vpack.c.bf16 %v2251, %v2249
        %v2254 = vpack.c.bf16 %v2252, %v2250
        %s2255 = scalar_lea.vmem [#allocation5], 1792
        %v2256 = vld [vmem:[%s2255] sm:$0xff]
        %v2257 = vld [vmem:[%s2255 + $0x8] sm:$0xff]
        %v2258 = vld [vmem:[%s2255 + $0x10] sm:$0xff]
        %v2259 = vld [vmem:[%s2255 + $0x18] sm:$0xff]
        %v2260 = vld [vmem:[%s2255 + $0x20] sm:$0xff]
        %v2261 = vld [vmem:[%s2255 + $0x28] sm:$0xff]
        %v2262 = vld [vmem:[%s2255 + $0x30] sm:$0xff]
        %v2263 = vld [vmem:[%s2255 + $0x38] sm:$0xff]
        %v2264 = vld [vmem:[%s2255 + $0x40] sm:$0xff]
        %v2265 = vld [vmem:[%s2255 + $0x48] sm:$0xff]
        %v2266 = vld [vmem:[%s2255 + $0x50] sm:$0xff]
        %v2267 = vld [vmem:[%s2255 + $0x58] sm:$0xff]
        %v2268 = vld [vmem:[%s2255 + $0x60] sm:$0xff]
        %v2269 = vld [vmem:[%s2255 + $0x68] sm:$0xff]
        %v2270 = vld [vmem:[%s2255 + $0x70] sm:$0xff]
        %v2271 = vld [vmem:[%s2255 + $0x78] sm:$0xff]
        %v2272 = vld [vmem:[%s2255 + $0x80] sm:$0xff]
        %v2273 = vld [vmem:[%s2255 + $0x88] sm:$0xff]
        %v2274 = vld [vmem:[%s2255 + $0x90] sm:$0xff]
        %v2275 = vld [vmem:[%s2255 + $0x98] sm:$0xff]
        %v2276 = vld [vmem:[%s2255 + $0xa0] sm:$0xff]
        %v2277 = vld [vmem:[%s2255 + $0xa8] sm:$0xff]
        %v2278 = vld [vmem:[%s2255 + $0xb0] sm:$0xff]
        %v2279 = vld [vmem:[%s2255 + $0xb8] sm:$0xff]
        %v2280 = vld [vmem:[%s2255 + $0xc0] sm:$0xff]
        %v2281 = vld [vmem:[%s2255 + $0xc8] sm:$0xff]
        %v2282 = vld [vmem:[%s2255 + $0xd0] sm:$0xff]
        %v2283 = vld [vmem:[%s2255 + $0xd8] sm:$0xff]
        %v2284 = vld [vmem:[%s2255 + $0xe0] sm:$0xff]
        %v2285 = vld [vmem:[%s2255 + $0xe8] sm:$0xff]
        %v2286 = vld [vmem:[%s2255 + $0xf0] sm:$0xff]
        %v2287 = vld [vmem:[%s2255 + $0xf8] sm:$0xff]
        %v2288 = vperm.slane %v306, 0
        %v2289 = vperm.slane %v307, 0
        %v2322 = vunpack.c.l.b16 %v2256
        %v2323 = vunpack.c.h.b16 %v2256
        %v2324 = vunpack.c.l.b16 %v2257
        %v2325 = vunpack.c.h.b16 %v2257
        %v2326 = vunpack.c.l.b16 %v2258
        %v2327 = vunpack.c.h.b16 %v2258
        %v2328 = vunpack.c.l.b16 %v2259
        %v2329 = vunpack.c.h.b16 %v2259
        %v2330 = vunpack.c.l.b16 %v2260
        %v2331 = vunpack.c.h.b16 %v2260
        %v2332 = vunpack.c.l.b16 %v2261
        %v2333 = vunpack.c.h.b16 %v2261
        %v2334 = vunpack.c.l.b16 %v2262
        %v2335 = vunpack.c.h.b16 %v2262
        %v2336 = vunpack.c.l.b16 %v2263
        %v2337 = vunpack.c.h.b16 %v2263
        %v2338 = vunpack.c.l.b16 %v2264
        %v2339 = vunpack.c.h.b16 %v2264
        %v2340 = vunpack.c.l.b16 %v2265
        %v2341 = vunpack.c.h.b16 %v2265
        %v2342 = vunpack.c.l.b16 %v2266
        %v2343 = vunpack.c.h.b16 %v2266
        %v2344 = vunpack.c.l.b16 %v2267
        %v2345 = vunpack.c.h.b16 %v2267
        %v2346 = vunpack.c.l.b16 %v2268
        %v2347 = vunpack.c.h.b16 %v2268
        %v2348 = vunpack.c.l.b16 %v2269
        %v2349 = vunpack.c.h.b16 %v2269
        %v2350 = vunpack.c.l.b16 %v2270
        %v2351 = vunpack.c.h.b16 %v2270
        %v2352 = vunpack.c.l.b16 %v2271
        %v2353 = vunpack.c.h.b16 %v2271
        %v2354 = vunpack.c.l.b16 %v2272
        %v2355 = vunpack.c.h.b16 %v2272
        %v2356 = vunpack.c.l.b16 %v2273
        %v2357 = vunpack.c.h.b16 %v2273
        %v2358 = vunpack.c.l.b16 %v2274
        %v2359 = vunpack.c.h.b16 %v2274
        %v2360 = vunpack.c.l.b16 %v2275
        %v2361 = vunpack.c.h.b16 %v2275
        %v2362 = vunpack.c.l.b16 %v2276
        %v2363 = vunpack.c.h.b16 %v2276
        %v2364 = vunpack.c.l.b16 %v2277
        %v2365 = vunpack.c.h.b16 %v2277
        %v2366 = vunpack.c.l.b16 %v2278
        %v2367 = vunpack.c.h.b16 %v2278
        %v2368 = vunpack.c.l.b16 %v2279
        %v2369 = vunpack.c.h.b16 %v2279
        %v2370 = vunpack.c.l.b16 %v2280
        %v2371 = vunpack.c.h.b16 %v2280
        %v2372 = vunpack.c.l.b16 %v2281
        %v2373 = vunpack.c.h.b16 %v2281
        %v2374 = vunpack.c.l.b16 %v2282
        %v2375 = vunpack.c.h.b16 %v2282
        %v2376 = vunpack.c.l.b16 %v2283
        %v2377 = vunpack.c.h.b16 %v2283
        %v2378 = vunpack.c.l.b16 %v2284
        %v2379 = vunpack.c.h.b16 %v2284
        %v2380 = vunpack.c.l.b16 %v2285
        %v2381 = vunpack.c.h.b16 %v2285
        %v2382 = vunpack.c.l.b16 %v2286
        %v2383 = vunpack.c.h.b16 %v2286
        %v2384 = vunpack.c.l.b16 %v2287
        %v2385 = vunpack.c.h.b16 %v2287
        %v2386 = vpack.c.b16 %v2324, %v2322
        %v2387 = vpack.c.b16 %v2325, %v2323
        %v2388 = vpack.c.b16 %v2328, %v2326
        %v2389 = vpack.c.b16 %v2329, %v2327
        %v2390 = vpack.c.b16 %v2332, %v2330
        %v2391 = vpack.c.b16 %v2333, %v2331
        %v2392 = vpack.c.b16 %v2336, %v2334
        %v2393 = vpack.c.b16 %v2337, %v2335
        %v2394 = vpack.c.b16 %v2340, %v2338
        %v2395 = vpack.c.b16 %v2341, %v2339
        %v2396 = vpack.c.b16 %v2344, %v2342
        %v2397 = vpack.c.b16 %v2345, %v2343
        %v2398 = vpack.c.b16 %v2348, %v2346
        %v2399 = vpack.c.b16 %v2349, %v2347
        %v2400 = vpack.c.b16 %v2352, %v2350
        %v2401 = vpack.c.b16 %v2353, %v2351
        %v2402 = vpack.c.b16 %v2356, %v2354
        %v2403 = vpack.c.b16 %v2357, %v2355
        %v2404 = vpack.c.b16 %v2360, %v2358
        %v2405 = vpack.c.b16 %v2361, %v2359
        %v2406 = vpack.c.b16 %v2364, %v2362
        %v2407 = vpack.c.b16 %v2365, %v2363
        %v2408 = vpack.c.b16 %v2368, %v2366
        %v2409 = vpack.c.b16 %v2369, %v2367
        %v2410 = vpack.c.b16 %v2372, %v2370
        %v2411 = vpack.c.b16 %v2373, %v2371
        %v2412 = vpack.c.b16 %v2376, %v2374
        %v2413 = vpack.c.b16 %v2377, %v2375
        %v2414 = vpack.c.b16 %v2380, %v2378
        %v2415 = vpack.c.b16 %v2381, %v2379
        %v2416 = vpack.c.b16 %v2384, %v2382
        %v2417 = vpack.c.b16 %v2385, %v2383
        %2450 = vmatpush.bf16.msra.mxu0 %v2400
        %2451 = vmatpush.bf16.msra.mxu0 %v2398
        %2452 = vmatpush.bf16.msra.mxu0 %v2396
        %2453 = vmatpush.bf16.msra.mxu0 %v2394
        %2454 = vmatpush.bf16.msra.mxu0 %v2392
        %2455 = vmatpush.bf16.msra.mxu0 %v2390
        %2456 = vmatpush.bf16.msra.mxu0 %v2388
        %2457 = vmatpush.bf16.msra.mxu0 %v2386
        %2458 = vmatmul.bf16.gmra.mxu0 %v2253
        %v2459 = vpop.f32.mrf.mxu0
        %v2460 = vadd.f32 %v2288, %v2459
        %v2461 = vpop.f32.mrf.mxu0
        %v2462 = vadd.f32 %v2288, %v2461
        %2463 = vdwg.mxu0
        %2464 = vmatpush.bf16.msra.mxu0 %v2416
        %2465 = vmatpush.bf16.msra.mxu0 %v2414
        %2466 = vmatpush.bf16.msra.mxu0 %v2412
        %2467 = vmatpush.bf16.msra.mxu0 %v2410
        %2468 = vmatpush.bf16.msra.mxu0 %v2408
        %2469 = vmatpush.bf16.msra.mxu0 %v2406
        %2470 = vmatpush.bf16.msra.mxu0 %v2404
        %2471 = vmatpush.bf16.msra.mxu0 %v2402
        %2472 = vmatmul.bf16.gmra.mxu0 %v2254
        %v2473 = vpop.f32.mrf.mxu0
        %v2474 = vadd.f32 %v2460, %v2473
        %v2475 = vpop.f32.mrf.mxu0
        %v2476 = vadd.f32 %v2462, %v2475
        %2477 = vdwg.mxu0
        %2478 = vmatpush.bf16.msra.mxu0 %v2401
        %2479 = vmatpush.bf16.msra.mxu0 %v2399
        %2480 = vmatpush.bf16.msra.mxu0 %v2397
        %2481 = vmatpush.bf16.msra.mxu0 %v2395
        %2482 = vmatpush.bf16.msra.mxu0 %v2393
        %2483 = vmatpush.bf16.msra.mxu0 %v2391
        %2484 = vmatpush.bf16.msra.mxu0 %v2389
        %2485 = vmatpush.bf16.msra.mxu0 %v2387
        %2486 = vmatmul.bf16.gmra.mxu0 %v2253
        %v2487 = vpop.f32.mrf.mxu0
        %v2488 = vadd.f32 %v2289, %v2487
        %v2489 = vpop.f32.mrf.mxu0
        %v2490 = vadd.f32 %v2289, %v2489
        %2491 = vdwg.mxu0
        %2492 = vmatpush.bf16.msra.mxu0 %v2417
        %2493 = vmatpush.bf16.msra.mxu0 %v2415
        %2494 = vmatpush.bf16.msra.mxu0 %v2413
        %2495 = vmatpush.bf16.msra.mxu0 %v2411
        %2496 = vmatpush.bf16.msra.mxu0 %v2409
        %2497 = vmatpush.bf16.msra.mxu0 %v2407
        %2498 = vmatpush.bf16.msra.mxu0 %v2405
        %2499 = vmatpush.bf16.msra.mxu0 %v2403
        %2500 = vmatmul.bf16.gmra.mxu0 %v2254
        %v2501 = vpop.f32.mrf.mxu0
        %v2502 = vadd.f32 %v2488, %v2501
        %v2503 = vpop.f32.mrf.mxu0
        %v2504 = vadd.f32 %v2490, %v2503
        %2505 = vdwg.mxu0
        %vm2506 = vcmp.ge.f32.partialorder %v2474, 0.0
        %vm2507 = vcmp.ge.f32.partialorder %v2502, 0.0
        %vm2508 = vcmp.ge.f32.partialorder %v2476, 0.0
        %vm2509 = vcmp.ge.f32.partialorder %v2504, 0.0
        %v2510 = vmul.f32 %v2474, 0.01
        %v2511 = vmul.f32 %v2502, 0.01
        %v2512 = vmul.f32 %v2476, 0.01
        %v2513 = vmul.f32 %v2504, 0.01
        %v2514 = vsel %vm2506, %v2474, %v2510
        %v2515 = vsel %vm2507, %v2502, %v2511
        %v2516 = vsel %vm2508, %v2476, %v2512
        %v2517 = vsel %vm2509, %v2504, %v2513
        %v2518 = vpack.c.bf16 %v2516, %v2514
        %v2519 = vpack.c.bf16 %v2517, %v2515
        %v2520 = vld [vmem:[#allocation7] sm:$0xf]
        %v2521 = vld [vmem:[#allocation7 + $0x4] sm:$0xf]
        %v2522 = vld [vmem:[#allocation7 + $0x8] sm:$0xf]
        %v2523 = vld [vmem:[#allocation7 + $0xc] sm:$0xf]
        %v2524 = vld [vmem:[#allocation7 + $0x10] sm:$0xf]
        %v2525 = vld [vmem:[#allocation7 + $0x14] sm:$0xf]
        %v2526 = vld [vmem:[#allocation7 + $0x18] sm:$0xf]
        %v2527 = vld [vmem:[#allocation7 + $0x1c] sm:$0xf]
        %v2528 = vld [vmem:[#allocation7 + $0x20] sm:$0xf]
        %v2529 = vld [vmem:[#allocation7 + $0x24] sm:$0xf]
        %v2530 = vld [vmem:[#allocation7 + $0x28] sm:$0xf]
        %v2531 = vld [vmem:[#allocation7 + $0x2c] sm:$0xf]
        %v2532 = vld [vmem:[#allocation7 + $0x30] sm:$0xf]
        %v2533 = vld [vmem:[#allocation7 + $0x34] sm:$0xf]
        %v2534 = vld [vmem:[#allocation7 + $0x38] sm:$0xf]
        %v2535 = vld [vmem:[#allocation7 + $0x3c] sm:$0xf]
        %v2536 = vld [vmem:[#allocation7 + $0x40] sm:$0xf]
        %v2537 = vld [vmem:[#allocation7 + $0x44] sm:$0xf]
        %v2538 = vld [vmem:[#allocation7 + $0x48] sm:$0xf]
        %v2539 = vld [vmem:[#allocation7 + $0x4c] sm:$0xf]
        %v2540 = vld [vmem:[#allocation7 + $0x50] sm:$0xf]
        %v2541 = vld [vmem:[#allocation7 + $0x54] sm:$0xf]
        %v2542 = vld [vmem:[#allocation7 + $0x58] sm:$0xf]
        %v2543 = vld [vmem:[#allocation7 + $0x5c] sm:$0xf]
        %v2544 = vld [vmem:[#allocation7 + $0x60] sm:$0xf]
        %v2545 = vld [vmem:[#allocation7 + $0x64] sm:$0xf]
        %v2546 = vld [vmem:[#allocation7 + $0x68] sm:$0xf]
        %v2547 = vld [vmem:[#allocation7 + $0x6c] sm:$0xf]
        %v2548 = vld [vmem:[#allocation7 + $0x70] sm:$0xf]
        %v2549 = vld [vmem:[#allocation7 + $0x74] sm:$0xf]
        %v2550 = vld [vmem:[#allocation7 + $0x78] sm:$0xf]
        %v2551 = vld [vmem:[#allocation7 + $0x7c] sm:$0xf]
        %v2552 = vld [vmem:[%s5] sm:$0x1]
        %v2554 = vperm.slane %v2552, 0
        %v2588 = vunpack.c.l.b16 %v2520
        %v2589 = vunpack.c.l.b16 %v2521
        %v2590 = vunpack.c.l.b16 %v2522
        %v2591 = vunpack.c.l.b16 %v2523
        %v2592 = vunpack.c.l.b16 %v2524
        %v2593 = vunpack.c.l.b16 %v2525
        %v2594 = vunpack.c.l.b16 %v2526
        %v2595 = vunpack.c.l.b16 %v2527
        %v2596 = vunpack.c.l.b16 %v2528
        %v2597 = vunpack.c.l.b16 %v2529
        %v2598 = vunpack.c.l.b16 %v2530
        %v2599 = vunpack.c.l.b16 %v2531
        %v2600 = vunpack.c.l.b16 %v2532
        %v2601 = vunpack.c.l.b16 %v2533
        %v2602 = vunpack.c.l.b16 %v2534
        %v2603 = vunpack.c.l.b16 %v2535
        %v2604 = vunpack.c.l.b16 %v2536
        %v2605 = vunpack.c.l.b16 %v2537
        %v2606 = vunpack.c.l.b16 %v2538
        %v2607 = vunpack.c.l.b16 %v2539
        %v2608 = vunpack.c.l.b16 %v2540
        %v2609 = vunpack.c.l.b16 %v2541
        %v2610 = vunpack.c.l.b16 %v2542
        %v2611 = vunpack.c.l.b16 %v2543
        %v2612 = vunpack.c.l.b16 %v2544
        %v2613 = vunpack.c.l.b16 %v2545
        %v2614 = vunpack.c.l.b16 %v2546
        %v2615 = vunpack.c.l.b16 %v2547
        %v2616 = vunpack.c.l.b16 %v2548
        %v2617 = vunpack.c.l.b16 %v2549
        %v2618 = vunpack.c.l.b16 %v2550
        %v2619 = vunpack.c.l.b16 %v2551
        %v2620 = vpack.c.b16 %v2589, %v2588
        %v2621 = vpack.c.b16 %v2591, %v2590
        %v2622 = vpack.c.b16 %v2593, %v2592
        %v2623 = vpack.c.b16 %v2595, %v2594
        %v2624 = vpack.c.b16 %v2597, %v2596
        %v2625 = vpack.c.b16 %v2599, %v2598
        %v2626 = vpack.c.b16 %v2601, %v2600
        %v2627 = vpack.c.b16 %v2603, %v2602
        %v2628 = vpack.c.b16 %v2605, %v2604
        %v2629 = vpack.c.b16 %v2607, %v2606
        %v2630 = vpack.c.b16 %v2609, %v2608
        %v2631 = vpack.c.b16 %v2611, %v2610
        %v2632 = vpack.c.b16 %v2613, %v2612
        %v2633 = vpack.c.b16 %v2615, %v2614
        %v2634 = vpack.c.b16 %v2617, %v2616
        %v2635 = vpack.c.b16 %v2619, %v2618
        %2652 = vmatpush.bf16.msra.mxu0 %v2627
        %2653 = vmatpush.bf16.msra.mxu0 %v2626
        %2654 = vmatpush.bf16.msra.mxu0 %v2625
        %2655 = vmatpush.bf16.msra.mxu0 %v2624
        %2656 = vmatpush.bf16.msra.mxu0 %v2623
        %2657 = vmatpush.bf16.msra.mxu0 %v2622
        %2658 = vmatpush.bf16.msra.mxu0 %v2621
        %2659 = vmatpush.bf16.msra.mxu0 %v2620
        %2660 = vmatmul.bf16.gmra.mxu0 %v2518
        %v2661 = vpop.f32.mrf.mxu0
        %v2662 = vadd.f32 %v2554, %v2661
        %v2663 = vpop.f32.mrf.mxu0
        %v2664 = vadd.f32 %v2554, %v2663
        %2665 = vdwg.mxu0
        %2666 = vmatpush.bf16.msra.mxu0 %v2635
        %2667 = vmatpush.bf16.msra.mxu0 %v2634
        %2668 = vmatpush.bf16.msra.mxu0 %v2633
        %2669 = vmatpush.bf16.msra.mxu0 %v2632
        %2670 = vmatpush.bf16.msra.mxu0 %v2631
        %2671 = vmatpush.bf16.msra.mxu0 %v2630
        %2672 = vmatpush.bf16.msra.mxu0 %v2629
        %2673 = vmatpush.bf16.msra.mxu0 %v2628
        %2674 = vmatmul.bf16.gmra.mxu0 %v2519
        %v2675 = vpop.f32.mrf.mxu0
        %v2676 = vadd.f32 %v2662, %v2675
        %v2677 = vpop.f32.mrf.mxu0
        %v2678 = vadd.f32 %v2664, %v2677
        %2679 = vdwg.mxu0
        %2680 = vst [vmem:[%s293] sm:$0xff] %v2676
        %2681 = vst [vmem:[%s293 + $0x8] sm:$0xff] %v2678
        %s2682 = sand.u32 %s161, 1
        %s2683 = scalar_lea.sflag [#allocation4], %s2682
        %s2684 = sand.u32 %s161, 1
        %s2685 = smul.addr %s2684, 16
        %s2686 = scalar_lea.vmem [#allocation8], %s2685
        // Predicated region
        $region57: #{tpu_custom_call.1} parent=43 // pred_check
          %p2687 = pneg %p171
        $region58: #{tpu_custom_call.1} parent=43 // pred_check_branch
          %2689 = sbr.rel (%p2687) target = $region60
        $region59: #{tpu_custom_call.1} parent=43 // pred_region
          %s2690 = smul.u32 2, %s22
          %2692 = vsyncadd %s2683, 0
          %s2693 = smul.addr %s2690, 8
          %s2694 = scalar_lea.hbm %s6, %s2693
          %s2695 = sshll.u32 %s2686, 4
          %s2696 = int_to_ptr.vmem [resolvable:$true] %s2695
          %s2697 = sshll.u32 %s2694, 4
          %s2698 = int_to_ptr.hbm [resolvable:$true] %s2697
          %2703 = dma.vmem_to_hbm [thread:$0]  %s2696, 256, %s2698, %s2683, 128, 128, 8
        $region60: #{tpu_custom_call.1} parent=43 // pred_fallthru
          _
      $region44: #{tpu_custom_call.1} parent=5 // pred_fallthru
        _
      %p2704 = scmp.le.s32.totalorder 2, %s17
      // Predicated region
      $region61: #{tpu_custom_call.1} parent=5 // pred_check
        %p2705 = pneg %p2704
      $region62: #{tpu_custom_call.1} parent=5 // pred_check_branch
        %2707 = sbr.rel (%p2705) target = $region64
      $region63: #{tpu_custom_call.1} parent=5 // pred_region
        %s2708 = ssub.s32 %s17, 2
        // Predicated region
        $region65: #{tpu_custom_call.1} parent=63 // pred_check
          %p2709 = pneg %p177
        $region66: #{tpu_custom_call.1} parent=63 // pred_check_branch
          %2711 = sbr.rel (%p2709) target = $region68
        $region67: #{tpu_custom_call.1} parent=63 // pred_region
          %s2712 = sand.u32 %s162, 1
          %s2713 = scalar_lea.sflag [#allocation4], %s2712
          %s2714 = sand.u32 %s162, 1
          %s2715 = smul.addr %s2714, 16
          %s2716 = scalar_lea.vmem [#allocation8], %s2715
          %2718 = dma.done %s2713, 256
        $region68: #{tpu_custom_call.1} parent=63 // pred_fallthru
          _
      $region64: #{tpu_custom_call.1} parent=5 // pred_fallthru
        _
    $region6: #{tpu_custom_call.1} parent=1 // loop_footer
      %s21 = sadd.s32 1, %s17
    $region7: #{tpu_custom_call.1} parent=1 // loop_footer_branch
      %16 = sbr.rel target = $region3
    $region8: #{tpu_custom_call.1} parent=1 // loop_exit
      _
    %2719 = vsyncpa [#allocation3], 1
    %s2720 = scalar_lea.sflag [#allocation3], 1
    %2721 = vsyncpa %s2720, 1
    %2722 = vsyncpa [#allocation6], 1
    %2723 = vsyncpa [#allocation4], 1
    %s2724 = scalar_lea.sflag [#allocation4], 1
    %2725 = vsyncpa %s2724, 1

// kernel: tpu_custom_call.1
$region0: #{tpu_custom_call.1}
  #allocation0 [shape = 'u32[]', space=smem, size = 0x4, offset = 0x4, fixed_abs, tag = 'smem constant byte address 0x4 - core index']
  #allocation1 [shape = 'u32[72,128]{1,0:T(1,128)}', space=vmem, size = 0x9000, scoped, tag = 'internal scratch']
  %s0 = inlined_call_operand.vmem [shape: f32[32,3], index: 0, kind: input, shape index: {}]
  %s1 = inlined_call_operand.hbm [shape: f32[3,256], index: 1, kind: input, shape index: {}]
  %s2 = inlined_call_operand.vmem [shape: f32[9,256], index: 2, kind: input, shape index: {}]
  %s3 = inlined_call_operand.hbm [shape: bf16[8,256,256], index: 3, kind: input, shape index: {}]
  %s4 = inlined_call_operand.hbm [shape: bf16[256,128], index: 4, kind: input, shape index: {}]
  %s5 = inlined_call_operand.vmem [shape: f32[1,128], index: 5, kind: input, shape index: {}]
  %s6 = inlined_call_operand.hbm [shape: f32[32,128], index: 6, kind: output, shape index: {}]
  %s7 = sld [smem:[#allocation0]]
  $region69: #{tpu_custom_call.1} parent=0
    _
  %s9 = ssub.s32 1, %s7
  %s10 = scalar_select 0, %s9, %s7
  $region1: #{tpu_custom_call.1} parent=0
    #allocation2 [shape = 'u8[4096]{0}', space=vmem, size = 0x1000, scoped, tag = 'input window, operand 1, single buffered']
    #allocation3 [shape = 's32[2]{0}', space=sflag, size = 0x8, scoped, tag = 'scoped memory for tpu_custom_call.1']
    #allocation4 [shape = 's32[2]{0}', space=sflag, size = 0x8, scoped, tag = 'scoped memory for tpu_custom_call.1']
    #allocation5 [shape = 'u8[1048576]{0}', space=vmem, size = 0x100000, scoped, tag = 'input window, operand 3, single buffered']
    #allocation6 [shape = 's32[1]{0}', space=sflag, size = 0x4, scoped, tag = 'scoped memory for tpu_custom_call.1']
    #allocation7 [shape = 'u8[65536]{0}', space=vmem, size = 0x10000, scoped, tag = 'input window, operand 4, single buffered']
    #allocation8 [shape = 'u8[16384]{0}', space=vmem, size = 0x4000, scoped, tag = 'output window, operand 0']
    %11 = vsyncpa [#allocation3], 0
    %12 = vsyncpa [#allocation6], 0
    %13 = vsyncpa [#allocation4], 0
    %s14 = scalar_lea.sflag [#allocation4], 1
    %15 = vsyncpa %s14, 0
    loop: start=0, step=1, limit=4
    $region2: #{tpu_custom_call.1} parent=1 // loop_pre_header
      _
    $region3: #{tpu_custom_call.1} parent=1 // loop_header
      %s17 = sphi 0, %s21
      %p18 = scmp.ge.s32.totalorder %s17, 4
      %s27 = sphi 0, %s29
      %s30 = sphi 0, %s27
      %s31 = sphi 0, %s30
      %s47 = sphi 0, %s31
      %s51 = sphi 0, %s51
      %s53 = sphi 0, %s51
      %s54 = sphi 0, %s53
      %s68 = sphi 0, %s54
      %s72 = sphi 0, %s72
      %s74 = sphi 0, %s72
      %s75 = sphi 0, %s74
      %s89 = sphi 0, %s75
      %s93 = sphi 0, %s93
      %s95 = sphi 0, %s93
      %s96 = sphi 0, %s95
      %s110 = sphi 0, %s96
      %s114 = sphi 0, %s114
      %s116 = sphi 0, %s114
      %s117 = sphi 0, %s116
      %s131 = sphi 0, %s117
      %s135 = sphi 0, %s135
      %s137 = sphi 0, %s135
      %s138 = sphi 0, %s137
      %s152 = sphi 0, %s138
      %s158 = sphi 0, %s160
      %s161 = sphi 0, %s158
      %s162 = sphi 0, %s161
      %s178 = sphi 0, %s162
    $region4: #{tpu_custom_call.1} parent=1 // loop_header_branch
      %20 = sbr.rel (%p18) target = $region8
    $region5: #{tpu_custom_call.1} parent=1 // loop_body
      %s22 = ssub.s32 %s17, 1
      %s23 = ssub.s32 %s17, 2
      %s24 = sadd.s32 %s17, 1
      %s25 = ssub.s32 %s17, %s24
      %p26 = scmp.eq.s32.totalorder %s25, 0
      %s28 = sadd.s32 %s27, 1
      %s29 = scalar_select %p26, %s27, %s28
      %p32 = pneg %p26
      %p33 = scmp.eq.s32.totalorder %s17, 1
      %p34 = por %p32, %p33
      %p35 = scmp.ne.s32.totalorder %s27, %s30
      %p36 = scmp.eq.s32.totalorder %s17, 0
      %p37 = por %p35, %p36
      %p38 = scmp.ne.s32.totalorder %s27, %s30
      %p39 = scmp.eq.s32.totalorder %s22, 1
      %p40 = por %p38, %p39
      %p41 = scmp.ne.s32.totalorder %s30, %s31
      %p42 = scmp.eq.s32.totalorder %s22, 0
      %p43 = por %p41, %p42
      %p44 = scmp.ne.s32.totalorder %s30, %s31
      %p45 = scmp.eq.s32.totalorder %s23, 1
      %p46 = por %p44, %p45
      %p48 = scmp.ne.s32.totalorder %s31, %s47
      %p49 = scmp.eq.s32.totalorder %s23, 0
      %p50 = por %p48, %p49
      %s52 = sadd.s32 %s51, 1
      %p55 = scmp.eq.s32.totalorder %s17, 1
      %p56 = scmp.ne.s32.totalorder %s51, %s53
      %p57 = scmp.eq.s32.totalorder %s17, 0
      %p58 = por %p56, %p57
      %p59 = scmp.ne.s32.totalorder %s51, %s53
      %p60 = scmp.eq.s32.totalorder %s22, 1
      %p61 = por %p59, %p60
      %p62 = scmp.ne.s32.totalorder %s53, %s54
      %p63 = scmp.eq.s32.totalorder %s22, 0
      %p64 = por %p62, %p63
      %p65 = scmp.ne.s32.totalorder %s53, %s54
      %p66 = scmp.eq.s32.totalorder %s23, 1
      %p67 = por %p65, %p66
      %p69 = scmp.ne.s32.totalorder %s54, %s68
      %p70 = scmp.eq.s32.totalorder %s23, 0
      %p71 = por %p69, %p70
      %s73 = sadd.s32 %s72, 1
      %p76 = scmp.eq.s32.totalorder %s17, 1
      %p77 = scmp.ne.s32.totalorder %s72, %s74
      %p78 = scmp.eq.s32.totalorder %s17, 0
      %p79 = por %p77, %p78
      %p80 = scmp.ne.s32.totalorder %s72, %s74
      %p81 = scmp.eq.s32.totalorder %s22, 1
      %p82 = por %p80, %p81
      %p83 = scmp.ne.s32.totalorder %s74, %s75
      %p84 = scmp.eq.s32.totalorder %s22, 0
      %p85 = por %p83, %p84
      %p86 = scmp.ne.s32.totalorder %s74, %s75
      %p87 = scmp.eq.s32.totalorder %s23, 1
      %p88 = por %p86, %p87
      %p90 = scmp.ne.s32.totalorder %s75, %s89
      %p91 = scmp.eq.s32.totalorder %s23, 0
      %p92 = por %p90, %p91
      %s94 = sadd.s32 %s93, 1
      %p97 = scmp.eq.s32.totalorder %s17, 1
      %p98 = scmp.ne.s32.totalorder %s93, %s95
      %p99 = scmp.eq.s32.totalorder %s17, 0
      %p100 = por %p98, %p99
      %p101 = scmp.ne.s32.totalorder %s93, %s95
      %p102 = scmp.eq.s32.totalorder %s22, 1
      %p103 = por %p101, %p102
      %p104 = scmp.ne.s32.totalorder %s95, %s96
      %p105 = scmp.eq.s32.totalorder %s22, 0
      %p106 = por %p104, %p105
      %p107 = scmp.ne.s32.totalorder %s95, %s96
      %p108 = scmp.eq.s32.totalorder %s23, 1
      %p109 = por %p107, %p108
      %p111 = scmp.ne.s32.totalorder %s96, %s110
      %p112 = scmp.eq.s32.totalorder %s23, 0
      %p113 = por %p111, %p112
      %s115 = sadd.s32 %s114, 1
      %p118 = scmp.eq.s32.totalorder %s17, 1
      %p119 = scmp.ne.s32.totalorder %s114, %s116
      %p120 = scmp.eq.s32.totalorder %s17, 0
      %p121 = por %p119, %p120
      %p122 = scmp.ne.s32.totalorder %s114, %s116
      %p123 = scmp.eq.s32.totalorder %s22, 1
      %p124 = por %p122, %p123
      %p125 = scmp.ne.s32.totalorder %s116, %s117
      %p126 = scmp.eq.s32.totalorder %s22, 0
      %p127 = por %p125, %p126
      %p128 = scmp.ne.s32.totalorder %s116, %s117
      %p129 = scmp.eq.s32.totalorder %s23, 1
      %p130 = por %p128, %p129
      %p132 = scmp.ne.s32.totalorder %s117, %s131
      %p133 = scmp.eq.s32.totalorder %s23, 0
      %p134 = por %p132, %p133
      %s136 = sadd.s32 %s135, 1
      %p139 = scmp.eq.s32.totalorder %s17, 1
      %p140 = scmp.ne.s32.totalorder %s135, %s137
      %p141 = scmp.eq.s32.totalorder %s17, 0
      %p142 = por %p140, %p141
      %p143 = scmp.ne.s32.totalorder %s135, %s137
      %p144 = scmp.eq.s32.totalorder %s22, 1
      %p145 = por %p143, %p144
      %p146 = scmp.ne.s32.totalorder %s137, %s138
      %p147 = scmp.eq.s32.totalorder %s22, 0
      %p148 = por %p146, %p147
      %p149 = scmp.ne.s32.totalorder %s137, %s138
      %p150 = scmp.eq.s32.totalorder %s23, 1
      %p151 = por %p149, %p150
      %p153 = scmp.ne.s32.totalorder %s138, %s152
      %p154 = scmp.eq.s32.totalorder %s23, 0
      %p155 = por %p153, %p154
      %s156 = ssub.s32 %s17, %s24
      %p157 = scmp.eq.s32.totalorder %s156, 0
      %s159 = sadd.s32 %s158, 1
      %s160 = scalar_select %p157, %s158, %s159
      %p163 = pneg %p157
      %p164 = scmp.eq.s32.totalorder %s17, 1
      %p165 = por %p163, %p164
      %p166 = scmp.ne.s32.totalorder %s158, %s161
      %p167 = scmp.eq.s32.totalorder %s17, 0
      %p168 = por %p166, %p167
      %p169 = scmp.ne.s32.totalorder %s158, %s161
      %p170 = scmp.eq.s32.totalorder %s22, 1
      %p171 = por %p169, %p170
      %p172 = scmp.ne.s32.totalorder %s161, %s162
      %p173 = scmp.eq.s32.totalorder %s22, 0
      %p174 = por %p172, %p173
      %p175 = scmp.ne.s32.totalorder %s161, %s162
      %p176 = scmp.eq.s32.totalorder %s23, 1
      %p177 = por %p175, %p176
      %p179 = scmp.ne.s32.totalorder %s162, %s178
      %p180 = scmp.eq.s32.totalorder %s23, 0
      %p181 = por %p179, %p180
      %p182 = scmp.le.s32.totalorder 1, %s17
      %p183 = scmp.lt.s32.totalorder %s17, 3
      %p184 = pnand %p182, %p183
      %p185 = pneg %p184
      // Predicated region
      $region9: #{tpu_custom_call.1} parent=5 // pred_check
        _
      $region10: #{tpu_custom_call.1} parent=5 // pred_check_branch
        %187 = sbr.rel (%p184) target = $region12
      $region11: #{tpu_custom_call.1} parent=5 // pred_region
        %s188 = ssub.s32 %s17, 1
        // Predicated region
        $region13: #{tpu_custom_call.1} parent=11 // pred_check
          %p189 = pneg %p64
        $region14: #{tpu_custom_call.1} parent=11 // pred_check_branch
          %191 = sbr.rel (%p189) target = $region16
        $region15: #{tpu_custom_call.1} parent=11 // pred_region
          %193 = vsyncadd [#allocation3], 0
          %s195 = sshll.u32 %s1, 4
          %s196 = int_to_ptr.hbm [resolvable:$true] %s195
          %s197 = sshll.u32 [#allocation2], 4
          %s198 = int_to_ptr.vmem [resolvable:$true] %s197
          %200 = dma.hbm_to_vmem [thread:$0]  %s196, 128, %s198, [#allocation3]
        $region16: #{tpu_custom_call.1} parent=11 // pred_fallthru
          _
        // Predicated region
        $region17: #{tpu_custom_call.1} parent=11 // pred_check
          %p201 = pneg %p85
        $region18: #{tpu_custom_call.1} parent=11 // pred_check_branch
          %203 = sbr.rel (%p201) target = $region20
        $region19: #{tpu_custom_call.1} parent=11 // pred_region
          _
        $region20: #{tpu_custom_call.1} parent=11 // pred_fallthru
          _
        // Predicated region
        $region21: #{tpu_custom_call.1} parent=11 // pred_check
          %p204 = pneg %p106
        $region22: #{tpu_custom_call.1} parent=11 // pred_check_branch
          %206 = sbr.rel (%p204) target = $region24
        $region23: #{tpu_custom_call.1} parent=11 // pred_region
          %208 = vsyncadd [#allocation6], 0
          %s209 = sshll.u32 %s3, 4
          %s210 = int_to_ptr.hbm [resolvable:$true] %s209
          %s211 = sshll.u32 [#allocation5], 4
          %s212 = int_to_ptr.vmem [resolvable:$true] %s211
          %217 = dma.hbm_to_vmem [thread:$0]  %s210, 32768, %s212, [#allocation6], 128, 128, 8
        $region24: #{tpu_custom_call.1} parent=11 // pred_fallthru
          _
        // Predicated region
        $region25: #{tpu_custom_call.1} parent=11 // pred_check
          %p218 = pneg %p127
        $region26: #{tpu_custom_call.1} parent=11 // pred_check_branch
          %220 = sbr.rel (%p218) target = $region28
        $region27: #{tpu_custom_call.1} parent=11 // pred_region
          %222 = vsyncadd [#allocation6], 0
          %s223 = sshll.u32 %s4, 4
          %s224 = int_to_ptr.hbm [resolvable:$true] %s223
          %s225 = sshll.u32 [#allocation7], 4
          %s226 = int_to_ptr.vmem [resolvable:$true] %s225
          %231 = dma.hbm_to_vmem [thread:$0]  %s224, 2048, %s226, [#allocation6], 64, 64, 4
        $region28: #{tpu_custom_call.1} parent=11 // pred_fallthru
          _
        // Predicated region
        $region29: #{tpu_custom_call.1} parent=11 // pred_check
          %p232 = pneg %p148
        $region30: #{tpu_custom_call.1} parent=11 // pred_check_branch
          %234 = sbr.rel (%p232) target = $region32
        $region31: #{tpu_custom_call.1} parent=11 // pred_region
          _
        $region32: #{tpu_custom_call.1} parent=11 // pred_fallthru
          _
      $region12: #{tpu_custom_call.1} parent=5 // pred_fallthru
        _
      %p235 = scmp.lt.s32.totalorder %s17, 2
      // Predicated region
      $region33: #{tpu_custom_call.1} parent=5 // pred_check
        %p236 = pneg %p235
      $region34: #{tpu_custom_call.1} parent=5 // pred_check_branch
        %238 = sbr.rel (%p236) target = $region36
      $region35: #{tpu_custom_call.1} parent=5 // pred_region
        // Predicated region
        $region37: #{tpu_custom_call.1} parent=35 // pred_check
          %p239 = pneg %p37
        $region38: #{tpu_custom_call.1} parent=35 // pred_check_branch
          %241 = sbr.rel (%p239) target = $region40
        $region39: #{tpu_custom_call.1} parent=35 // pred_region
          %s242 = smul.u32 2, %s17
          %p243 = scmp.lt.s32.totalorder %s242, 3
          %s244 = scalar_select %p243, %s242, 3
          %s245 = smul.addr %s244, 8
          %s246 = scalar_lea.vmem %s0, %s245
          %s247 = smul.u32 2, %s17
        $region40: #{tpu_custom_call.1} parent=35 // pred_fallthru
          _
      $region36: #{tpu_custom_call.1} parent=5 // pred_fallthru
        _
      %p248 = scmp.le.s32.totalorder 1, %s17
      %p249 = scmp.lt.s32.totalorder %s17, 3
      %p250 = pnand %p248, %p249
      %p251 = pneg %p250
      // Predicated region
      $region41: #{tpu_custom_call.1} parent=5 // pred_check
        _
      $region42: #{tpu_custom_call.1} parent=5 // pred_check_branch
        %253 = sbr.rel (%p250) target = $region44
      $region43: #{tpu_custom_call.1} parent=5 // pred_region
        %s254 = ssub.s32 %s17, 1
        // Predicated region
        $region45: #{tpu_custom_call.1} parent=43 // pred_check
          %p255 = pneg %p64
        $region46: #{tpu_custom_call.1} parent=43 // pred_check_branch
          %257 = sbr.rel (%p255) target = $region48
        $region47: #{tpu_custom_call.1} parent=43 // pred_region
          %259 = dma.done [#allocation3], 128
        $region48: #{tpu_custom_call.1} parent=43 // pred_fallthru
          _
        // Predicated region
        $region49: #{tpu_custom_call.1} parent=43 // pred_check
          %p260 = pneg %p106
        $region50: #{tpu_custom_call.1} parent=43 // pred_check_branch
          %262 = sbr.rel (%p260) target = $region52
        $region51: #{tpu_custom_call.1} parent=43 // pred_region
          %264 = dma.done [#allocation6], 32768
        $region52: #{tpu_custom_call.1} parent=43 // pred_fallthru
          _
        // Predicated region
        $region53: #{tpu_custom_call.1} parent=43 // pred_check
          %p265 = pneg %p127
        $region54: #{tpu_custom_call.1} parent=43 // pred_check_branch
          %267 = sbr.rel (%p265) target = $region56
        $region55: #{tpu_custom_call.1} parent=43 // pred_region
          %269 = dma.done [#allocation6], 2048
        $region56: #{tpu_custom_call.1} parent=43 // pred_fallthru
          _
        %s270 = smul.u32 2, %s22
        %p271 = scmp.lt.s32.totalorder %s270, 3
        %s272 = scalar_select %p271, %s270, 3
        %s273 = smul.addr %s272, 8
        %s274 = scalar_lea.vmem %s0, %s273
        %p275 = pneg %p43
        %p276 = pneg %p40
        %p277 = pneg %p64
        %p278 = pneg %p61
        %p279 = pneg %p85
        %p280 = pneg %p82
        %p281 = pneg %p106
        %p282 = pneg %p103
        %p283 = pneg %p127
        %p284 = pneg %p124
        %p285 = pneg %p148
        %p286 = pneg %p145
        %p287 = pneg %p174
        %p288 = pneg %p171
        %s289 = sand.u32 %s161, 1
        %s290 = scalar_lea.sflag [#allocation4], %s289
        %s291 = sand.u32 %s161, 1
        %s292 = smul.addr %s291, 16
        %s293 = scalar_lea.vmem [#allocation8], %s292
        %s294 = smul.u32 2, %s22
        %p295 = scmp.lt.s32.totalorder %s294, 3
        %s296 = scalar_select %p295, %s294, 3
        %s297 = smul.addr %s296, 8
        %s298 = scalar_lea.vmem %s0, %s297
        %s299 = smul.u32 2, %s22
        %s300 = smul.u32 2, %s22
        %v301 = vld [vmem:[%s298] sm:$0xff]
        %v302 = vld [vmem:[%s298 + $0x8] sm:$0xff]
        %v303 = vld [vmem:[#allocation2] sm:$0x77]
        %v304 = vld [vmem:[%s2] sm:$0xff]
        %v305 = vld [vmem:[%s2 + $0x8] sm:$0xff]
        %v306 = vld [vmem:[%s2 + $0x10] sm:$0x1]
        %v307 = vld [vmem:[%s2 + $0x18] sm:$0x1]
        %309 = vset.pattern.permute.xlu0 0
        %310 = vperm.xlu0 %309, %v301
        %v311 = vpop.permute.xlu0 %310
        %314 = vset.pattern.permute.xlu0 0
        %315 = vperm.xlu0 %314, %v302
        %v316 = vpop.permute.xlu0 %315
        %v319 = vperm.slane %v303, 0
        %v320 = vperm.slane %v303, 4
        %v323 = vperm.slane %v319, 0
        %v324 = vperm.slane %v320, 0
        %v325 = vmul.f32 %v311, %v323
        %v326 = vmul.f32 %v311, %v324
        %v327 = vmul.f32 %v316, %v323
        %v328 = vmul.f32 %v316, %v324
        %v329 = vperm.slane %v304, 0
        %v330 = vperm.slane %v305, 0
        %v331 = vadd.f32 %v325, %v329
        %v332 = vadd.f32 %v326, %v330
        %v333 = vadd.f32 %v327, %v329
        %v334 = vadd.f32 %v328, %v330
        %vm335 = vcmp.ge.f32.partialorder %v331, 0.0
        %vm336 = vcmp.ge.f32.partialorder %v332, 0.0
        %vm337 = vcmp.ge.f32.partialorder %v333, 0.0
        %vm338 = vcmp.ge.f32.partialorder %v334, 0.0
        %v339 = vmul.f32 %v331, 0.01
        %v340 = vmul.f32 %v332, 0.01
        %v341 = vmul.f32 %v333, 0.01
        %v342 = vmul.f32 %v334, 0.01
        %v343 = vsel %vm335, %v331, %v339
        %v344 = vsel %vm336, %v332, %v340
        %v345 = vsel %vm337, %v333, %v341
        %v346 = vsel %vm338, %v334, %v342
        %v347 = vpack.c.bf16 %v345, %v343
        %v348 = vpack.c.bf16 %v346, %v344
        %v349 = vld [vmem:[#allocation5] sm:$0xff]
        %v350 = vld [vmem:[#allocation5 + $0x8] sm:$0xff]
        %v351 = vld [vmem:[#allocation5 + $0x10] sm:$0xff]
        %v352 = vld [vmem:[#allocation5 + $0x18] sm:$0xff]
        %v353 = vld [vmem:[#allocation5 + $0x20] sm:$0xff]
        %v354 = vld [vmem:[#allocation5 + $0x28] sm:$0xff]
        %v355 = vld [vmem:[#allocation5 + $0x30] sm:$0xff]
        %v356 = vld [vmem:[#allocation5 + $0x38] sm:$0xff]
        %v357 = vld [vmem:[#allocation5 + $0x40] sm:$0xff]
        %v358 = vld [vmem:[#allocation5 + $0x48] sm:$0xff]
        %v359 = vld [vmem:[#allocation5 + $0x50] sm:$0xff]
        %v360 = vld [vmem:[#allocation5 + $0x58] sm:$0xff]
        %v361 = vld [vmem:[#allocation5 + $0x60] sm:$0xff]
        %v362 = vld [vmem:[#allocation5 + $0x68] sm:$0xff]
        %v363 = vld [vmem:[#allocation5 + $0x70] sm:$0xff]
        %v364 = vld [vmem:[#allocation5 + $0x78] sm:$0xff]
        %v365 = vld [vmem:[#allocation5 + $0x80] sm:$0xff]
        %v366 = vld [vmem:[#allocation5 + $0x88] sm:$0xff]
        %v367 = vld [vmem:[#allocation5 + $0x90] sm:$0xff]
        %v368 = vld [vmem:[#allocation5 + $0x98] sm:$0xff]
        %v369 = vld [vmem:[#allocation5 + $0xa0] sm:$0xff]
        %v370 = vld [vmem:[#allocation5 + $0xa8] sm:$0xff]
        %v371 = vld [vmem:[#allocation5 + $0xb0] sm:$0xff]
        %v372 = vld [vmem:[#allocation5 + $0xb8] sm:$0xff]
        %v373 = vld [vmem:[#allocation5 + $0xc0] sm:$0xff]
        %v374 = vld [vmem:[#allocation5 + $0xc8] sm:$0xff]
        %v375 = vld [vmem:[#allocation5 + $0xd0] sm:$0xff]
        %v376 = vld [vmem:[#allocation5 + $0xd8] sm:$0xff]
        %v377 = vld [vmem:[#allocation5 + $0xe0] sm:$0xff]
        %v378 = vld [vmem:[#allocation5 + $0xe8] sm:$0xff]
        %v379 = vld [vmem:[#allocation5 + $0xf0] sm:$0xff]
        %v380 = vld [vmem:[#allocation5 + $0xf8] sm:$0xff]
        %v381 = vperm.slane %v304, 1
        %v382 = vperm.slane %v305, 1
        %v415 = vunpack.c.l.b16 %v349
        %v416 = vunpack.c.h.b16 %v349
        %v417 = vunpack.c.l.b16 %v350
        %v418 = vunpack.c.h.b16 %v350
        %v419 = vunpack.c.l.b16 %v351
        %v420 = vunpack.c.h.b16 %v351
        %v421 = vunpack.c.l.b16 %v352
        %v422 = vunpack.c.h.b16 %v352
        %v423 = vunpack.c.l.b16 %v353
        %v424 = vunpack.c.h.b16 %v353
        %v425 = vunpack.c.l.b16 %v354
        %v426 = vunpack.c.h.b16 %v354
        %v427 = vunpack.c.l.b16 %v355
        %v428 = vunpack.c.h.b16 %v355
        %v429 = vunpack.c.l.b16 %v356
        %v430 = vunpack.c.h.b16 %v356
        %v431 = vunpack.c.l.b16 %v357
        %v432 = vunpack.c.h.b16 %v357
        %v433 = vunpack.c.l.b16 %v358
        %v434 = vunpack.c.h.b16 %v358
        %v435 = vunpack.c.l.b16 %v359
        %v436 = vunpack.c.h.b16 %v359
        %v437 = vunpack.c.l.b16 %v360
        %v438 = vunpack.c.h.b16 %v360
        %v439 = vunpack.c.l.b16 %v361
        %v440 = vunpack.c.h.b16 %v361
        %v441 = vunpack.c.l.b16 %v362
        %v442 = vunpack.c.h.b16 %v362
        %v443 = vunpack.c.l.b16 %v363
        %v444 = vunpack.c.h.b16 %v363
        %v445 = vunpack.c.l.b16 %v364
        %v446 = vunpack.c.h.b16 %v364
        %v447 = vunpack.c.l.b16 %v365
        %v448 = vunpack.c.h.b16 %v365
        %v449 = vunpack.c.l.b16 %v366
        %v450 = vunpack.c.h.b16 %v366
        %v451 = vunpack.c.l.b16 %v367
        %v452 = vunpack.c.h.b16 %v367
        %v453 = vunpack.c.l.b16 %v368
        %v454 = vunpack.c.h.b16 %v368
        %v455 = vunpack.c.l.b16 %v369
        %v456 = vunpack.c.h.b16 %v369
        %v457 = vunpack.c.l.b16 %v370
        %v458 = vunpack.c.h.b16 %v370
        %v459 = vunpack.c.l.b16 %v371
        %v460 = vunpack.c.h.b16 %v371
        %v461 = vunpack.c.l.b16 %v372
        %v462 = vunpack.c.h.b16 %v372
        %v463 = vunpack.c.l.b16 %v373
        %v464 = vunpack.c.h.b16 %v373
        %v465 = vunpack.c.l.b16 %v374
        %v466 = vunpack.c.h.b16 %v374
        %v467 = vunpack.c.l.b16 %v375
        %v468 = vunpack.c.h.b16 %v375
        %v469 = vunpack.c.l.b16 %v376
        %v470 = vunpack.c.h.b16 %v376
        %v471 = vunpack.c.l.b16 %v377
        %v472 = vunpack.c.h.b16 %v377
        %v473 = vunpack.c.l.b16 %v378
        %v474 = vunpack.c.h.b16 %v378
        %v475 = vunpack.c.l.b16 %v379
        %v476 = vunpack.c.h.b16 %v379
        %v477 = vunpack.c.l.b16 %v380
        %v478 = vunpack.c.h.b16 %v380
        %v479 = vpack.c.b16 %v417, %v415
        %v480 = vpack.c.b16 %v418, %v416
        %v481 = vpack.c.b16 %v421, %v419
        %v482 = vpack.c.b16 %v422, %v420
        %v483 = vpack.c.b16 %v425, %v423
        %v484 = vpack.c.b16 %v426, %v424
        %v485 = vpack.c.b16 %v429, %v427
        %v486 = vpack.c.b16 %v430, %v428
        %v487 = vpack.c.b16 %v433, %v431
        %v488 = vpack.c.b16 %v434, %v432
        %v489 = vpack.c.b16 %v437, %v435
        %v490 = vpack.c.b16 %v438, %v436
        %v491 = vpack.c.b16 %v441, %v439
        %v492 = vpack.c.b16 %v442, %v440
        %v493 = vpack.c.b16 %v445, %v443
        %v494 = vpack.c.b16 %v446, %v444
        %v495 = vpack.c.b16 %v449, %v447
        %v496 = vpack.c.b16 %v450, %v448
        %v497 = vpack.c.b16 %v453, %v451
        %v498 = vpack.c.b16 %v454, %v452
        %v499 = vpack.c.b16 %v457, %v455
        %v500 = vpack.c.b16 %v458, %v456
        %v501 = vpack.c.b16 %v461, %v459
        %v502 = vpack.c.b16 %v462, %v460
        %v503 = vpack.c.b16 %v465, %v463
        %v504 = vpack.c.b16 %v466, %v464
        %v505 = vpack.c.b16 %v469, %v467
        %v506 = vpack.c.b16 %v470, %v468
        %v507 = vpack.c.b16 %v473, %v471
        %v508 = vpack.c.b16 %v474, %v472
        %v509 = vpack.c.b16 %v477, %v475
        %v510 = vpack.c.b16 %v478, %v476
        %543 = vmatpush.bf16.msra.mxu0 %v493
        %544 = vmatpush.bf16.msra.mxu0 %v491
        %545 = vmatpush.bf16.msra.mxu0 %v489
        %546 = vmatpush.bf16.msra.mxu0 %v487
        %547 = vmatpush.bf16.msra.mxu0 %v485
        %548 = vmatpush.bf16.msra.mxu0 %v483
        %549 = vmatpush.bf16.msra.mxu0 %v481
        %550 = vmatpush.bf16.msra.mxu0 %v479
        %551 = vmatmul.bf16.gmra.mxu0 %v347
        %v552 = vpop.f32.mrf.mxu0
        %v553 = vadd.f32 %v381, %v552
        %v554 = vpop.f32.mrf.mxu0
        %v555 = vadd.f32 %v381, %v554
        %556 = vdwg.mxu0
        %557 = vmatpush.bf16.msra.mxu0 %v509
        %558 = vmatpush.bf16.msra.mxu0 %v507
        %559 = vmatpush.bf16.msra.mxu0 %v505
        %560 = vmatpush.bf16.msra.mxu0 %v503
        %561 = vmatpush.bf16.msra.mxu0 %v501
        %562 = vmatpush.bf16.msra.mxu0 %v499
        %563 = vmatpush.bf16.msra.mxu0 %v497
        %564 = vmatpush.bf16.msra.mxu0 %v495
        %565 = vmatmul.bf16.gmra.mxu0 %v348
        %v566 = vpop.f32.mrf.mxu0
        %v567 = vadd.f32 %v553, %v566
        %v568 = vpop.f32.mrf.mxu0
        %v569 = vadd.f32 %v555, %v568
        %570 = vdwg.mxu0
        %571 = vmatpush.bf16.msra.mxu0 %v494
        %572 = vmatpush.bf16.msra.mxu0 %v492
        %573 = vmatpush.bf16.msra.mxu0 %v490
        %574 = vmatpush.bf16.msra.mxu0 %v488
        %575 = vmatpush.bf16.msra.mxu0 %v486
        %576 = vmatpush.bf16.msra.mxu0 %v484
        %577 = vmatpush.bf16.msra.mxu0 %v482
        %578 = vmatpush.bf16.msra.mxu0 %v480
        %579 = vmatmul.bf16.gmra.mxu0 %v347
        %v580 = vpop.f32.mrf.mxu0
        %v581 = vadd.f32 %v382, %v580
        %v582 = vpop.f32.mrf.mxu0
        %v583 = vadd.f32 %v382, %v582
        %584 = vdwg.mxu0
        %585 = vmatpush.bf16.msra.mxu0 %v510
        %586 = vmatpush.bf16.msra.mxu0 %v508
        %587 = vmatpush.bf16.msra.mxu0 %v506
        %588 = vmatpush.bf16.msra.mxu0 %v504
        %589 = vmatpush.bf16.msra.mxu0 %v502
        %590 = vmatpush.bf16.msra.mxu0 %v500
        %591 = vmatpush.bf16.msra.mxu0 %v498
        %592 = vmatpush.bf16.msra.mxu0 %v496
        %593 = vmatmul.bf16.gmra.mxu0 %v348
        %v594 = vpop.f32.mrf.mxu0
        %v595 = vadd.f32 %v581, %v594
        %v596 = vpop.f32.mrf.mxu0
        %v597 = vadd.f32 %v583, %v596
        %598 = vdwg.mxu0
        %599 = vset.pattern.permute.xlu0 1
        %600 = vperm.xlu0 %599, %v301
        %v601 = vpop.permute.xlu0 %600
        %603 = vset.pattern.permute.xlu0 1
        %604 = vperm.xlu0 %603, %v302
        %v605 = vpop.permute.xlu0 %604
        %v607 = vperm.slane %v303, 1
        %v608 = vperm.slane %v303, 5
        %v611 = vperm.slane %v607, 1
        %v612 = vperm.slane %v608, 1
        %v613 = vmul.f32 %v601, %v611
        %v614 = vmul.f32 %v601, %v612
        %v615 = vmul.f32 %v605, %v611
        %v616 = vmul.f32 %v605, %v612
        %v617 = vperm.slane %v304, 2
        %v618 = vperm.slane %v305, 2
        %v619 = vadd.f32 %v613, %v617
        %v620 = vadd.f32 %v614, %v618
        %v621 = vadd.f32 %v615, %v617
        %v622 = vadd.f32 %v616, %v618
        %vm623 = vcmp.ge.f32.partialorder %v619, 0.0
        %vm624 = vcmp.ge.f32.partialorder %v620, 0.0
        %vm625 = vcmp.ge.f32.partialorder %v621, 0.0
        %vm626 = vcmp.ge.f32.partialorder %v622, 0.0
        %v627 = vmul.f32 %v619, 0.01
        %v628 = vmul.f32 %v620, 0.01
        %v629 = vmul.f32 %v621, 0.01
        %v630 = vmul.f32 %v622, 0.01
        %v631 = vsel %vm623, %v619, %v627
        %v632 = vsel %vm624, %v620, %v628
        %v633 = vsel %vm625, %v621, %v629
        %v634 = vsel %vm626, %v622, %v630
        %vm635 = vcmp.ge.f32.partialorder %v567, 0.0
        %vm636 = vcmp.ge.f32.partialorder %v595, 0.0
        %vm637 = vcmp.ge.f32.partialorder %v569, 0.0
        %vm638 = vcmp.ge.f32.partialorder %v597, 0.0
        %v639 = vmul.f32 %v567, 0.01
        %v640 = vmul.f32 %v595, 0.01
        %v641 = vmul.f32 %v569, 0.01
        %v642 = vmul.f32 %v597, 0.01
        %v643 = vsel %vm635, %v567, %v639
        %v644 = vsel %vm636, %v595, %v640
        %v645 = vsel %vm637, %v569, %v641
        %v646 = vsel %vm638, %v597, %v642
        %v647 = vpack.c.bf16 %v645, %v643
        %v648 = vpack.c.bf16 %v646, %v644
        %s649 = scalar_lea.vmem [#allocation5], 256
        %v650 = vld [vmem:[%s649] sm:$0xff]
        %v651 = vld [vmem:[%s649 + $0x8] sm:$0xff]
        %v652 = vld [vmem:[%s649 + $0x10] sm:$0xff]
        %v653 = vld [vmem:[%s649 + $0x18] sm:$0xff]
        %v654 = vld [vmem:[%s649 + $0x20] sm:$0xff]
        %v655 = vld [vmem:[%s649 + $0x28] sm:$0xff]
        %v656 = vld [vmem:[%s649 + $0x30] sm:$0xff]
        %v657 = vld [vmem:[%s649 + $0x38] sm:$0xff]
        %v658 = vld [vmem:[%s649 + $0x40] sm:$0xff]
        %v659 = vld [vmem:[%s649 + $0x48] sm:$0xff]
        %v660 = vld [vmem:[%s649 + $0x50] sm:$0xff]
        %v661 = vld [vmem:[%s649 + $0x58] sm:$0xff]
        %v662 = vld [vmem:[%s649 + $0x60] sm:$0xff]
        %v663 = vld [vmem:[%s649 + $0x68] sm:$0xff]
        %v664 = vld [vmem:[%s649 + $0x70] sm:$0xff]
        %v665 = vld [vmem:[%s649 + $0x78] sm:$0xff]
        %v666 = vld [vmem:[%s649 + $0x80] sm:$0xff]
        %v667 = vld [vmem:[%s649 + $0x88] sm:$0xff]
        %v668 = vld [vmem:[%s649 + $0x90] sm:$0xff]
        %v669 = vld [vmem:[%s649 + $0x98] sm:$0xff]
        %v670 = vld [vmem:[%s649 + $0xa0] sm:$0xff]
        %v671 = vld [vmem:[%s649 + $0xa8] sm:$0xff]
        %v672 = vld [vmem:[%s649 + $0xb0] sm:$0xff]
        %v673 = vld [vmem:[%s649 + $0xb8] sm:$0xff]
        %v674 = vld [vmem:[%s649 + $0xc0] sm:$0xff]
        %v675 = vld [vmem:[%s649 + $0xc8] sm:$0xff]
        %v676 = vld [vmem:[%s649 + $0xd0] sm:$0xff]
        %v677 = vld [vmem:[%s649 + $0xd8] sm:$0xff]
        %v678 = vld [vmem:[%s649 + $0xe0] sm:$0xff]
        %v679 = vld [vmem:[%s649 + $0xe8] sm:$0xff]
        %v680 = vld [vmem:[%s649 + $0xf0] sm:$0xff]
        %v681 = vld [vmem:[%s649 + $0xf8] sm:$0xff]
        %v682 = vpack.c.bf16 %v633, %v631
        %v683 = vpack.c.bf16 %v634, %v632
        %s684 = scalar_lea.vmem [#allocation5], 512
        %v685 = vld [vmem:[%s684] sm:$0xff]
        %v686 = vld [vmem:[%s684 + $0x8] sm:$0xff]
        %v687 = vld [vmem:[%s684 + $0x10] sm:$0xff]
        %v688 = vld [vmem:[%s684 + $0x18] sm:$0xff]
        %v689 = vld [vmem:[%s684 + $0x20] sm:$0xff]
        %v690 = vld [vmem:[%s684 + $0x28] sm:$0xff]
        %v691 = vld [vmem:[%s684 + $0x30] sm:$0xff]
        %v692 = vld [vmem:[%s684 + $0x38] sm:$0xff]
        %v693 = vld [vmem:[%s684 + $0x40] sm:$0xff]
        %v694 = vld [vmem:[%s684 + $0x48] sm:$0xff]
        %v695 = vld [vmem:[%s684 + $0x50] sm:$0xff]
        %v696 = vld [vmem:[%s684 + $0x58] sm:$0xff]
        %v697 = vld [vmem:[%s684 + $0x60] sm:$0xff]
        %v698 = vld [vmem:[%s684 + $0x68] sm:$0xff]
        %v699 = vld [vmem:[%s684 + $0x70] sm:$0xff]
        %v700 = vld [vmem:[%s684 + $0x78] sm:$0xff]
        %v701 = vld [vmem:[%s684 + $0x80] sm:$0xff]
        %v702 = vld [vmem:[%s684 + $0x88] sm:$0xff]
        %v703 = vld [vmem:[%s684 + $0x90] sm:$0xff]
        %v704 = vld [vmem:[%s684 + $0x98] sm:$0xff]
        %v705 = vld [vmem:[%s684 + $0xa0] sm:$0xff]
        %v706 = vld [vmem:[%s684 + $0xa8] sm:$0xff]
        %v707 = vld [vmem:[%s684 + $0xb0] sm:$0xff]
        %v708 = vld [vmem:[%s684 + $0xb8] sm:$0xff]
        %v709 = vld [vmem:[%s684 + $0xc0] sm:$0xff]
        %v710 = vld [vmem:[%s684 + $0xc8] sm:$0xff]
        %v711 = vld [vmem:[%s684 + $0xd0] sm:$0xff]
        %v712 = vld [vmem:[%s684 + $0xd8] sm:$0xff]
        %v713 = vld [vmem:[%s684 + $0xe0] sm:$0xff]
        %v714 = vld [vmem:[%s684 + $0xe8] sm:$0xff]
        %v715 = vld [vmem:[%s684 + $0xf0] sm:$0xff]
        %v716 = vld [vmem:[%s684 + $0xf8] sm:$0xff]
        %v749 = vunpack.c.l.b16 %v685
        %v750 = vunpack.c.h.b16 %v685
        %v751 = vunpack.c.l.b16 %v686
        %v752 = vunpack.c.h.b16 %v686
        %v753 = vunpack.c.l.b16 %v687
        %v754 = vunpack.c.h.b16 %v687
        %v755 = vunpack.c.l.b16 %v688
        %v756 = vunpack.c.h.b16 %v688
        %v757 = vunpack.c.l.b16 %v689
        %v758 = vunpack.c.h.b16 %v689
        %v759 = vunpack.c.l.b16 %v690
        %v760 = vunpack.c.h.b16 %v690
        %v761 = vunpack.c.l.b16 %v691
        %v762 = vunpack.c.h.b16 %v691
        %v763 = vunpack.c.l.b16 %v692
        %v764 = vunpack.c.h.b16 %v692
        %v765 = vunpack.c.l.b16 %v693
        %v766 = vunpack.c.h.b16 %v693
        %v767 = vunpack.c.l.b16 %v694
        %v768 = vunpack.c.h.b16 %v694
        %v769 = vunpack.c.l.b16 %v695
        %v770 = vunpack.c.h.b16 %v695
        %v771 = vunpack.c.l.b16 %v696
        %v772 = vunpack.c.h.b16 %v696
        %v773 = vunpack.c.l.b16 %v697
        %v774 = vunpack.c.h.b16 %v697
        %v775 = vunpack.c.l.b16 %v698
        %v776 = vunpack.c.h.b16 %v698
        %v777 = vunpack.c.l.b16 %v699
        %v778 = vunpack.c.h.b16 %v699
        %v779 = vunpack.c.l.b16 %v700
        %v780 = vunpack.c.h.b16 %v700
        %v781 = vunpack.c.l.b16 %v701
        %v782 = vunpack.c.h.b16 %v701
        %v783 = vunpack.c.l.b16 %v702
        %v784 = vunpack.c.h.b16 %v702
        %v785 = vunpack.c.l.b16 %v703
        %v786 = vunpack.c.h.b16 %v703
        %v787 = vunpack.c.l.b16 %v704
        %v788 = vunpack.c.h.b16 %v704
        %v789 = vunpack.c.l.b16 %v705
        %v790 = vunpack.c.h.b16 %v705
        %v791 = vunpack.c.l.b16 %v706
        %v792 = vunpack.c.h.b16 %v706
        %v793 = vunpack.c.l.b16 %v707
        %v794 = vunpack.c.h.b16 %v707
        %v795 = vunpack.c.l.b16 %v708
        %v796 = vunpack.c.h.b16 %v708
        %v797 = vunpack.c.l.b16 %v709
        %v798 = vunpack.c.h.b16 %v709
        %v799 = vunpack.c.l.b16 %v710
        %v800 = vunpack.c.h.b16 %v710
        %v801 = vunpack.c.l.b16 %v711
        %v802 = vunpack.c.h.b16 %v711
        %v803 = vunpack.c.l.b16 %v712
        %v804 = vunpack.c.h.b16 %v712
        %v805 = vunpack.c.l.b16 %v713
        %v806 = vunpack.c.h.b16 %v713
        %v807 = vunpack.c.l.b16 %v714
        %v808 = vunpack.c.h.b16 %v714
        %v809 = vunpack.c.l.b16 %v715
        %v810 = vunpack.c.h.b16 %v715
        %v811 = vunpack.c.l.b16 %v716
        %v812 = vunpack.c.h.b16 %v716
        %v813 = vpack.c.b16 %v751, %v749
        %v814 = vpack.c.b16 %v752, %v750
        %v815 = vpack.c.b16 %v755, %v753
        %v816 = vpack.c.b16 %v756, %v754
        %v817 = vpack.c.b16 %v759, %v757
        %v818 = vpack.c.b16 %v760, %v758
        %v819 = vpack.c.b16 %v763, %v761
        %v820 = vpack.c.b16 %v764, %v762
        %v821 = vpack.c.b16 %v767, %v765
        %v822 = vpack.c.b16 %v768, %v766
        %v823 = vpack.c.b16 %v771, %v769
        %v824 = vpack.c.b16 %v772, %v770
        %v825 = vpack.c.b16 %v775, %v773
        %v826 = vpack.c.b16 %v776, %v774
        %v827 = vpack.c.b16 %v779, %v777
        %v828 = vpack.c.b16 %v780, %v778
        %v829 = vpack.c.b16 %v783, %v781
        %v830 = vpack.c.b16 %v784, %v782
        %v831 = vpack.c.b16 %v787, %v785
        %v832 = vpack.c.b16 %v788, %v786
        %v833 = vpack.c.b16 %v791, %v789
        %v834 = vpack.c.b16 %v792, %v790
        %v835 = vpack.c.b16 %v795, %v793
        %v836 = vpack.c.b16 %v796, %v794
        %v837 = vpack.c.b16 %v799, %v797
        %v838 = vpack.c.b16 %v800, %v798
        %v839 = vpack.c.b16 %v803, %v801
        %v840 = vpack.c.b16 %v804, %v802
        %v841 = vpack.c.b16 %v807, %v805
        %v842 = vpack.c.b16 %v808, %v806
        %v843 = vpack.c.b16 %v811, %v809
        %v844 = vpack.c.b16 %v812, %v810
        %877 = vmatpush.bf16.msra.mxu0 %v827
        %878 = vmatpush.bf16.msra.mxu0 %v825
        %879 = vmatpush.bf16.msra.mxu0 %v823
        %880 = vmatpush.bf16.msra.mxu0 %v821
        %881 = vmatpush.bf16.msra.mxu0 %v819
        %882 = vmatpush.bf16.msra.mxu0 %v817
        %883 = vmatpush.bf16.msra.mxu0 %v815
        %884 = vmatpush.bf16.msra.mxu0 %v813
        %885 = vmatmul.bf16.gmra.mxu0 %v682
        %v886 = vpop.f32.mrf.mxu0
        %v887 = vadd.f32 0.0, %v886
        %v888 = vpop.f32.mrf.mxu0
        %v889 = vadd.f32 0.0, %v888
        %890 = vdwg.mxu0
        %891 = vmatpush.bf16.msra.mxu0 %v843
        %892 = vmatpush.bf16.msra.mxu0 %v841
        %893 = vmatpush.bf16.msra.mxu0 %v839
        %894 = vmatpush.bf16.msra.mxu0 %v837
        %895 = vmatpush.bf16.msra.mxu0 %v835
        %896 = vmatpush.bf16.msra.mxu0 %v833
        %897 = vmatpush.bf16.msra.mxu0 %v831
        %898 = vmatpush.bf16.msra.mxu0 %v829
        %899 = vmatmul.bf16.gmra.mxu0 %v683
        %v900 = vpop.f32.mrf.mxu0
        %v901 = vadd.f32 %v887, %v900
        %v902 = vpop.f32.mrf.mxu0
        %v903 = vadd.f32 %v889, %v902
        %904 = vdwg.mxu0
        %905 = vmatpush.bf16.msra.mxu0 %v828
        %906 = vmatpush.bf16.msra.mxu0 %v826
        %907 = vmatpush.bf16.msra.mxu0 %v824
        %908 = vmatpush.bf16.msra.mxu0 %v822
        %909 = vmatpush.bf16.msra.mxu0 %v820
        %910 = vmatpush.bf16.msra.mxu0 %v818
        %911 = vmatpush.bf16.msra.mxu0 %v816
        %912 = vmatpush.bf16.msra.mxu0 %v814
        %913 = vmatmul.bf16.gmra.mxu0 %v682
        %v914 = vpop.f32.mrf.mxu0
        %v915 = vadd.f32 0.0, %v914
        %v916 = vpop.f32.mrf.mxu0
        %v917 = vadd.f32 0.0, %v916
        %918 = vdwg.mxu0
        %919 = vmatpush.bf16.msra.mxu0 %v844
        %920 = vmatpush.bf16.msra.mxu0 %v842
        %921 = vmatpush.bf16.msra.mxu0 %v840
        %922 = vmatpush.bf16.msra.mxu0 %v838
        %923 = vmatpush.bf16.msra.mxu0 %v836
        %924 = vmatpush.bf16.msra.mxu0 %v834
        %925 = vmatpush.bf16.msra.mxu0 %v832
        %926 = vmatpush.bf16.msra.mxu0 %v830
        %927 = vmatmul.bf16.gmra.mxu0 %v683
        %v928 = vpop.f32.mrf.mxu0
        %v929 = vadd.f32 %v915, %v928
        %v930 = vpop.f32.mrf.mxu0
        %v931 = vadd.f32 %v917, %v930
        %932 = vdwg.mxu0
        %v965 = vunpack.c.l.b16 %v650
        %v966 = vunpack.c.h.b16 %v650
        %v967 = vunpack.c.l.b16 %v651
        %v968 = vunpack.c.h.b16 %v651
        %v969 = vunpack.c.l.b16 %v652
        %v970 = vunpack.c.h.b16 %v652
        %v971 = vunpack.c.l.b16 %v653
        %v972 = vunpack.c.h.b16 %v653
        %v973 = vunpack.c.l.b16 %v654
        %v974 = vunpack.c.h.b16 %v654
        %v975 = vunpack.c.l.b16 %v655
        %v976 = vunpack.c.h.b16 %v655
        %v977 = vunpack.c.l.b16 %v656
        %v978 = vunpack.c.h.b16 %v656
        %v979 = vunpack.c.l.b16 %v657
        %v980 = vunpack.c.h.b16 %v657
        %v981 = vunpack.c.l.b16 %v658
        %v982 = vunpack.c.h.b16 %v658
        %v983 = vunpack.c.l.b16 %v659
        %v984 = vunpack.c.h.b16 %v659
        %v985 = vunpack.c.l.b16 %v660
        %v986 = vunpack.c.h.b16 %v660
        %v987 = vunpack.c.l.b16 %v661
        %v988 = vunpack.c.h.b16 %v661
        %v989 = vunpack.c.l.b16 %v662
        %v990 = vunpack.c.h.b16 %v662
        %v991 = vunpack.c.l.b16 %v663
        %v992 = vunpack.c.h.b16 %v663
        %v993 = vunpack.c.l.b16 %v664
        %v994 = vunpack.c.h.b16 %v664
        %v995 = vunpack.c.l.b16 %v665
        %v996 = vunpack.c.h.b16 %v665
        %v997 = vunpack.c.l.b16 %v666
        %v998 = vunpack.c.h.b16 %v666
        %v999 = vunpack.c.l.b16 %v667
        %v1000 = vunpack.c.h.b16 %v667
        %v1001 = vunpack.c.l.b16 %v668
        %v1002 = vunpack.c.h.b16 %v668
        %v1003 = vunpack.c.l.b16 %v669
        %v1004 = vunpack.c.h.b16 %v669
        %v1005 = vunpack.c.l.b16 %v670
        %v1006 = vunpack.c.h.b16 %v670
        %v1007 = vunpack.c.l.b16 %v671
        %v1008 = vunpack.c.h.b16 %v671
        %v1009 = vunpack.c.l.b16 %v672
        %v1010 = vunpack.c.h.b16 %v672
        %v1011 = vunpack.c.l.b16 %v673
        %v1012 = vunpack.c.h.b16 %v673
        %v1013 = vunpack.c.l.b16 %v674
        %v1014 = vunpack.c.h.b16 %v674
        %v1015 = vunpack.c.l.b16 %v675
        %v1016 = vunpack.c.h.b16 %v675
        %v1017 = vunpack.c.l.b16 %v676
        %v1018 = vunpack.c.h.b16 %v676
        %v1019 = vunpack.c.l.b16 %v677
        %v1020 = vunpack.c.h.b16 %v677
        %v1021 = vunpack.c.l.b16 %v678
        %v1022 = vunpack.c.h.b16 %v678
        %v1023 = vunpack.c.l.b16 %v679
        %v1024 = vunpack.c.h.b16 %v679
        %v1025 = vunpack.c.l.b16 %v680
        %v1026 = vunpack.c.h.b16 %v680
        %v1027 = vunpack.c.l.b16 %v681
        %v1028 = vunpack.c.h.b16 %v681
        %v1029 = vpack.c.b16 %v967, %v965
        %v1030 = vpack.c.b16 %v968, %v966
        %v1031 = vpack.c.b16 %v971, %v969
        %v1032 = vpack.c.b16 %v972, %v970
        %v1033 = vpack.c.b16 %v975, %v973
        %v1034 = vpack.c.b16 %v976, %v974
        %v1035 = vpack.c.b16 %v979, %v977
        %v1036 = vpack.c.b16 %v980, %v978
        %v1037 = vpack.c.b16 %v983, %v981
        %v1038 = vpack.c.b16 %v984, %v982
        %v1039 = vpack.c.b16 %v987, %v985
        %v1040 = vpack.c.b16 %v988, %v986
        %v1041 = vpack.c.b16 %v991, %v989
        %v1042 = vpack.c.b16 %v992, %v990
        %v1043 = vpack.c.b16 %v995, %v993
        %v1044 = vpack.c.b16 %v996, %v994
        %v1045 = vpack.c.b16 %v999, %v997
        %v1046 = vpack.c.b16 %v1000, %v998
        %v1047 = vpack.c.b16 %v1003, %v1001
        %v1048 = vpack.c.b16 %v1004, %v1002
        %v1049 = vpack.c.b16 %v1007, %v1005
        %v1050 = vpack.c.b16 %v1008, %v1006
        %v1051 = vpack.c.b16 %v1011, %v1009
        %v1052 = vpack.c.b16 %v1012, %v1010
        %v1053 = vpack.c.b16 %v1015, %v1013
        %v1054 = vpack.c.b16 %v1016, %v1014
        %v1055 = vpack.c.b16 %v1019, %v1017
        %v1056 = vpack.c.b16 %v1020, %v1018
        %v1057 = vpack.c.b16 %v1023, %v1021
        %v1058 = vpack.c.b16 %v1024, %v1022
        %v1059 = vpack.c.b16 %v1027, %v1025
        %v1060 = vpack.c.b16 %v1028, %v1026
        %1093 = vmatpush.bf16.msra.mxu0 %v1043
        %1094 = vmatpush.bf16.msra.mxu0 %v1041
        %1095 = vmatpush.bf16.msra.mxu0 %v1039
        %1096 = vmatpush.bf16.msra.mxu0 %v1037
        %1097 = vmatpush.bf16.msra.mxu0 %v1035
        %1098 = vmatpush.bf16.msra.mxu0 %v1033
        %1099 = vmatpush.bf16.msra.mxu0 %v1031
        %1100 = vmatpush.bf16.msra.mxu0 %v1029
        %1101 = vmatmul.bf16.gmra.mxu0 %v647
        %v1102 = vpop.f32.mrf.mxu0
        %v1103 = vadd.f32 %v901, %v1102
        %v1104 = vpop.f32.mrf.mxu0
        %v1105 = vadd.f32 %v903, %v1104
        %1106 = vdwg.mxu0
        %1107 = vmatpush.bf16.msra.mxu0 %v1059
        %1108 = vmatpush.bf16.msra.mxu0 %v1057
        %1109 = vmatpush.bf16.msra.mxu0 %v1055
        %1110 = vmatpush.bf16.msra.mxu0 %v1053
        %1111 = vmatpush.bf16.msra.mxu0 %v1051
        %1112 = vmatpush.bf16.msra.mxu0 %v1049
        %1113 = vmatpush.bf16.msra.mxu0 %v1047
        %1114 = vmatpush.bf16.msra.mxu0 %v1045
        %1115 = vmatmul.bf16.gmra.mxu0 %v648
        %v1116 = vpop.f32.mrf.mxu0
        %v1117 = vadd.f32 %v1103, %v1116
        %v1118 = vpop.f32.mrf.mxu0
        %v1119 = vadd.f32 %v1105, %v1118
        %1120 = vdwg.mxu0
        %1121 = vmatpush.bf16.msra.mxu0 %v1044
        %1122 = vmatpush.bf16.msra.mxu0 %v1042
        %1123 = vmatpush.bf16.msra.mxu0 %v1040
        %1124 = vmatpush.bf16.msra.mxu0 %v1038
        %1125 = vmatpush.bf16.msra.mxu0 %v1036
        %1126 = vmatpush.bf16.msra.mxu0 %v1034
        %1127 = vmatpush.bf16.msra.mxu0 %v1032
        %1128 = vmatpush.bf16.msra.mxu0 %v1030
        %1129 = vmatmul.bf16.gmra.mxu0 %v647
        %v1130 = vpop.f32.mrf.mxu0
        %v1131 = vadd.f32 %v929, %v1130
        %v1132 = vpop.f32.mrf.mxu0
        %v1133 = vadd.f32 %v931, %v1132
        %1134 = vdwg.mxu0
        %1135 = vmatpush.bf16.msra.mxu0 %v1060
        %1136 = vmatpush.bf16.msra.mxu0 %v1058
        %1137 = vmatpush.bf16.msra.mxu0 %v1056
        %1138 = vmatpush.bf16.msra.mxu0 %v1054
        %1139 = vmatpush.bf16.msra.mxu0 %v1052
        %1140 = vmatpush.bf16.msra.mxu0 %v1050
        %1141 = vmatpush.bf16.msra.mxu0 %v1048
        %1142 = vmatpush.bf16.msra.mxu0 %v1046
        %1143 = vmatmul.bf16.gmra.mxu0 %v648
        %v1144 = vpop.f32.mrf.mxu0
        %v1145 = vadd.f32 %v1131, %v1144
        %v1146 = vpop.f32.mrf.mxu0
        %v1147 = vadd.f32 %v1133, %v1146
        %1148 = vdwg.mxu0
        %v1149 = vperm.slane %v304, 3
        %v1150 = vperm.slane %v305, 3
        %v1151 = vadd.f32 %v1117, %v1149
        %v1152 = vadd.f32 %v1145, %v1150
        %v1153 = vadd.f32 %v1119, %v1149
        %v1154 = vadd.f32 %v1147, %v1150
        %1155 = vset.pattern.permute.xlu0 2
        %1156 = vperm.xlu0 %1155, %v301
        %v1157 = vpop.permute.xlu0 %1156
        %1159 = vset.pattern.permute.xlu0 2
        %1160 = vperm.xlu0 %1159, %v302
        %v1161 = vpop.permute.xlu0 %1160
        %v1163 = vperm.slane %v303, 2
        %v1164 = vperm.slane %v303, 6
        %v1167 = vperm.slane %v1163, 2
        %v1168 = vperm.slane %v1164, 2
        %v1169 = vmul.f32 %v1157, %v1167
        %v1170 = vmul.f32 %v1157, %v1168
        %v1171 = vmul.f32 %v1161, %v1167
        %v1172 = vmul.f32 %v1161, %v1168
        %v1173 = vperm.slane %v304, 4
        %v1174 = vperm.slane %v305, 4
        %v1175 = vadd.f32 %v1169, %v1173
        %v1176 = vadd.f32 %v1170, %v1174
        %v1177 = vadd.f32 %v1171, %v1173
        %v1178 = vadd.f32 %v1172, %v1174
        %vm1179 = vcmp.ge.f32.partialorder %v1175, 0.0
        %vm1180 = vcmp.ge.f32.partialorder %v1176, 0.0
        %vm1181 = vcmp.ge.f32.partialorder %v1177, 0.0
        %vm1182 = vcmp.ge.f32.partialorder %v1178, 0.0
        %v1183 = vmul.f32 %v1175, 0.01
        %v1184 = vmul.f32 %v1176, 0.01
        %v1185 = vmul.f32 %v1177, 0.01
        %v1186 = vmul.f32 %v1178, 0.01
        %v1187 = vsel %vm1179, %v1175, %v1183
        %v1188 = vsel %vm1180, %v1176, %v1184
        %v1189 = vsel %vm1181, %v1177, %v1185
        %v1190 = vsel %vm1182, %v1178, %v1186
        %vm1191 = vcmp.ge.f32.partialorder %v1151, 0.0
        %vm1192 = vcmp.ge.f32.partialorder %v1152, 0.0
        %vm1193 = vcmp.ge.f32.partialorder %v1153, 0.0
        %vm1194 = vcmp.ge.f32.partialorder %v1154, 0.0
        %v1195 = vmul.f32 %v1151, 0.01
        %v1196 = vmul.f32 %v1152, 0.01
        %v1197 = vmul.f32 %v1153, 0.01
        %v1198 = vmul.f32 %v1154, 0.01
        %v1199 = vsel %vm1191, %v1151, %v1195
        %v1200 = vsel %vm1192, %v1152, %v1196
        %v1201 = vsel %vm1193, %v1153, %v1197
        %v1202 = vsel %vm1194, %v1154, %v1198
        %v1203 = vpack.c.bf16 %v1201, %v1199
        %v1204 = vpack.c.bf16 %v1202, %v1200
        %s1205 = scalar_lea.vmem [#allocation5], 768
        %v1206 = vld [vmem:[%s1205] sm:$0xff]
        %v1207 = vld [vmem:[%s1205 + $0x8] sm:$0xff]
        %v1208 = vld [vmem:[%s1205 + $0x10] sm:$0xff]
        %v1209 = vld [vmem:[%s1205 + $0x18] sm:$0xff]
        %v1210 = vld [vmem:[%s1205 + $0x20] sm:$0xff]
        %v1211 = vld [vmem:[%s1205 + $0x28] sm:$0xff]
        %v1212 = vld [vmem:[%s1205 + $0x30] sm:$0xff]
        %v1213 = vld [vmem:[%s1205 + $0x38] sm:$0xff]
        %v1214 = vld [vmem:[%s1205 + $0x40] sm:$0xff]
        %v1215 = vld [vmem:[%s1205 + $0x48] sm:$0xff]
        %v1216 = vld [vmem:[%s1205 + $0x50] sm:$0xff]
        %v1217 = vld [vmem:[%s1205 + $0x58] sm:$0xff]
        %v1218 = vld [vmem:[%s1205 + $0x60] sm:$0xff]
        %v1219 = vld [vmem:[%s1205 + $0x68] sm:$0xff]
        %v1220 = vld [vmem:[%s1205 + $0x70] sm:$0xff]
        %v1221 = vld [vmem:[%s1205 + $0x78] sm:$0xff]
        %v1222 = vld [vmem:[%s1205 + $0x80] sm:$0xff]
        %v1223 = vld [vmem:[%s1205 + $0x88] sm:$0xff]
        %v1224 = vld [vmem:[%s1205 + $0x90] sm:$0xff]
        %v1225 = vld [vmem:[%s1205 + $0x98] sm:$0xff]
        %v1226 = vld [vmem:[%s1205 + $0xa0] sm:$0xff]
        %v1227 = vld [vmem:[%s1205 + $0xa8] sm:$0xff]
        %v1228 = vld [vmem:[%s1205 + $0xb0] sm:$0xff]
        %v1229 = vld [vmem:[%s1205 + $0xb8] sm:$0xff]
        %v1230 = vld [vmem:[%s1205 + $0xc0] sm:$0xff]
        %v1231 = vld [vmem:[%s1205 + $0xc8] sm:$0xff]
        %v1232 = vld [vmem:[%s1205 + $0xd0] sm:$0xff]
        %v1233 = vld [vmem:[%s1205 + $0xd8] sm:$0xff]
        %v1234 = vld [vmem:[%s1205 + $0xe0] sm:$0xff]
        %v1235 = vld [vmem:[%s1205 + $0xe8] sm:$0xff]
        %v1236 = vld [vmem:[%s1205 + $0xf0] sm:$0xff]
        %v1237 = vld [vmem:[%s1205 + $0xf8] sm:$0xff]
        %v1238 = vpack.c.bf16 %v1189, %v1187
        %v1239 = vpack.c.bf16 %v1190, %v1188
        %s1240 = scalar_lea.vmem [#allocation5], 1024
        %v1241 = vld [vmem:[%s1240] sm:$0xff]
        %v1242 = vld [vmem:[%s1240 + $0x8] sm:$0xff]
        %v1243 = vld [vmem:[%s1240 + $0x10] sm:$0xff]
        %v1244 = vld [vmem:[%s1240 + $0x18] sm:$0xff]
        %v1245 = vld [vmem:[%s1240 + $0x20] sm:$0xff]
        %v1246 = vld [vmem:[%s1240 + $0x28] sm:$0xff]
        %v1247 = vld [vmem:[%s1240 + $0x30] sm:$0xff]
        %v1248 = vld [vmem:[%s1240 + $0x38] sm:$0xff]
        %v1249 = vld [vmem:[%s1240 + $0x40] sm:$0xff]
        %v1250 = vld [vmem:[%s1240 + $0x48] sm:$0xff]
        %v1251 = vld [vmem:[%s1240 + $0x50] sm:$0xff]
        %v1252 = vld [vmem:[%s1240 + $0x58] sm:$0xff]
        %v1253 = vld [vmem:[%s1240 + $0x60] sm:$0xff]
        %v1254 = vld [vmem:[%s1240 + $0x68] sm:$0xff]
        %v1255 = vld [vmem:[%s1240 + $0x70] sm:$0xff]
        %v1256 = vld [vmem:[%s1240 + $0x78] sm:$0xff]
        %v1257 = vld [vmem:[%s1240 + $0x80] sm:$0xff]
        %v1258 = vld [vmem:[%s1240 + $0x88] sm:$0xff]
        %v1259 = vld [vmem:[%s1240 + $0x90] sm:$0xff]
        %v1260 = vld [vmem:[%s1240 + $0x98] sm:$0xff]
        %v1261 = vld [vmem:[%s1240 + $0xa0] sm:$0xff]
        %v1262 = vld [vmem:[%s1240 + $0xa8] sm:$0xff]
        %v1263 = vld [vmem:[%s1240 + $0xb0] sm:$0xff]
        %v1264 = vld [vmem:[%s1240 + $0xb8] sm:$0xff]
        %v1265 = vld [vmem:[%s1240 + $0xc0] sm:$0xff]
        %v1266 = vld [vmem:[%s1240 + $0xc8] sm:$0xff]
        %v1267 = vld [vmem:[%s1240 + $0xd0] sm:$0xff]
        %v1268 = vld [vmem:[%s1240 + $0xd8] sm:$0xff]
        %v1269 = vld [vmem:[%s1240 + $0xe0] sm:$0xff]
        %v1270 = vld [vmem:[%s1240 + $0xe8] sm:$0xff]
        %v1271 = vld [vmem:[%s1240 + $0xf0] sm:$0xff]
        %v1272 = vld [vmem:[%s1240 + $0xf8] sm:$0xff]
        %v1305 = vunpack.c.l.b16 %v1241
        %v1306 = vunpack.c.h.b16 %v1241
        %v1307 = vunpack.c.l.b16 %v1242
        %v1308 = vunpack.c.h.b16 %v1242
        %v1309 = vunpack.c.l.b16 %v1243
        %v1310 = vunpack.c.h.b16 %v1243
        %v1311 = vunpack.c.l.b16 %v1244
        %v1312 = vunpack.c.h.b16 %v1244
        %v1313 = vunpack.c.l.b16 %v1245
        %v1314 = vunpack.c.h.b16 %v1245
        %v1315 = vunpack.c.l.b16 %v1246
        %v1316 = vunpack.c.h.b16 %v1246
        %v1317 = vunpack.c.l.b16 %v1247
        %v1318 = vunpack.c.h.b16 %v1247
        %v1319 = vunpack.c.l.b16 %v1248
        %v1320 = vunpack.c.h.b16 %v1248
        %v1321 = vunpack.c.l.b16 %v1249
        %v1322 = vunpack.c.h.b16 %v1249
        %v1323 = vunpack.c.l.b16 %v1250
        %v1324 = vunpack.c.h.b16 %v1250
        %v1325 = vunpack.c.l.b16 %v1251
        %v1326 = vunpack.c.h.b16 %v1251
        %v1327 = vunpack.c.l.b16 %v1252
        %v1328 = vunpack.c.h.b16 %v1252
        %v1329 = vunpack.c.l.b16 %v1253
        %v1330 = vunpack.c.h.b16 %v1253
        %v1331 = vunpack.c.l.b16 %v1254
        %v1332 = vunpack.c.h.b16 %v1254
        %v1333 = vunpack.c.l.b16 %v1255
        %v1334 = vunpack.c.h.b16 %v1255
        %v1335 = vunpack.c.l.b16 %v1256
        %v1336 = vunpack.c.h.b16 %v1256
        %v1337 = vunpack.c.l.b16 %v1257
        %v1338 = vunpack.c.h.b16 %v1257
        %v1339 = vunpack.c.l.b16 %v1258
        %v1340 = vunpack.c.h.b16 %v1258
        %v1341 = vunpack.c.l.b16 %v1259
        %v1342 = vunpack.c.h.b16 %v1259
        %v1343 = vunpack.c.l.b16 %v1260
        %v1344 = vunpack.c.h.b16 %v1260
        %v1345 = vunpack.c.l.b16 %v1261
        %v1346 = vunpack.c.h.b16 %v1261
        %v1347 = vunpack.c.l.b16 %v1262
        %v1348 = vunpack.c.h.b16 %v1262
        %v1349 = vunpack.c.l.b16 %v1263
        %v1350 = vunpack.c.h.b16 %v1263
        %v1351 = vunpack.c.l.b16 %v1264
        %v1352 = vunpack.c.h.b16 %v1264
        %v1353 = vunpack.c.l.b16 %v1265
        %v1354 = vunpack.c.h.b16 %v1265
        %v1355 = vunpack.c.l.b16 %v1266
        %v1356 = vunpack.c.h.b16 %v1266
        %v1357 = vunpack.c.l.b16 %v1267
        %v1358 = vunpack.c.h.b16 %v1267
        %v1359 = vunpack.c.l.b16 %v1268
        %v1360 = vunpack.c.h.b16 %v1268
        %v1361 = vunpack.c.l.b16 %v1269
        %v1362 = vunpack.c.h.b16 %v1269
        %v1363 = vunpack.c.l.b16 %v1270
        %v1364 = vunpack.c.h.b16 %v1270
        %v1365 = vunpack.c.l.b16 %v1271
        %v1366 = vunpack.c.h.b16 %v1271
        %v1367 = vunpack.c.l.b16 %v1272
        %v1368 = vunpack.c.h.b16 %v1272
        %v1369 = vpack.c.b16 %v1307, %v1305
        %v1370 = vpack.c.b16 %v1308, %v1306
        %v1371 = vpack.c.b16 %v1311, %v1309
        %v1372 = vpack.c.b16 %v1312, %v1310
        %v1373 = vpack.c.b16 %v1315, %v1313
        %v1374 = vpack.c.b16 %v1316, %v1314
        %v1375 = vpack.c.b16 %v1319, %v1317
        %v1376 = vpack.c.b16 %v1320, %v1318
        %v1377 = vpack.c.b16 %v1323, %v1321
        %v1378 = vpack.c.b16 %v1324, %v1322
        %v1379 = vpack.c.b16 %v1327, %v1325
        %v1380 = vpack.c.b16 %v1328, %v1326
        %v1381 = vpack.c.b16 %v1331, %v1329
        %v1382 = vpack.c.b16 %v1332, %v1330
        %v1383 = vpack.c.b16 %v1335, %v1333
        %v1384 = vpack.c.b16 %v1336, %v1334
        %v1385 = vpack.c.b16 %v1339, %v1337
        %v1386 = vpack.c.b16 %v1340, %v1338
        %v1387 = vpack.c.b16 %v1343, %v1341
        %v1388 = vpack.c.b16 %v1344, %v1342
        %v1389 = vpack.c.b16 %v1347, %v1345
        %v1390 = vpack.c.b16 %v1348, %v1346
        %v1391 = vpack.c.b16 %v1351, %v1349
        %v1392 = vpack.c.b16 %v1352, %v1350
        %v1393 = vpack.c.b16 %v1355, %v1353
        %v1394 = vpack.c.b16 %v1356, %v1354
        %v1395 = vpack.c.b16 %v1359, %v1357
        %v1396 = vpack.c.b16 %v1360, %v1358
        %v1397 = vpack.c.b16 %v1363, %v1361
        %v1398 = vpack.c.b16 %v1364, %v1362
        %v1399 = vpack.c.b16 %v1367, %v1365
        %v1400 = vpack.c.b16 %v1368, %v1366
        %1433 = vmatpush.bf16.msra.mxu0 %v1383
        %1434 = vmatpush.bf16.msra.mxu0 %v1381
        %1435 = vmatpush.bf16.msra.mxu0 %v1379
        %1436 = vmatpush.bf16.msra.mxu0 %v1377
        %1437 = vmatpush.bf16.msra.mxu0 %v1375
        %1438 = vmatpush.bf16.msra.mxu0 %v1373
        %1439 = vmatpush.bf16.msra.mxu0 %v1371
        %1440 = vmatpush.bf16.msra.mxu0 %v1369
        %1441 = vmatmul.bf16.gmra.mxu0 %v1238
        %v1442 = vpop.f32.mrf.mxu0
        %v1443 = vadd.f32 0.0, %v1442
        %v1444 = vpop.f32.mrf.mxu0
        %v1445 = vadd.f32 0.0, %v1444
        %1446 = vdwg.mxu0
        %1447 = vmatpush.bf16.msra.mxu0 %v1399
        %1448 = vmatpush.bf16.msra.mxu0 %v1397
        %1449 = vmatpush.bf16.msra.mxu0 %v1395
        %1450 = vmatpush.bf16.msra.mxu0 %v1393
        %1451 = vmatpush.bf16.msra.mxu0 %v1391
        %1452 = vmatpush.bf16.msra.mxu0 %v1389
        %1453 = vmatpush.bf16.msra.mxu0 %v1387
        %1454 = vmatpush.bf16.msra.mxu0 %v1385
        %1455 = vmatmul.bf16.gmra.mxu0 %v1239
        %v1456 = vpop.f32.mrf.mxu0
        %v1457 = vadd.f32 %v1443, %v1456
        %v1458 = vpop.f32.mrf.mxu0
        %v1459 = vadd.f32 %v1445, %v1458
        %1460 = vdwg.mxu0
        %1461 = vmatpush.bf16.msra.mxu0 %v1384
        %1462 = vmatpush.bf16.msra.mxu0 %v1382
        %1463 = vmatpush.bf16.msra.mxu0 %v1380
        %1464 = vmatpush.bf16.msra.mxu0 %v1378
        %1465 = vmatpush.bf16.msra.mxu0 %v1376
        %1466 = vmatpush.bf16.msra.mxu0 %v1374
        %1467 = vmatpush.bf16.msra.mxu0 %v1372
        %1468 = vmatpush.bf16.msra.mxu0 %v1370
        %1469 = vmatmul.bf16.gmra.mxu0 %v1238
        %v1470 = vpop.f32.mrf.mxu0
        %v1471 = vadd.f32 0.0, %v1470
        %v1472 = vpop.f32.mrf.mxu0
        %v1473 = vadd.f32 0.0, %v1472
        %1474 = vdwg.mxu0
        %1475 = vmatpush.bf16.msra.mxu0 %v1400
        %1476 = vmatpush.bf16.msra.mxu0 %v1398
        %1477 = vmatpush.bf16.msra.mxu0 %v1396
        %1478 = vmatpush.bf16.msra.mxu0 %v1394
        %1479 = vmatpush.bf16.msra.mxu0 %v1392
        %1480 = vmatpush.bf16.msra.mxu0 %v1390
        %1481 = vmatpush.bf16.msra.mxu0 %v1388
        %1482 = vmatpush.bf16.msra.mxu0 %v1386
        %1483 = vmatmul.bf16.gmra.mxu0 %v1239
        %v1484 = vpop.f32.mrf.mxu0
        %v1485 = vadd.f32 %v1471, %v1484
        %v1486 = vpop.f32.mrf.mxu0
        %v1487 = vadd.f32 %v1473, %v1486
        %1488 = vdwg.mxu0
        %v1521 = vunpack.c.l.b16 %v1206
        %v1522 = vunpack.c.h.b16 %v1206
        %v1523 = vunpack.c.l.b16 %v1207
        %v1524 = vunpack.c.h.b16 %v1207
        %v1525 = vunpack.c.l.b16 %v1208
        %v1526 = vunpack.c.h.b16 %v1208
        %v1527 = vunpack.c.l.b16 %v1209
        %v1528 = vunpack.c.h.b16 %v1209
        %v1529 = vunpack.c.l.b16 %v1210
        %v1530 = vunpack.c.h.b16 %v1210
        %v1531 = vunpack.c.l.b16 %v1211
        %v1532 = vunpack.c.h.b16 %v1211
        %v1533 = vunpack.c.l.b16 %v1212
        %v1534 = vunpack.c.h.b16 %v1212
        %v1535 = vunpack.c.l.b16 %v1213
        %v1536 = vunpack.c.h.b16 %v1213
        %v1537 = vunpack.c.l.b16 %v1214
        %v1538 = vunpack.c.h.b16 %v1214
        %v1539 = vunpack.c.l.b16 %v1215
        %v1540 = vunpack.c.h.b16 %v1215
        %v1541 = vunpack.c.l.b16 %v1216
        %v1542 = vunpack.c.h.b16 %v1216
        %v1543 = vunpack.c.l.b16 %v1217
        %v1544 = vunpack.c.h.b16 %v1217
        %v1545 = vunpack.c.l.b16 %v1218
        %v1546 = vunpack.c.h.b16 %v1218
        %v1547 = vunpack.c.l.b16 %v1219
        %v1548 = vunpack.c.h.b16 %v1219
        %v1549 = vunpack.c.l.b16 %v1220
        %v1550 = vunpack.c.h.b16 %v1220
        %v1551 = vunpack.c.l.b16 %v1221
        %v1552 = vunpack.c.h.b16 %v1221
        %v1553 = vunpack.c.l.b16 %v1222
        %v1554 = vunpack.c.h.b16 %v1222
        %v1555 = vunpack.c.l.b16 %v1223
        %v1556 = vunpack.c.h.b16 %v1223
        %v1557 = vunpack.c.l.b16 %v1224
        %v1558 = vunpack.c.h.b16 %v1224
        %v1559 = vunpack.c.l.b16 %v1225
        %v1560 = vunpack.c.h.b16 %v1225
        %v1561 = vunpack.c.l.b16 %v1226
        %v1562 = vunpack.c.h.b16 %v1226
        %v1563 = vunpack.c.l.b16 %v1227
        %v1564 = vunpack.c.h.b16 %v1227
        %v1565 = vunpack.c.l.b16 %v1228
        %v1566 = vunpack.c.h.b16 %v1228
        %v1567 = vunpack.c.l.b16 %v1229
        %v1568 = vunpack.c.h.b16 %v1229
        %v1569 = vunpack.c.l.b16 %v1230
        %v1570 = vunpack.c.h.b16 %v1230
        %v1571 = vunpack.c.l.b16 %v1231
        %v1572 = vunpack.c.h.b16 %v1231
        %v1573 = vunpack.c.l.b16 %v1232
        %v1574 = vunpack.c.h.b16 %v1232
        %v1575 = vunpack.c.l.b16 %v1233
        %v1576 = vunpack.c.h.b16 %v1233
        %v1577 = vunpack.c.l.b16 %v1234
        %v1578 = vunpack.c.h.b16 %v1234
        %v1579 = vunpack.c.l.b16 %v1235
        %v1580 = vunpack.c.h.b16 %v1235
        %v1581 = vunpack.c.l.b16 %v1236
        %v1582 = vunpack.c.h.b16 %v1236
        %v1583 = vunpack.c.l.b16 %v1237
        %v1584 = vunpack.c.h.b16 %v1237
        %v1585 = vpack.c.b16 %v1523, %v1521
        %v1586 = vpack.c.b16 %v1524, %v1522
        %v1587 = vpack.c.b16 %v1527, %v1525
        %v1588 = vpack.c.b16 %v1528, %v1526
        %v1589 = vpack.c.b16 %v1531, %v1529
        %v1590 = vpack.c.b16 %v1532, %v1530
        %v1591 = vpack.c.b16 %v1535, %v1533
        %v1592 = vpack.c.b16 %v1536, %v1534
        %v1593 = vpack.c.b16 %v1539, %v1537
        %v1594 = vpack.c.b16 %v1540, %v1538
        %v1595 = vpack.c.b16 %v1543, %v1541
        %v1596 = vpack.c.b16 %v1544, %v1542
        %v1597 = vpack.c.b16 %v1547, %v1545
        %v1598 = vpack.c.b16 %v1548, %v1546
        %v1599 = vpack.c.b16 %v1551, %v1549
        %v1600 = vpack.c.b16 %v1552, %v1550
        %v1601 = vpack.c.b16 %v1555, %v1553
        %v1602 = vpack.c.b16 %v1556, %v1554
        %v1603 = vpack.c.b16 %v1559, %v1557
        %v1604 = vpack.c.b16 %v1560, %v1558
        %v1605 = vpack.c.b16 %v1563, %v1561
        %v1606 = vpack.c.b16 %v1564, %v1562
        %v1607 = vpack.c.b16 %v1567, %v1565
        %v1608 = vpack.c.b16 %v1568, %v1566
        %v1609 = vpack.c.b16 %v1571, %v1569
        %v1610 = vpack.c.b16 %v1572, %v1570
        %v1611 = vpack.c.b16 %v1575, %v1573
        %v1612 = vpack.c.b16 %v1576, %v1574
        %v1613 = vpack.c.b16 %v1579, %v1577
        %v1614 = vpack.c.b16 %v1580, %v1578
        %v1615 = vpack.c.b16 %v1583, %v1581
        %v1616 = vpack.c.b16 %v1584, %v1582
        %1649 = vmatpush.bf16.msra.mxu0 %v1599
        %1650 = vmatpush.bf16.msra.mxu0 %v1597
        %1651 = vmatpush.bf16.msra.mxu0 %v1595
        %1652 = vmatpush.bf16.msra.mxu0 %v1593
        %1653 = vmatpush.bf16.msra.mxu0 %v1591
        %1654 = vmatpush.bf16.msra.mxu0 %v1589
        %1655 = vmatpush.bf16.msra.mxu0 %v1587
        %1656 = vmatpush.bf16.msra.mxu0 %v1585
        %1657 = vmatmul.bf16.gmra.mxu0 %v1203
        %v1658 = vpop.f32.mrf.mxu0
        %v1659 = vadd.f32 %v1457, %v1658
        %v1660 = vpop.f32.mrf.mxu0
        %v1661 = vadd.f32 %v1459, %v1660
        %1662 = vdwg.mxu0
        %1663 = vmatpush.bf16.msra.mxu0 %v1615
        %1664 = vmatpush.bf16.msra.mxu0 %v1613
        %1665 = vmatpush.bf16.msra.mxu0 %v1611
        %1666 = vmatpush.bf16.msra.mxu0 %v1609
        %1667 = vmatpush.bf16.msra.mxu0 %v1607
        %1668 = vmatpush.bf16.msra.mxu0 %v1605
        %1669 = vmatpush.bf16.msra.mxu0 %v1603
        %1670 = vmatpush.bf16.msra.mxu0 %v1601
        %1671 = vmatmul.bf16.gmra.mxu0 %v1204
        %v1672 = vpop.f32.mrf.mxu0
        %v1673 = vadd.f32 %v1659, %v1672
        %v1674 = vpop.f32.mrf.mxu0
        %v1675 = vadd.f32 %v1661, %v1674
        %1676 = vdwg.mxu0
        %1677 = vmatpush.bf16.msra.mxu0 %v1600
        %1678 = vmatpush.bf16.msra.mxu0 %v1598
        %1679 = vmatpush.bf16.msra.mxu0 %v1596
        %1680 = vmatpush.bf16.msra.mxu0 %v1594
        %1681 = vmatpush.bf16.msra.mxu0 %v1592
        %1682 = vmatpush.bf16.msra.mxu0 %v1590
        %1683 = vmatpush.bf16.msra.mxu0 %v1588
        %1684 = vmatpush.bf16.msra.mxu0 %v1586
        %1685 = vmatmul.bf16.gmra.mxu0 %v1203
        %v1686 = vpop.f32.mrf.mxu0
        %v1687 = vadd.f32 %v1485, %v1686
        %v1688 = vpop.f32.mrf.mxu0
        %v1689 = vadd.f32 %v1487, %v1688
        %1690 = vdwg.mxu0
        %1691 = vmatpush.bf16.msra.mxu0 %v1616
        %1692 = vmatpush.bf16.msra.mxu0 %v1614
        %1693 = vmatpush.bf16.msra.mxu0 %v1612
        %1694 = vmatpush.bf16.msra.mxu0 %v1610
        %1695 = vmatpush.bf16.msra.mxu0 %v1608
        %1696 = vmatpush.bf16.msra.mxu0 %v1606
        %1697 = vmatpush.bf16.msra.mxu0 %v1604
        %1698 = vmatpush.bf16.msra.mxu0 %v1602
        %1699 = vmatmul.bf16.gmra.mxu0 %v1204
        %v1700 = vpop.f32.mrf.mxu0
        %v1701 = vadd.f32 %v1687, %v1700
        %v1702 = vpop.f32.mrf.mxu0
        %v1703 = vadd.f32 %v1689, %v1702
        %1704 = vdwg.mxu0
        %v1705 = vperm.slane %v304, 5
        %v1706 = vperm.slane %v305, 5
        %v1707 = vadd.f32 %v1673, %v1705
        %v1708 = vadd.f32 %v1701, %v1706
        %v1709 = vadd.f32 %v1675, %v1705
        %v1710 = vadd.f32 %v1703, %v1706
        %vm1711 = vcmp.ge.f32.partialorder %v1707, 0.0
        %vm1712 = vcmp.ge.f32.partialorder %v1708, 0.0
        %vm1713 = vcmp.ge.f32.partialorder %v1709, 0.0
        %vm1714 = vcmp.ge.f32.partialorder %v1710, 0.0
        %v1715 = vmul.f32 %v1707, 0.01
        %v1716 = vmul.f32 %v1708, 0.01
        %v1717 = vmul.f32 %v1709, 0.01
        %v1718 = vmul.f32 %v1710, 0.01
        %v1719 = vsel %vm1711, %v1707, %v1715
        %v1720 = vsel %vm1712, %v1708, %v1716
        %v1721 = vsel %vm1713, %v1709, %v1717
        %v1722 = vsel %vm1714, %v1710, %v1718
        %v1723 = vpack.c.bf16 %v1721, %v1719
        %v1724 = vpack.c.bf16 %v1722, %v1720
        %s1725 = scalar_lea.vmem [#allocation5], 1280
        %v1726 = vld [vmem:[%s1725] sm:$0xff]
        %v1727 = vld [vmem:[%s1725 + $0x8] sm:$0xff]
        %v1728 = vld [vmem:[%s1725 + $0x10] sm:$0xff]
        %v1729 = vld [vmem:[%s1725 + $0x18] sm:$0xff]
        %v1730 = vld [vmem:[%s1725 + $0x20] sm:$0xff]
        %v1731 = vld [vmem:[%s1725 + $0x28] sm:$0xff]
        %v1732 = vld [vmem:[%s1725 + $0x30] sm:$0xff]
        %v1733 = vld [vmem:[%s1725 + $0x38] sm:$0xff]
        %v1734 = vld [vmem:[%s1725 + $0x40] sm:$0xff]
        %v1735 = vld [vmem:[%s1725 + $0x48] sm:$0xff]
        %v1736 = vld [vmem:[%s1725 + $0x50] sm:$0xff]
        %v1737 = vld [vmem:[%s1725 + $0x58] sm:$0xff]
        %v1738 = vld [vmem:[%s1725 + $0x60] sm:$0xff]
        %v1739 = vld [vmem:[%s1725 + $0x68] sm:$0xff]
        %v1740 = vld [vmem:[%s1725 + $0x70] sm:$0xff]
        %v1741 = vld [vmem:[%s1725 + $0x78] sm:$0xff]
        %v1742 = vld [vmem:[%s1725 + $0x80] sm:$0xff]
        %v1743 = vld [vmem:[%s1725 + $0x88] sm:$0xff]
        %v1744 = vld [vmem:[%s1725 + $0x90] sm:$0xff]
        %v1745 = vld [vmem:[%s1725 + $0x98] sm:$0xff]
        %v1746 = vld [vmem:[%s1725 + $0xa0] sm:$0xff]
        %v1747 = vld [vmem:[%s1725 + $0xa8] sm:$0xff]
        %v1748 = vld [vmem:[%s1725 + $0xb0] sm:$0xff]
        %v1749 = vld [vmem:[%s1725 + $0xb8] sm:$0xff]
        %v1750 = vld [vmem:[%s1725 + $0xc0] sm:$0xff]
        %v1751 = vld [vmem:[%s1725 + $0xc8] sm:$0xff]
        %v1752 = vld [vmem:[%s1725 + $0xd0] sm:$0xff]
        %v1753 = vld [vmem:[%s1725 + $0xd8] sm:$0xff]
        %v1754 = vld [vmem:[%s1725 + $0xe0] sm:$0xff]
        %v1755 = vld [vmem:[%s1725 + $0xe8] sm:$0xff]
        %v1756 = vld [vmem:[%s1725 + $0xf0] sm:$0xff]
        %v1757 = vld [vmem:[%s1725 + $0xf8] sm:$0xff]
        %v1758 = vperm.slane %v304, 6
        %v1759 = vperm.slane %v305, 6
        %v1792 = vunpack.c.l.b16 %v1726
        %v1793 = vunpack.c.h.b16 %v1726
        %v1794 = vunpack.c.l.b16 %v1727
        %v1795 = vunpack.c.h.b16 %v1727
        %v1796 = vunpack.c.l.b16 %v1728
        %v1797 = vunpack.c.h.b16 %v1728
        %v1798 = vunpack.c.l.b16 %v1729
        %v1799 = vunpack.c.h.b16 %v1729
        %v1800 = vunpack.c.l.b16 %v1730
        %v1801 = vunpack.c.h.b16 %v1730
        %v1802 = vunpack.c.l.b16 %v1731
        %v1803 = vunpack.c.h.b16 %v1731
        %v1804 = vunpack.c.l.b16 %v1732
        %v1805 = vunpack.c.h.b16 %v1732
        %v1806 = vunpack.c.l.b16 %v1733
        %v1807 = vunpack.c.h.b16 %v1733
        %v1808 = vunpack.c.l.b16 %v1734
        %v1809 = vunpack.c.h.b16 %v1734
        %v1810 = vunpack.c.l.b16 %v1735
        %v1811 = vunpack.c.h.b16 %v1735
        %v1812 = vunpack.c.l.b16 %v1736
        %v1813 = vunpack.c.h.b16 %v1736
        %v1814 = vunpack.c.l.b16 %v1737
        %v1815 = vunpack.c.h.b16 %v1737
        %v1816 = vunpack.c.l.b16 %v1738
        %v1817 = vunpack.c.h.b16 %v1738
        %v1818 = vunpack.c.l.b16 %v1739
        %v1819 = vunpack.c.h.b16 %v1739
        %v1820 = vunpack.c.l.b16 %v1740
        %v1821 = vunpack.c.h.b16 %v1740
        %v1822 = vunpack.c.l.b16 %v1741
        %v1823 = vunpack.c.h.b16 %v1741
        %v1824 = vunpack.c.l.b16 %v1742
        %v1825 = vunpack.c.h.b16 %v1742
        %v1826 = vunpack.c.l.b16 %v1743
        %v1827 = vunpack.c.h.b16 %v1743
        %v1828 = vunpack.c.l.b16 %v1744
        %v1829 = vunpack.c.h.b16 %v1744
        %v1830 = vunpack.c.l.b16 %v1745
        %v1831 = vunpack.c.h.b16 %v1745
        %v1832 = vunpack.c.l.b16 %v1746
        %v1833 = vunpack.c.h.b16 %v1746
        %v1834 = vunpack.c.l.b16 %v1747
        %v1835 = vunpack.c.h.b16 %v1747
        %v1836 = vunpack.c.l.b16 %v1748
        %v1837 = vunpack.c.h.b16 %v1748
        %v1838 = vunpack.c.l.b16 %v1749
        %v1839 = vunpack.c.h.b16 %v1749
        %v1840 = vunpack.c.l.b16 %v1750
        %v1841 = vunpack.c.h.b16 %v1750
        %v1842 = vunpack.c.l.b16 %v1751
        %v1843 = vunpack.c.h.b16 %v1751
        %v1844 = vunpack.c.l.b16 %v1752
        %v1845 = vunpack.c.h.b16 %v1752
        %v1846 = vunpack.c.l.b16 %v1753
        %v1847 = vunpack.c.h.b16 %v1753
        %v1848 = vunpack.c.l.b16 %v1754
        %v1849 = vunpack.c.h.b16 %v1754
        %v1850 = vunpack.c.l.b16 %v1755
        %v1851 = vunpack.c.h.b16 %v1755
        %v1852 = vunpack.c.l.b16 %v1756
        %v1853 = vunpack.c.h.b16 %v1756
        %v1854 = vunpack.c.l.b16 %v1757
        %v1855 = vunpack.c.h.b16 %v1757
        %v1856 = vpack.c.b16 %v1794, %v1792
        %v1857 = vpack.c.b16 %v1795, %v1793
        %v1858 = vpack.c.b16 %v1798, %v1796
        %v1859 = vpack.c.b16 %v1799, %v1797
        %v1860 = vpack.c.b16 %v1802, %v1800
        %v1861 = vpack.c.b16 %v1803, %v1801
        %v1862 = vpack.c.b16 %v1806, %v1804
        %v1863 = vpack.c.b16 %v1807, %v1805
        %v1864 = vpack.c.b16 %v1810, %v1808
        %v1865 = vpack.c.b16 %v1811, %v1809
        %v1866 = vpack.c.b16 %v1814, %v1812
        %v1867 = vpack.c.b16 %v1815, %v1813
        %v1868 = vpack.c.b16 %v1818, %v1816
        %v1869 = vpack.c.b16 %v1819, %v1817
        %v1870 = vpack.c.b16 %v1822, %v1820
        %v1871 = vpack.c.b16 %v1823, %v1821
        %v1872 = vpack.c.b16 %v1826, %v1824
        %v1873 = vpack.c.b16 %v1827, %v1825
        %v1874 = vpack.c.b16 %v1830, %v1828
        %v1875 = vpack.c.b16 %v1831, %v1829
        %v1876 = vpack.c.b16 %v1834, %v1832
        %v1877 = vpack.c.b16 %v1835, %v1833
        %v1878 = vpack.c.b16 %v1838, %v1836
        %v1879 = vpack.c.b16 %v1839, %v1837
        %v1880 = vpack.c.b16 %v1842, %v1840
        %v1881 = vpack.c.b16 %v1843, %v1841
        %v1882 = vpack.c.b16 %v1846, %v1844
        %v1883 = vpack.c.b16 %v1847, %v1845
        %v1884 = vpack.c.b16 %v1850, %v1848
        %v1885 = vpack.c.b16 %v1851, %v1849
        %v1886 = vpack.c.b16 %v1854, %v1852
        %v1887 = vpack.c.b16 %v1855, %v1853
        %1920 = vmatpush.bf16.msra.mxu0 %v1870
        %1921 = vmatpush.bf16.msra.mxu0 %v1868
        %1922 = vmatpush.bf16.msra.mxu0 %v1866
        %1923 = vmatpush.bf16.msra.mxu0 %v1864
        %1924 = vmatpush.bf16.msra.mxu0 %v1862
        %1925 = vmatpush.bf16.msra.mxu0 %v1860
        %1926 = vmatpush.bf16.msra.mxu0 %v1858
        %1927 = vmatpush.bf16.msra.mxu0 %v1856
        %1928 = vmatmul.bf16.gmra.mxu0 %v1723
        %v1929 = vpop.f32.mrf.mxu0
        %v1930 = vadd.f32 %v1758, %v1929
        %v1931 = vpop.f32.mrf.mxu0
        %v1932 = vadd.f32 %v1758, %v1931
        %1933 = vdwg.mxu0
        %1934 = vmatpush.bf16.msra.mxu0 %v1886
        %1935 = vmatpush.bf16.msra.mxu0 %v1884
        %1936 = vmatpush.bf16.msra.mxu0 %v1882
        %1937 = vmatpush.bf16.msra.mxu0 %v1880
        %1938 = vmatpush.bf16.msra.mxu0 %v1878
        %1939 = vmatpush.bf16.msra.mxu0 %v1876
        %1940 = vmatpush.bf16.msra.mxu0 %v1874
        %1941 = vmatpush.bf16.msra.mxu0 %v1872
        %1942 = vmatmul.bf16.gmra.mxu0 %v1724
        %v1943 = vpop.f32.mrf.mxu0
        %v1944 = vadd.f32 %v1930, %v1943
        %v1945 = vpop.f32.mrf.mxu0
        %v1946 = vadd.f32 %v1932, %v1945
        %1947 = vdwg.mxu0
        %1948 = vmatpush.bf16.msra.mxu0 %v1871
        %1949 = vmatpush.bf16.msra.mxu0 %v1869
        %1950 = vmatpush.bf16.msra.mxu0 %v1867
        %1951 = vmatpush.bf16.msra.mxu0 %v1865
        %1952 = vmatpush.bf16.msra.mxu0 %v1863
        %1953 = vmatpush.bf16.msra.mxu0 %v1861
        %1954 = vmatpush.bf16.msra.mxu0 %v1859
        %1955 = vmatpush.bf16.msra.mxu0 %v1857
        %1956 = vmatmul.bf16.gmra.mxu0 %v1723
        %v1957 = vpop.f32.mrf.mxu0
        %v1958 = vadd.f32 %v1759, %v1957
        %v1959 = vpop.f32.mrf.mxu0
        %v1960 = vadd.f32 %v1759, %v1959
        %1961 = vdwg.mxu0
        %1962 = vmatpush.bf16.msra.mxu0 %v1887
        %1963 = vmatpush.bf16.msra.mxu0 %v1885
        %1964 = vmatpush.bf16.msra.mxu0 %v1883
        %1965 = vmatpush.bf16.msra.mxu0 %v1881
        %1966 = vmatpush.bf16.msra.mxu0 %v1879
        %1967 = vmatpush.bf16.msra.mxu0 %v1877
        %1968 = vmatpush.bf16.msra.mxu0 %v1875
        %1969 = vmatpush.bf16.msra.mxu0 %v1873
        %1970 = vmatmul.bf16.gmra.mxu0 %v1724
        %v1971 = vpop.f32.mrf.mxu0
        %v1972 = vadd.f32 %v1958, %v1971
        %v1973 = vpop.f32.mrf.mxu0
        %v1974 = vadd.f32 %v1960, %v1973
        %1975 = vdwg.mxu0
        %vm1976 = vcmp.ge.f32.partialorder %v1944, 0.0
        %vm1977 = vcmp.ge.f32.partialorder %v1972, 0.0
        %vm1978 = vcmp.ge.f32.partialorder %v1946, 0.0
        %vm1979 = vcmp.ge.f32.partialorder %v1974, 0.0
        %v1980 = vmul.f32 %v1944, 0.01
        %v1981 = vmul.f32 %v1972, 0.01
        %v1982 = vmul.f32 %v1946, 0.01
        %v1983 = vmul.f32 %v1974, 0.01
        %v1984 = vsel %vm1976, %v1944, %v1980
        %v1985 = vsel %vm1977, %v1972, %v1981
        %v1986 = vsel %vm1978, %v1946, %v1982
        %v1987 = vsel %vm1979, %v1974, %v1983
        %v1988 = vpack.c.bf16 %v1986, %v1984
        %v1989 = vpack.c.bf16 %v1987, %v1985
        %s1990 = scalar_lea.vmem [#allocation5], 1536
        %v1991 = vld [vmem:[%s1990] sm:$0xff]
        %v1992 = vld [vmem:[%s1990 + $0x8] sm:$0xff]
        %v1993 = vld [vmem:[%s1990 + $0x10] sm:$0xff]
        %v1994 = vld [vmem:[%s1990 + $0x18] sm:$0xff]
        %v1995 = vld [vmem:[%s1990 + $0x20] sm:$0xff]
        %v1996 = vld [vmem:[%s1990 + $0x28] sm:$0xff]
        %v1997 = vld [vmem:[%s1990 + $0x30] sm:$0xff]
        %v1998 = vld [vmem:[%s1990 + $0x38] sm:$0xff]
        %v1999 = vld [vmem:[%s1990 + $0x40] sm:$0xff]
        %v2000 = vld [vmem:[%s1990 + $0x48] sm:$0xff]
        %v2001 = vld [vmem:[%s1990 + $0x50] sm:$0xff]
        %v2002 = vld [vmem:[%s1990 + $0x58] sm:$0xff]
        %v2003 = vld [vmem:[%s1990 + $0x60] sm:$0xff]
        %v2004 = vld [vmem:[%s1990 + $0x68] sm:$0xff]
        %v2005 = vld [vmem:[%s1990 + $0x70] sm:$0xff]
        %v2006 = vld [vmem:[%s1990 + $0x78] sm:$0xff]
        %v2007 = vld [vmem:[%s1990 + $0x80] sm:$0xff]
        %v2008 = vld [vmem:[%s1990 + $0x88] sm:$0xff]
        %v2009 = vld [vmem:[%s1990 + $0x90] sm:$0xff]
        %v2010 = vld [vmem:[%s1990 + $0x98] sm:$0xff]
        %v2011 = vld [vmem:[%s1990 + $0xa0] sm:$0xff]
        %v2012 = vld [vmem:[%s1990 + $0xa8] sm:$0xff]
        %v2013 = vld [vmem:[%s1990 + $0xb0] sm:$0xff]
        %v2014 = vld [vmem:[%s1990 + $0xb8] sm:$0xff]
        %v2015 = vld [vmem:[%s1990 + $0xc0] sm:$0xff]
        %v2016 = vld [vmem:[%s1990 + $0xc8] sm:$0xff]
        %v2017 = vld [vmem:[%s1990 + $0xd0] sm:$0xff]
        %v2018 = vld [vmem:[%s1990 + $0xd8] sm:$0xff]
        %v2019 = vld [vmem:[%s1990 + $0xe0] sm:$0xff]
        %v2020 = vld [vmem:[%s1990 + $0xe8] sm:$0xff]
        %v2021 = vld [vmem:[%s1990 + $0xf0] sm:$0xff]
        %v2022 = vld [vmem:[%s1990 + $0xf8] sm:$0xff]
        %v2023 = vperm.slane %v304, 7
        %v2024 = vperm.slane %v305, 7
        %v2057 = vunpack.c.l.b16 %v1991
        %v2058 = vunpack.c.h.b16 %v1991
        %v2059 = vunpack.c.l.b16 %v1992
        %v2060 = vunpack.c.h.b16 %v1992
        %v2061 = vunpack.c.l.b16 %v1993
        %v2062 = vunpack.c.h.b16 %v1993
        %v2063 = vunpack.c.l.b16 %v1994
        %v2064 = vunpack.c.h.b16 %v1994
        %v2065 = vunpack.c.l.b16 %v1995
        %v2066 = vunpack.c.h.b16 %v1995
        %v2067 = vunpack.c.l.b16 %v1996
        %v2068 = vunpack.c.h.b16 %v1996
        %v2069 = vunpack.c.l.b16 %v1997
        %v2070 = vunpack.c.h.b16 %v1997
        %v2071 = vunpack.c.l.b16 %v1998
        %v2072 = vunpack.c.h.b16 %v1998
        %v2073 = vunpack.c.l.b16 %v1999
        %v2074 = vunpack.c.h.b16 %v1999
        %v2075 = vunpack.c.l.b16 %v2000
        %v2076 = vunpack.c.h.b16 %v2000
        %v2077 = vunpack.c.l.b16 %v2001
        %v2078 = vunpack.c.h.b16 %v2001
        %v2079 = vunpack.c.l.b16 %v2002
        %v2080 = vunpack.c.h.b16 %v2002
        %v2081 = vunpack.c.l.b16 %v2003
        %v2082 = vunpack.c.h.b16 %v2003
        %v2083 = vunpack.c.l.b16 %v2004
        %v2084 = vunpack.c.h.b16 %v2004
        %v2085 = vunpack.c.l.b16 %v2005
        %v2086 = vunpack.c.h.b16 %v2005
        %v2087 = vunpack.c.l.b16 %v2006
        %v2088 = vunpack.c.h.b16 %v2006
        %v2089 = vunpack.c.l.b16 %v2007
        %v2090 = vunpack.c.h.b16 %v2007
        %v2091 = vunpack.c.l.b16 %v2008
        %v2092 = vunpack.c.h.b16 %v2008
        %v2093 = vunpack.c.l.b16 %v2009
        %v2094 = vunpack.c.h.b16 %v2009
        %v2095 = vunpack.c.l.b16 %v2010
        %v2096 = vunpack.c.h.b16 %v2010
        %v2097 = vunpack.c.l.b16 %v2011
        %v2098 = vunpack.c.h.b16 %v2011
        %v2099 = vunpack.c.l.b16 %v2012
        %v2100 = vunpack.c.h.b16 %v2012
        %v2101 = vunpack.c.l.b16 %v2013
        %v2102 = vunpack.c.h.b16 %v2013
        %v2103 = vunpack.c.l.b16 %v2014
        %v2104 = vunpack.c.h.b16 %v2014
        %v2105 = vunpack.c.l.b16 %v2015
        %v2106 = vunpack.c.h.b16 %v2015
        %v2107 = vunpack.c.l.b16 %v2016
        %v2108 = vunpack.c.h.b16 %v2016
        %v2109 = vunpack.c.l.b16 %v2017
        %v2110 = vunpack.c.h.b16 %v2017
        %v2111 = vunpack.c.l.b16 %v2018
        %v2112 = vunpack.c.h.b16 %v2018
        %v2113 = vunpack.c.l.b16 %v2019
        %v2114 = vunpack.c.h.b16 %v2019
        %v2115 = vunpack.c.l.b16 %v2020
        %v2116 = vunpack.c.h.b16 %v2020
        %v2117 = vunpack.c.l.b16 %v2021
        %v2118 = vunpack.c.h.b16 %v2021
        %v2119 = vunpack.c.l.b16 %v2022
        %v2120 = vunpack.c.h.b16 %v2022
        %v2121 = vpack.c.b16 %v2059, %v2057
        %v2122 = vpack.c.b16 %v2060, %v2058
        %v2123 = vpack.c.b16 %v2063, %v2061
        %v2124 = vpack.c.b16 %v2064, %v2062
        %v2125 = vpack.c.b16 %v2067, %v2065
        %v2126 = vpack.c.b16 %v2068, %v2066
        %v2127 = vpack.c.b16 %v2071, %v2069
        %v2128 = vpack.c.b16 %v2072, %v2070
        %v2129 = vpack.c.b16 %v2075, %v2073
        %v2130 = vpack.c.b16 %v2076, %v2074
        %v2131 = vpack.c.b16 %v2079, %v2077
        %v2132 = vpack.c.b16 %v2080, %v2078
        %v2133 = vpack.c.b16 %v2083, %v2081
        %v2134 = vpack.c.b16 %v2084, %v2082
        %v2135 = vpack.c.b16 %v2087, %v2085
        %v2136 = vpack.c.b16 %v2088, %v2086
        %v2137 = vpack.c.b16 %v2091, %v2089
        %v2138 = vpack.c.b16 %v2092, %v2090
        %v2139 = vpack.c.b16 %v2095, %v2093
        %v2140 = vpack.c.b16 %v2096, %v2094
        %v2141 = vpack.c.b16 %v2099, %v2097
        %v2142 = vpack.c.b16 %v2100, %v2098
        %v2143 = vpack.c.b16 %v2103, %v2101
        %v2144 = vpack.c.b16 %v2104, %v2102
        %v2145 = vpack.c.b16 %v2107, %v2105
        %v2146 = vpack.c.b16 %v2108, %v2106
        %v2147 = vpack.c.b16 %v2111, %v2109
        %v2148 = vpack.c.b16 %v2112, %v2110
        %v2149 = vpack.c.b16 %v2115, %v2113
        %v2150 = vpack.c.b16 %v2116, %v2114
        %v2151 = vpack.c.b16 %v2119, %v2117
        %v2152 = vpack.c.b16 %v2120, %v2118
        %2185 = vmatpush.bf16.msra.mxu0 %v2135
        %2186 = vmatpush.bf16.msra.mxu0 %v2133
        %2187 = vmatpush.bf16.msra.mxu0 %v2131
        %2188 = vmatpush.bf16.msra.mxu0 %v2129
        %2189 = vmatpush.bf16.msra.mxu0 %v2127
        %2190 = vmatpush.bf16.msra.mxu0 %v2125
        %2191 = vmatpush.bf16.msra.mxu0 %v2123
        %2192 = vmatpush.bf16.msra.mxu0 %v2121
        %2193 = vmatmul.bf16.gmra.mxu0 %v1988
        %v2194 = vpop.f32.mrf.mxu0
        %v2195 = vadd.f32 %v2023, %v2194
        %v2196 = vpop.f32.mrf.mxu0
        %v2197 = vadd.f32 %v2023, %v2196
        %2198 = vdwg.mxu0
        %2199 = vmatpush.bf16.msra.mxu0 %v2151
        %2200 = vmatpush.bf16.msra.mxu0 %v2149
        %2201 = vmatpush.bf16.msra.mxu0 %v2147
        %2202 = vmatpush.bf16.msra.mxu0 %v2145
        %2203 = vmatpush.bf16.msra.mxu0 %v2143
        %2204 = vmatpush.bf16.msra.mxu0 %v2141
        %2205 = vmatpush.bf16.msra.mxu0 %v2139
        %2206 = vmatpush.bf16.msra.mxu0 %v2137
        %2207 = vmatmul.bf16.gmra.mxu0 %v1989
        %v2208 = vpop.f32.mrf.mxu0
        %v2209 = vadd.f32 %v2195, %v2208
        %v2210 = vpop.f32.mrf.mxu0
        %v2211 = vadd.f32 %v2197, %v2210
        %2212 = vdwg.mxu0
        %2213 = vmatpush.bf16.msra.mxu0 %v2136
        %2214 = vmatpush.bf16.msra.mxu0 %v2134
        %2215 = vmatpush.bf16.msra.mxu0 %v2132
        %2216 = vmatpush.bf16.msra.mxu0 %v2130
        %2217 = vmatpush.bf16.msra.mxu0 %v2128
        %2218 = vmatpush.bf16.msra.mxu0 %v2126
        %2219 = vmatpush.bf16.msra.mxu0 %v2124
        %2220 = vmatpush.bf16.msra.mxu0 %v2122
        %2221 = vmatmul.bf16.gmra.mxu0 %v1988
        %v2222 = vpop.f32.mrf.mxu0
        %v2223 = vadd.f32 %v2024, %v2222
        %v2224 = vpop.f32.mrf.mxu0
        %v2225 = vadd.f32 %v2024, %v2224
        %2226 = vdwg.mxu0
        %2227 = vmatpush.bf16.msra.mxu0 %v2152
        %2228 = vmatpush.bf16.msra.mxu0 %v2150
        %2229 = vmatpush.bf16.msra.mxu0 %v2148
        %2230 = vmatpush.bf16.msra.mxu0 %v2146
        %2231 = vmatpush.bf16.msra.mxu0 %v2144
        %2232 = vmatpush.bf16.msra.mxu0 %v2142
        %2233 = vmatpush.bf16.msra.mxu0 %v2140
        %2234 = vmatpush.bf16.msra.mxu0 %v2138
        %2235 = vmatmul.bf16.gmra.mxu0 %v1989
        %v2236 = vpop.f32.mrf.mxu0
        %v2237 = vadd.f32 %v2223, %v2236
        %v2238 = vpop.f32.mrf.mxu0
        %v2239 = vadd.f32 %v2225, %v2238
        %2240 = vdwg.mxu0
        %vm2241 = vcmp.ge.f32.partialorder %v2209, 0.0
        %vm2242 = vcmp.ge.f32.partialorder %v2237, 0.0
        %vm2243 = vcmp.ge.f32.partialorder %v2211, 0.0
        %vm2244 = vcmp.ge.f32.partialorder %v2239, 0.0
        %v2245 = vmul.f32 %v2209, 0.01
        %v2246 = vmul.f32 %v2237, 0.01
        %v2247 = vmul.f32 %v2211, 0.01
        %v2248 = vmul.f32 %v2239, 0.01
        %v2249 = vsel %vm2241, %v2209, %v2245
        %v2250 = vsel %vm2242, %v2237, %v2246
        %v2251 = vsel %vm2243, %v2211, %v2247
        %v2252 = vsel %vm2244, %v2239, %v2248
        %v2253 = vpack.c.bf16 %v2251, %v2249
        %v2254 = vpack.c.bf16 %v2252, %v2250
        %s2255 = scalar_lea.vmem [#allocation5], 1792
        %v2256 = vld [vmem:[%s2255] sm:$0xff]
        %v2257 = vld [vmem:[%s2255 + $0x8] sm:$0xff]
        %v2258 = vld [vmem:[%s2255 + $0x10] sm:$0xff]
        %v2259 = vld [vmem:[%s2255 + $0x18] sm:$0xff]
        %v2260 = vld [vmem:[%s2255 + $0x20] sm:$0xff]
        %v2261 = vld [vmem:[%s2255 + $0x28] sm:$0xff]
        %v2262 = vld [vmem:[%s2255 + $0x30] sm:$0xff]
        %v2263 = vld [vmem:[%s2255 + $0x38] sm:$0xff]
        %v2264 = vld [vmem:[%s2255 + $0x40] sm:$0xff]
        %v2265 = vld [vmem:[%s2255 + $0x48] sm:$0xff]
        %v2266 = vld [vmem:[%s2255 + $0x50] sm:$0xff]
        %v2267 = vld [vmem:[%s2255 + $0x58] sm:$0xff]
        %v2268 = vld [vmem:[%s2255 + $0x60] sm:$0xff]
        %v2269 = vld [vmem:[%s2255 + $0x68] sm:$0xff]
        %v2270 = vld [vmem:[%s2255 + $0x70] sm:$0xff]
        %v2271 = vld [vmem:[%s2255 + $0x78] sm:$0xff]
        %v2272 = vld [vmem:[%s2255 + $0x80] sm:$0xff]
        %v2273 = vld [vmem:[%s2255 + $0x88] sm:$0xff]
        %v2274 = vld [vmem:[%s2255 + $0x90] sm:$0xff]
        %v2275 = vld [vmem:[%s2255 + $0x98] sm:$0xff]
        %v2276 = vld [vmem:[%s2255 + $0xa0] sm:$0xff]
        %v2277 = vld [vmem:[%s2255 + $0xa8] sm:$0xff]
        %v2278 = vld [vmem:[%s2255 + $0xb0] sm:$0xff]
        %v2279 = vld [vmem:[%s2255 + $0xb8] sm:$0xff]
        %v2280 = vld [vmem:[%s2255 + $0xc0] sm:$0xff]
        %v2281 = vld [vmem:[%s2255 + $0xc8] sm:$0xff]
        %v2282 = vld [vmem:[%s2255 + $0xd0] sm:$0xff]
        %v2283 = vld [vmem:[%s2255 + $0xd8] sm:$0xff]
        %v2284 = vld [vmem:[%s2255 + $0xe0] sm:$0xff]
        %v2285 = vld [vmem:[%s2255 + $0xe8] sm:$0xff]
        %v2286 = vld [vmem:[%s2255 + $0xf0] sm:$0xff]
        %v2287 = vld [vmem:[%s2255 + $0xf8] sm:$0xff]
        %v2288 = vperm.slane %v306, 0
        %v2289 = vperm.slane %v307, 0
        %v2322 = vunpack.c.l.b16 %v2256
        %v2323 = vunpack.c.h.b16 %v2256
        %v2324 = vunpack.c.l.b16 %v2257
        %v2325 = vunpack.c.h.b16 %v2257
        %v2326 = vunpack.c.l.b16 %v2258
        %v2327 = vunpack.c.h.b16 %v2258
        %v2328 = vunpack.c.l.b16 %v2259
        %v2329 = vunpack.c.h.b16 %v2259
        %v2330 = vunpack.c.l.b16 %v2260
        %v2331 = vunpack.c.h.b16 %v2260
        %v2332 = vunpack.c.l.b16 %v2261
        %v2333 = vunpack.c.h.b16 %v2261
        %v2334 = vunpack.c.l.b16 %v2262
        %v2335 = vunpack.c.h.b16 %v2262
        %v2336 = vunpack.c.l.b16 %v2263
        %v2337 = vunpack.c.h.b16 %v2263
        %v2338 = vunpack.c.l.b16 %v2264
        %v2339 = vunpack.c.h.b16 %v2264
        %v2340 = vunpack.c.l.b16 %v2265
        %v2341 = vunpack.c.h.b16 %v2265
        %v2342 = vunpack.c.l.b16 %v2266
        %v2343 = vunpack.c.h.b16 %v2266
        %v2344 = vunpack.c.l.b16 %v2267
        %v2345 = vunpack.c.h.b16 %v2267
        %v2346 = vunpack.c.l.b16 %v2268
        %v2347 = vunpack.c.h.b16 %v2268
        %v2348 = vunpack.c.l.b16 %v2269
        %v2349 = vunpack.c.h.b16 %v2269
        %v2350 = vunpack.c.l.b16 %v2270
        %v2351 = vunpack.c.h.b16 %v2270
        %v2352 = vunpack.c.l.b16 %v2271
        %v2353 = vunpack.c.h.b16 %v2271
        %v2354 = vunpack.c.l.b16 %v2272
        %v2355 = vunpack.c.h.b16 %v2272
        %v2356 = vunpack.c.l.b16 %v2273
        %v2357 = vunpack.c.h.b16 %v2273
        %v2358 = vunpack.c.l.b16 %v2274
        %v2359 = vunpack.c.h.b16 %v2274
        %v2360 = vunpack.c.l.b16 %v2275
        %v2361 = vunpack.c.h.b16 %v2275
        %v2362 = vunpack.c.l.b16 %v2276
        %v2363 = vunpack.c.h.b16 %v2276
        %v2364 = vunpack.c.l.b16 %v2277
        %v2365 = vunpack.c.h.b16 %v2277
        %v2366 = vunpack.c.l.b16 %v2278
        %v2367 = vunpack.c.h.b16 %v2278
        %v2368 = vunpack.c.l.b16 %v2279
        %v2369 = vunpack.c.h.b16 %v2279
        %v2370 = vunpack.c.l.b16 %v2280
        %v2371 = vunpack.c.h.b16 %v2280
        %v2372 = vunpack.c.l.b16 %v2281
        %v2373 = vunpack.c.h.b16 %v2281
        %v2374 = vunpack.c.l.b16 %v2282
        %v2375 = vunpack.c.h.b16 %v2282
        %v2376 = vunpack.c.l.b16 %v2283
        %v2377 = vunpack.c.h.b16 %v2283
        %v2378 = vunpack.c.l.b16 %v2284
        %v2379 = vunpack.c.h.b16 %v2284
        %v2380 = vunpack.c.l.b16 %v2285
        %v2381 = vunpack.c.h.b16 %v2285
        %v2382 = vunpack.c.l.b16 %v2286
        %v2383 = vunpack.c.h.b16 %v2286
        %v2384 = vunpack.c.l.b16 %v2287
        %v2385 = vunpack.c.h.b16 %v2287
        %v2386 = vpack.c.b16 %v2324, %v2322
        %v2387 = vpack.c.b16 %v2325, %v2323
        %v2388 = vpack.c.b16 %v2328, %v2326
        %v2389 = vpack.c.b16 %v2329, %v2327
        %v2390 = vpack.c.b16 %v2332, %v2330
        %v2391 = vpack.c.b16 %v2333, %v2331
        %v2392 = vpack.c.b16 %v2336, %v2334
        %v2393 = vpack.c.b16 %v2337, %v2335
        %v2394 = vpack.c.b16 %v2340, %v2338
        %v2395 = vpack.c.b16 %v2341, %v2339
        %v2396 = vpack.c.b16 %v2344, %v2342
        %v2397 = vpack.c.b16 %v2345, %v2343
        %v2398 = vpack.c.b16 %v2348, %v2346
        %v2399 = vpack.c.b16 %v2349, %v2347
        %v2400 = vpack.c.b16 %v2352, %v2350
        %v2401 = vpack.c.b16 %v2353, %v2351
        %v2402 = vpack.c.b16 %v2356, %v2354
        %v2403 = vpack.c.b16 %v2357, %v2355
        %v2404 = vpack.c.b16 %v2360, %v2358
        %v2405 = vpack.c.b16 %v2361, %v2359
        %v2406 = vpack.c.b16 %v2364, %v2362
        %v2407 = vpack.c.b16 %v2365, %v2363
        %v2408 = vpack.c.b16 %v2368, %v2366
        %v2409 = vpack.c.b16 %v2369, %v2367
        %v2410 = vpack.c.b16 %v2372, %v2370
        %v2411 = vpack.c.b16 %v2373, %v2371
        %v2412 = vpack.c.b16 %v2376, %v2374
        %v2413 = vpack.c.b16 %v2377, %v2375
        %v2414 = vpack.c.b16 %v2380, %v2378
        %v2415 = vpack.c.b16 %v2381, %v2379
        %v2416 = vpack.c.b16 %v2384, %v2382
        %v2417 = vpack.c.b16 %v2385, %v2383
        %2450 = vmatpush.bf16.msra.mxu0 %v2400
        %2451 = vmatpush.bf16.msra.mxu0 %v2398
        %2452 = vmatpush.bf16.msra.mxu0 %v2396
        %2453 = vmatpush.bf16.msra.mxu0 %v2394
        %2454 = vmatpush.bf16.msra.mxu0 %v2392
        %2455 = vmatpush.bf16.msra.mxu0 %v2390
        %2456 = vmatpush.bf16.msra.mxu0 %v2388
        %2457 = vmatpush.bf16.msra.mxu0 %v2386
        %2458 = vmatmul.bf16.gmra.mxu0 %v2253
        %v2459 = vpop.f32.mrf.mxu0
        %v2460 = vadd.f32 %v2288, %v2459
        %v2461 = vpop.f32.mrf.mxu0
        %v2462 = vadd.f32 %v2288, %v2461
        %2463 = vdwg.mxu0
        %2464 = vmatpush.bf16.msra.mxu0 %v2416
        %2465 = vmatpush.bf16.msra.mxu0 %v2414
        %2466 = vmatpush.bf16.msra.mxu0 %v2412
        %2467 = vmatpush.bf16.msra.mxu0 %v2410
        %2468 = vmatpush.bf16.msra.mxu0 %v2408
        %2469 = vmatpush.bf16.msra.mxu0 %v2406
        %2470 = vmatpush.bf16.msra.mxu0 %v2404
        %2471 = vmatpush.bf16.msra.mxu0 %v2402
        %2472 = vmatmul.bf16.gmra.mxu0 %v2254
        %v2473 = vpop.f32.mrf.mxu0
        %v2474 = vadd.f32 %v2460, %v2473
        %v2475 = vpop.f32.mrf.mxu0
        %v2476 = vadd.f32 %v2462, %v2475
        %2477 = vdwg.mxu0
        %2478 = vmatpush.bf16.msra.mxu0 %v2401
        %2479 = vmatpush.bf16.msra.mxu0 %v2399
        %2480 = vmatpush.bf16.msra.mxu0 %v2397
        %2481 = vmatpush.bf16.msra.mxu0 %v2395
        %2482 = vmatpush.bf16.msra.mxu0 %v2393
        %2483 = vmatpush.bf16.msra.mxu0 %v2391
        %2484 = vmatpush.bf16.msra.mxu0 %v2389
        %2485 = vmatpush.bf16.msra.mxu0 %v2387
        %2486 = vmatmul.bf16.gmra.mxu0 %v2253
        %v2487 = vpop.f32.mrf.mxu0
        %v2488 = vadd.f32 %v2289, %v2487
        %v2489 = vpop.f32.mrf.mxu0
        %v2490 = vadd.f32 %v2289, %v2489
        %2491 = vdwg.mxu0
        %2492 = vmatpush.bf16.msra.mxu0 %v2417
        %2493 = vmatpush.bf16.msra.mxu0 %v2415
        %2494 = vmatpush.bf16.msra.mxu0 %v2413
        %2495 = vmatpush.bf16.msra.mxu0 %v2411
        %2496 = vmatpush.bf16.msra.mxu0 %v2409
        %2497 = vmatpush.bf16.msra.mxu0 %v2407
        %2498 = vmatpush.bf16.msra.mxu0 %v2405
        %2499 = vmatpush.bf16.msra.mxu0 %v2403
        %2500 = vmatmul.bf16.gmra.mxu0 %v2254
        %v2501 = vpop.f32.mrf.mxu0
        %v2502 = vadd.f32 %v2488, %v2501
        %v2503 = vpop.f32.mrf.mxu0
        %v2504 = vadd.f32 %v2490, %v2503
        %2505 = vdwg.mxu0
        %vm2506 = vcmp.ge.f32.partialorder %v2474, 0.0
        %vm2507 = vcmp.ge.f32.partialorder %v2502, 0.0
        %vm2508 = vcmp.ge.f32.partialorder %v2476, 0.0
        %vm2509 = vcmp.ge.f32.partialorder %v2504, 0.0
        %v2510 = vmul.f32 %v2474, 0.01
        %v2511 = vmul.f32 %v2502, 0.01
        %v2512 = vmul.f32 %v2476, 0.01
        %v2513 = vmul.f32 %v2504, 0.01
        %v2514 = vsel %vm2506, %v2474, %v2510
        %v2515 = vsel %vm2507, %v2502, %v2511
        %v2516 = vsel %vm2508, %v2476, %v2512
        %v2517 = vsel %vm2509, %v2504, %v2513
        %v2518 = vpack.c.bf16 %v2516, %v2514
        %v2519 = vpack.c.bf16 %v2517, %v2515
        %v2520 = vld [vmem:[#allocation7] sm:$0xf]
        %v2521 = vld [vmem:[#allocation7 + $0x4] sm:$0xf]
        %v2522 = vld [vmem:[#allocation7 + $0x8] sm:$0xf]
        %v2523 = vld [vmem:[#allocation7 + $0xc] sm:$0xf]
        %v2524 = vld [vmem:[#allocation7 + $0x10] sm:$0xf]
        %v2525 = vld [vmem:[#allocation7 + $0x14] sm:$0xf]
        %v2526 = vld [vmem:[#allocation7 + $0x18] sm:$0xf]
        %v2527 = vld [vmem:[#allocation7 + $0x1c] sm:$0xf]
        %v2528 = vld [vmem:[#allocation7 + $0x20] sm:$0xf]
        %v2529 = vld [vmem:[#allocation7 + $0x24] sm:$0xf]
        %v2530 = vld [vmem:[#allocation7 + $0x28] sm:$0xf]
        %v2531 = vld [vmem:[#allocation7 + $0x2c] sm:$0xf]
        %v2532 = vld [vmem:[#allocation7 + $0x30] sm:$0xf]
        %v2533 = vld [vmem:[#allocation7 + $0x34] sm:$0xf]
        %v2534 = vld [vmem:[#allocation7 + $0x38] sm:$0xf]
        %v2535 = vld [vmem:[#allocation7 + $0x3c] sm:$0xf]
        %v2536 = vld [vmem:[#allocation7 + $0x40] sm:$0xf]
        %v2537 = vld [vmem:[#allocation7 + $0x44] sm:$0xf]
        %v2538 = vld [vmem:[#allocation7 + $0x48] sm:$0xf]
        %v2539 = vld [vmem:[#allocation7 + $0x4c] sm:$0xf]
        %v2540 = vld [vmem:[#allocation7 + $0x50] sm:$0xf]
        %v2541 = vld [vmem:[#allocation7 + $0x54] sm:$0xf]
        %v2542 = vld [vmem:[#allocation7 + $0x58] sm:$0xf]
        %v2543 = vld [vmem:[#allocation7 + $0x5c] sm:$0xf]
        %v2544 = vld [vmem:[#allocation7 + $0x60] sm:$0xf]
        %v2545 = vld [vmem:[#allocation7 + $0x64] sm:$0xf]
        %v2546 = vld [vmem:[#allocation7 + $0x68] sm:$0xf]
        %v2547 = vld [vmem:[#allocation7 + $0x6c] sm:$0xf]
        %v2548 = vld [vmem:[#allocation7 + $0x70] sm:$0xf]
        %v2549 = vld [vmem:[#allocation7 + $0x74] sm:$0xf]
        %v2550 = vld [vmem:[#allocation7 + $0x78] sm:$0xf]
        %v2551 = vld [vmem:[#allocation7 + $0x7c] sm:$0xf]
        %v2552 = vld [vmem:[%s5] sm:$0x1]
        %v2554 = vperm.slane %v2552, 0
        %v2588 = vunpack.c.l.b16 %v2520
        %v2589 = vunpack.c.l.b16 %v2521
        %v2590 = vunpack.c.l.b16 %v2522
        %v2591 = vunpack.c.l.b16 %v2523
        %v2592 = vunpack.c.l.b16 %v2524
        %v2593 = vunpack.c.l.b16 %v2525
        %v2594 = vunpack.c.l.b16 %v2526
        %v2595 = vunpack.c.l.b16 %v2527
        %v2596 = vunpack.c.l.b16 %v2528
        %v2597 = vunpack.c.l.b16 %v2529
        %v2598 = vunpack.c.l.b16 %v2530
        %v2599 = vunpack.c.l.b16 %v2531
        %v2600 = vunpack.c.l.b16 %v2532
        %v2601 = vunpack.c.l.b16 %v2533
        %v2602 = vunpack.c.l.b16 %v2534
        %v2603 = vunpack.c.l.b16 %v2535
        %v2604 = vunpack.c.l.b16 %v2536
        %v2605 = vunpack.c.l.b16 %v2537
        %v2606 = vunpack.c.l.b16 %v2538
        %v2607 = vunpack.c.l.b16 %v2539
        %v2608 = vunpack.c.l.b16 %v2540
        %v2609 = vunpack.c.l.b16 %v2541
        %v2610 = vunpack.c.l.b16 %v2542
        %v2611 = vunpack.c.l.b16 %v2543
        %v2612 = vunpack.c.l.b16 %v2544
        %v2613 = vunpack.c.l.b16 %v2545
        %v2614 = vunpack.c.l.b16 %v2546
        %v2615 = vunpack.c.l.b16 %v2547
        %v2616 = vunpack.c.l.b16 %v2548
        %v2617 = vunpack.c.l.b16 %v2549
        %v2618 = vunpack.c.l.b16 %v2550
        %v2619 = vunpack.c.l.b16 %v2551
        %v2620 = vpack.c.b16 %v2589, %v2588
        %v2621 = vpack.c.b16 %v2591, %v2590
        %v2622 = vpack.c.b16 %v2593, %v2592
        %v2623 = vpack.c.b16 %v2595, %v2594
        %v2624 = vpack.c.b16 %v2597, %v2596
        %v2625 = vpack.c.b16 %v2599, %v2598
        %v2626 = vpack.c.b16 %v2601, %v2600
        %v2627 = vpack.c.b16 %v2603, %v2602
        %v2628 = vpack.c.b16 %v2605, %v2604
        %v2629 = vpack.c.b16 %v2607, %v2606
        %v2630 = vpack.c.b16 %v2609, %v2608
        %v2631 = vpack.c.b16 %v2611, %v2610
        %v2632 = vpack.c.b16 %v2613, %v2612
        %v2633 = vpack.c.b16 %v2615, %v2614
        %v2634 = vpack.c.b16 %v2617, %v2616
        %v2635 = vpack.c.b16 %v2619, %v2618
        %2652 = vmatpush.bf16.msra.mxu0 %v2627
        %2653 = vmatpush.bf16.msra.mxu0 %v2626
        %2654 = vmatpush.bf16.msra.mxu0 %v2625
        %2655 = vmatpush.bf16.msra.mxu0 %v2624
        %2656 = vmatpush.bf16.msra.mxu0 %v2623
        %2657 = vmatpush.bf16.msra.mxu0 %v2622
        %2658 = vmatpush.bf16.msra.mxu0 %v2621
        %2659 = vmatpush.bf16.msra.mxu0 %v2620
        %2660 = vmatmul.bf16.gmra.mxu0 %v2518
        %v2661 = vpop.f32.mrf.mxu0
        %v2662 = vadd.f32 %v2554, %v2661
        %v2663 = vpop.f32.mrf.mxu0
        %v2664 = vadd.f32 %v2554, %v2663
        %2665 = vdwg.mxu0
        %2666 = vmatpush.bf16.msra.mxu0 %v2635
        %2667 = vmatpush.bf16.msra.mxu0 %v2634
        %2668 = vmatpush.bf16.msra.mxu0 %v2633
        %2669 = vmatpush.bf16.msra.mxu0 %v2632
        %2670 = vmatpush.bf16.msra.mxu0 %v2631
        %2671 = vmatpush.bf16.msra.mxu0 %v2630
        %2672 = vmatpush.bf16.msra.mxu0 %v2629
        %2673 = vmatpush.bf16.msra.mxu0 %v2628
        %2674 = vmatmul.bf16.gmra.mxu0 %v2519
        %v2675 = vpop.f32.mrf.mxu0
        %v2676 = vadd.f32 %v2662, %v2675
        %v2677 = vpop.f32.mrf.mxu0
        %v2678 = vadd.f32 %v2664, %v2677
        %2679 = vdwg.mxu0
        %2680 = vst [vmem:[%s293] sm:$0xff] %v2676
        %2681 = vst [vmem:[%s293 + $0x8] sm:$0xff] %v2678
        %s2682 = sand.u32 %s161, 1
        %s2683 = scalar_lea.sflag [#allocation4], %s2682
        %s2684 = sand.u32 %s161, 1
        %s2685 = smul.addr %s2684, 16
        %s2686 = scalar_lea.vmem [#allocation8], %s2685
        // Predicated region
        $region57: #{tpu_custom_call.1} parent=43 // pred_check
          %p2687 = pneg %p171
        $region58: #{tpu_custom_call.1} parent=43 // pred_check_branch
          %2689 = sbr.rel (%p2687) target = $region60
        $region59: #{tpu_custom_call.1} parent=43 // pred_region
          %s2690 = smul.u32 2, %s22
          %2692 = vsyncadd %s2683, 0
          %s2693 = smul.addr %s2690, 8
          %s2694 = scalar_lea.hbm %s6, %s2693
          %s2695 = sshll.u32 %s2686, 4
          %s2696 = int_to_ptr.vmem [resolvable:$true] %s2695
          %s2697 = sshll.u32 %s2694, 4
          %s2698 = int_to_ptr.hbm [resolvable:$true] %s2697
          %2703 = dma.vmem_to_hbm [thread:$0]  %s2696, 256, %s2698, %s2683, 128, 128, 8
        $region60: #{tpu_custom_call.1} parent=43 // pred_fallthru
          _
      $region44: #{tpu_custom_call.1} parent=5 // pred_fallthru
        _
      %p2704 = scmp.le.s32.totalorder 2, %s17
      // Predicated region
      $region61: #{tpu_custom_call.1} parent=5 // pred_check
        %p2705 = pneg %p2704
      $region62: #{tpu_custom_call.1} parent=5 // pred_check_branch
        %2707 = sbr.rel (%p2705) target = $region64
      $region63: #{tpu_custom_call.1} parent=5 // pred_region
        %s2708 = ssub.s32 %s17, 2
        // Predicated region
        $region65: #{tpu_custom_call.1} parent=63 // pred_check
          %p2709 = pneg %p177
        $region66: #{tpu_custom_call.1} parent=63 // pred_check_branch
          %2711 = sbr.rel (%p2709) target = $region68
        $region67: #{tpu_custom_call.1} parent=63 // pred_region
          %s2712 = sand.u32 %s162, 1
          %s2713 = scalar_lea.sflag [#allocation4], %s2712
          %s2714 = sand.u32 %s162, 1
          %s2715 = smul.addr %s2714, 16
          %s2716 = scalar_lea.vmem [#allocation8], %s2715
          %2718 = dma.done %s2713, 256
        $region68: #{tpu_custom_call.1} parent=63 // pred_fallthru
          _
      $region64: #{tpu_custom_call.1} parent=5 // pred_fallthru
        _
    $region6: #{tpu_custom_call.1} parent=1 // loop_footer
      %s21 = sadd.s32 1, %s17
    $region7: #{tpu_custom_call.1} parent=1 // loop_footer_branch
      %16 = sbr.rel target = $region3
    $region8: #{tpu_custom_call.1} parent=1 // loop_exit
      _
    %2719 = vsyncpa [#allocation3], 1
    %s2720 = scalar_lea.sflag [#allocation3], 1
    %2721 = vsyncpa %s2720, 1
    %2722 = vsyncpa [#allocation6], 1
    %2723 = vsyncpa [#allocation4], 1
    %s2724 = scalar_lea.sflag [#allocation4], 1
    %2725 = vsyncpa %s2724, 1

</llo_original>
